<compile_context>
chip_gen: v7x
topology: tpu7x:2x2x1
jax: 0.10.0
libtpu: 0.0.40
codegen_flags: <defaults>
</compile_context>

<pallas_src>
import jax
import jax.numpy as jnp
import numpy as np
from jax.experimental import pallas as pl
from jax.experimental.pallas import tpu as pltpu

L2_LAMBDA = 0.001
NCHUNKS = 2                    # even -> balanced megacore split on v7x
LANES = 128
SUBLANES = 8
MIN_STREAM_ELEMS = 1 << 18     # params smaller than this go to the "small" buffer
ROW_QUANTUM = SUBLANES * NCHUNKS * LANES   # elems a weight must divide to be chunk-streamed

# Parameter shapes implied by Network.__init__ / OutBlock.__init__ (PyTorch
# conventions: conv weight (Cout, Cin, kH, kW), linear weight (out, in)).
PARAM_SHAPES = [
    (256, 22, 3, 3), (256,),     # conv1
    (256, 256, 3, 3), (256,),    # conv2
    (256, 256, 3, 3), (256,),    # conv3 (unused in forward, still a parameter)
    (256, 256, 3, 3), (256,),    # conv4
    (256, 256, 3, 3), (256,),    # conv5
    (1, 256, 1, 1), (1,),        # valueHeadConv
    (256, 64), (256,),           # valueHeadLinear1
    (1, 256), (1,),              # valueHeadLinear2
    (256, 256, 3, 3), (256,),    # policyHeadConv1
    (73, 256, 1, 1), (73,),      # policyHeadConv2
]


def _sumsq_8x128(x):
    """Sum of squares of a (rows, 128) tile, folded to an (8,128) vreg shape.

    rows must be a multiple of 8.  The reshape does not cross (8,128) tile
    boundaries and the axis-0 reduction is pure VALU adds of vregs (no XLU).
    """
    x3 = x.reshape(-1, SUBLANES, LANES)
    return jnp.sum(x3 * x3, axis=0)


def alpha_loss_kernel(value_ref, yvalue_ref, policy_ref, ypolicy_ref,
                      small_ref, *rest):
    weight_refs = rest[:-1]
    out_ref = rest[-1]                               # (1, 8, 128) partial block
    i = pl.program_id(0)

    # (8,128)-shaped partial of sum(w^2) for this chunk of every streamed
    # weight -- fully hidden under the weight DMA.
    acc = jnp.zeros((SUBLANES, LANES), jnp.float32)
    for w_ref in weight_refs:
        acc = acc + _sumsq_8x128(w_ref[...])
    out_ref[0] = acc * L2_LAMBDA

    # Step 0 additionally folds in (a) the small-parameter L2 buffer and
    # (b) the (value MSE + policy cross-entropy) batch mean into element [0,0].
    @pl.when(i == 0)
    def _():
        small_sq = _sumsq_8x128(small_ref[...])                  # (8, 128)

        v = value_ref[...]                                       # (B, 1)
        yv = yvalue_ref[...]                                     # (B, 1)
        ve = (v - yv) ** 2                                       # (B, 1)
        p = policy_ref[...]                                      # (B, P)
        yp = ypolicy_ref[...]                                    # (B, P)
        pe = jnp.sum(-p * jnp.log(1e-6 + yp), axis=-1, keepdims=True)  # (B, 1)
        base = jnp.mean(ve + pe)                                 # scalar

        lane = jax.lax.broadcasted_iota(jnp.int32, (SUBLANES, LANES), 1)
        sub = jax.lax.broadcasted_iota(jnp.int32, (SUBLANES, LANES), 0)
        base_map = jnp.where((lane == 0) & (sub == 0), base, 0.0)
        # Same-step read-modify-write of the block this step just wrote.
        out_ref[0] = out_ref[0] + L2_LAMBDA * small_sq + base_map


def alpha_loss(value, y_value, policy, y_policy, params):
    """value, y_value: (B,1,1); policy, y_policy: (B, P); params: list of arrays."""
    B, P = policy.shape
    v = value.reshape(B, 1).astype(jnp.float32)
    yv = y_value.reshape(B, 1).astype(jnp.float32)
    pol = policy.astype(jnp.float32)
    ypol = y_policy.astype(jnp.float32)

    # Split parameters: large, chunk-alignable conv weights are streamed across
    # the grid; everything else goes into one lane-aligned "small" buffer.
    big, small = [], []
    for p in params:
        if p.size >= MIN_STREAM_ELEMS and p.size % ROW_QUANTUM == 0:
            big.append(p.reshape(-1, LANES).astype(jnp.float32))
        else:
            small.append(p)

    if small:
        flat = jnp.concatenate([p.reshape(-1).astype(jnp.float32) for p in small])
    else:
        flat = jnp.zeros((SUBLANES * LANES,), jnp.float32)
    pad = (-flat.size) % (SUBLANES * LANES)
    if pad:
        flat = jnp.concatenate([flat, jnp.zeros((pad,), jnp.float32)])
    small_buf = flat.reshape(flat.size // LANES, LANES)          # rows % 8 == 0

    in_specs = [
        pl.BlockSpec((B, 1), lambda i: (0, 0)),
        pl.BlockSpec((B, 1), lambda i: (0, 0)),
        pl.BlockSpec((B, P), lambda i: (0, 0)),
        pl.BlockSpec((B, P), lambda i: (0, 0)),
        pl.BlockSpec(small_buf.shape, lambda i: (0, 0)),         # resident; step-0 only
    ]
    for w in big:
        in_specs.append(
            pl.BlockSpec((w.shape[0] // NCHUNKS, LANES), lambda i: (i, 0)))

    streamed = sum(int(w.size) for w in big) + int(small_buf.size)
    cost = pl.CostEstimate(
        flops=2 * streamed + 6 * B * P,
        transcendentals=B * P,                                   # jnp.log in the CE term
        bytes_accessed=4 * (streamed + 2 * B * P + 2 * B
                            + NCHUNKS * SUBLANES * LANES),
    )

    partials = pl.pallas_call(
        alpha_loss_kernel,
        out_shape=jax.ShapeDtypeStruct((NCHUNKS, SUBLANES, LANES), jnp.float32),
        grid=(NCHUNKS,),
        in_specs=in_specs,
        out_specs=pl.BlockSpec((1, SUBLANES, LANES), lambda i: (i, 0, 0)),
        compiler_params=pltpu.CompilerParams(
            dimension_semantics=("parallel",),
            vmem_limit_bytes=32 * 1024 * 1024),
        cost_estimate=cost,
    )(v, yv, pol, ypol, small_buf, *big)

    return jnp.sum(partials)


def alpha_loss_ref(value, y_value, policy, y_policy, params):
    ve = (value - y_value) ** 2
    pe = jnp.sum(-policy * jnp.log(1e-6 + y_policy), axis=-1)
    l2 = sum(jnp.sum(p.astype(jnp.float32) ** 2) for p in params)
    return jnp.mean(ve.reshape(-1).astype(jnp.float32) + pe) + L2_LAMBDA * l2


def make_params(key):
    params = []
    for shape in PARAM_SHAPES:
        key, sub = jax.random.split(key)
        params.append(0.05 * jax.random.normal(sub, shape, dtype=jnp.float32))
    return params


if __name__ == "__main__":
    B = 2
    P = 73 * 8 * 8  # 4672, as implied by OutBlock's policy head

    key = jax.random.PRNGKey(0)
    k1, k2, k3, k4, k5 = jax.random.split(key, 5)

    value = jnp.tanh(jax.random.normal(k1, (B, 1, 1), dtype=jnp.float32))
    y_value = jnp.tanh(jax.random.normal(k2, (B, 1, 1), dtype=jnp.float32))
    policy = jax.nn.softmax(jax.random.normal(k3, (B, P), dtype=jnp.float32), axis=-1)
    y_policy = jax.nn.softmax(jax.random.normal(k4, (B, P), dtype=jnp.float32), axis=-1)
    params = make_params(k5)

    loss = jax.block_until_ready(alpha_loss(value, y_value, policy, y_policy, params))
    ref = jax.block_until_ready(alpha_loss_ref(value, y_value, policy, y_policy, params))
    np.testing.assert_allclose(np.asarray(loss), np.asarray(ref), rtol=1e-3, atol=1e-3)

    print("KERNEL_OK")
</pallas_src>

<mosaic_0001>
module attributes {stable_mosaic.version = 11 : i64} {
  func.func @alpha_loss_kernel(%arg0: i32, %arg1: memref<2x1xf32, #tpu.memory_space<vmem>>, %arg2: memref<2x1xf32, #tpu.memory_space<vmem>>, %arg3: memref<2x4672xf32, #tpu.memory_space<vmem>>, %arg4: memref<2x4672xf32, #tpu.memory_space<vmem>>, %arg5: memref<696x128xf32, #tpu.memory_space<vmem>>, %arg6: memref<2304x128xf32, #tpu.memory_space<vmem>>, %arg7: memref<2304x128xf32, #tpu.memory_space<vmem>>, %arg8: memref<2304x128xf32, #tpu.memory_space<vmem>>, %arg9: memref<2304x128xf32, #tpu.memory_space<vmem>>, %arg10: memref<2304x128xf32, #tpu.memory_space<vmem>>, %arg11: memref<1x8x128xf32, #tpu.memory_space<vmem>>) attributes {dimension_semantics = [#tpu.dimension_semantics<parallel>], iteration_bounds = array<i64: 2>, scalar_prefetch = 0 : i64, scratch_operands = 0 : i64, tpu.core_type = #tpu.core_type<tc>, window_params = [{pipeline_mode = #tpu.pipeline_mode<synchronous>, transform_indices = @transform_0, window_bounds = array<i64: 2, 1>}, {pipeline_mode = #tpu.pipeline_mode<synchronous>, transform_indices = @transform_1, window_bounds = array<i64: 2, 1>}, {pipeline_mode = #tpu.pipeline_mode<synchronous>, transform_indices = @transform_2, window_bounds = array<i64: 2, 4672>}, {pipeline_mode = #tpu.pipeline_mode<synchronous>, transform_indices = @transform_3, window_bounds = array<i64: 2, 4672>}, {pipeline_mode = #tpu.pipeline_mode<synchronous>, transform_indices = @transform_4, window_bounds = array<i64: 696, 128>}, {transform_indices = @transform_5, window_bounds = array<i64: 2304, 128>}, {transform_indices = @transform_6, window_bounds = array<i64: 2304, 128>}, {transform_indices = @transform_7, window_bounds = array<i64: 2304, 128>}, {transform_indices = @transform_8, window_bounds = array<i64: 2304, 128>}, {transform_indices = @transform_9, window_bounds = array<i64: 2304, 128>}, {transform_indices = @transform_10, window_bounds = array<i64: 1, 8, 128>}]} {
    %cst = arith.constant 0.000000e+00 : f32
    %0 = vector.broadcast %cst : f32 to vector<8x128xf32>
    %c0 = arith.constant 0 : index
    %c0_0 = arith.constant 0 : index
    %1 = vector.load %arg6[%c0, %c0_0] : memref<2304x128xf32, #tpu.memory_space<vmem>>, vector<2304x128xf32>
    %2 = vector.shape_cast %1 : vector<2304x128xf32> to vector<288x8x128xf32>
    %3 = arith.mulf %2, %2 : vector<288x8x128xf32>
    %cst_1 = arith.constant dense<0.000000e+00> : vector<8x128xf32>
    %4 = vector.multi_reduction <add>, %3, %cst_1 [0] : vector<288x8x128xf32> to vector<8x128xf32>
    %5 = arith.addf %0, %4 : vector<8x128xf32>
    %c0_2 = arith.constant 0 : index
    %c0_3 = arith.constant 0 : index
    %6 = vector.load %arg7[%c0_2, %c0_3] : memref<2304x128xf32, #tpu.memory_space<vmem>>, vector<2304x128xf32>
    %7 = vector.shape_cast %6 : vector<2304x128xf32> to vector<288x8x128xf32>
    %8 = arith.mulf %7, %7 : vector<288x8x128xf32>
    %cst_4 = arith.constant dense<0.000000e+00> : vector<8x128xf32>
    %9 = vector.multi_reduction <add>, %8, %cst_4 [0] : vector<288x8x128xf32> to vector<8x128xf32>
    %10 = arith.addf %5, %9 : vector<8x128xf32>
    %c0_5 = arith.constant 0 : index
    %c0_6 = arith.constant 0 : index
    %11 = vector.load %arg8[%c0_5, %c0_6] : memref<2304x128xf32, #tpu.memory_space<vmem>>, vector<2304x128xf32>
    %12 = vector.shape_cast %11 : vector<2304x128xf32> to vector<288x8x128xf32>
    %13 = arith.mulf %12, %12 : vector<288x8x128xf32>
    %cst_7 = arith.constant dense<0.000000e+00> : vector<8x128xf32>
    %14 = vector.multi_reduction <add>, %13, %cst_7 [0] : vector<288x8x128xf32> to vector<8x128xf32>
    %15 = arith.addf %10, %14 : vector<8x128xf32>
    %c0_8 = arith.constant 0 : index
    %c0_9 = arith.constant 0 : index
    %16 = vector.load %arg9[%c0_8, %c0_9] : memref<2304x128xf32, #tpu.memory_space<vmem>>, vector<2304x128xf32>
    %17 = vector.shape_cast %16 : vector<2304x128xf32> to vector<288x8x128xf32>
    %18 = arith.mulf %17, %17 : vector<288x8x128xf32>
    %cst_10 = arith.constant dense<0.000000e+00> : vector<8x128xf32>
    %19 = vector.multi_reduction <add>, %18, %cst_10 [0] : vector<288x8x128xf32> to vector<8x128xf32>
    %20 = arith.addf %15, %19 : vector<8x128xf32>
    %c0_11 = arith.constant 0 : index
    %c0_12 = arith.constant 0 : index
    %21 = vector.load %arg10[%c0_11, %c0_12] : memref<2304x128xf32, #tpu.memory_space<vmem>>, vector<2304x128xf32>
    %22 = vector.shape_cast %21 : vector<2304x128xf32> to vector<288x8x128xf32>
    %23 = arith.mulf %22, %22 : vector<288x8x128xf32>
    %cst_13 = arith.constant dense<0.000000e+00> : vector<8x128xf32>
    %24 = vector.multi_reduction <add>, %23, %cst_13 [0] : vector<288x8x128xf32> to vector<8x128xf32>
    %25 = arith.addf %20, %24 : vector<8x128xf32>
    %cst_14 = arith.constant 1.000000e-03 : f32
    %26 = vector.broadcast %cst_14 : f32 to vector<8x128xf32>
    %27 = arith.mulf %25, %26 : vector<8x128xf32>
    %c0_15 = arith.constant 0 : index
    %c0_16 = arith.constant 0 : index
    %c0_17 = arith.constant 0 : index
    %28 = vector.load %arg11[%c0_15, %c0_16, %c0_17] : memref<1x8x128xf32, #tpu.memory_space<vmem>>, vector<1x8x128xf32>
    %29 = vector.shape_cast %28 : vector<1x8x128xf32> to vector<8x128xf32>
    %30 = vector.shape_cast %27 : vector<8x128xf32> to vector<1x8x128xf32>
    tpu.vector_store %arg11[%c0_15, %c0_16, %c0_17], %30 {strides = array<i32>} : memref<1x8x128xf32, #tpu.memory_space<vmem>>, vector<1x8x128xf32>,
    %c0_i32 = arith.constant 0 : i32
    %31 = arith.cmpi eq, %arg0, %c0_i32 : i32
    %32 = arith.extui %31 : i1 to i32
    %c0_i32_18 = arith.constant 0 : i32
    %33 = arith.cmpi ne, %32, %c0_i32_18 : i32
    scf.if %33 {
      %c0_19 = arith.constant 0 : index
      %c0_20 = arith.constant 0 : index
      %34 = vector.load %arg5[%c0_19, %c0_20] : memref<696x128xf32, #tpu.memory_space<vmem>>, vector<696x128xf32>
      %35 = vector.shape_cast %34 : vector<696x128xf32> to vector<87x8x128xf32>
      %36 = arith.mulf %35, %35 : vector<87x8x128xf32>
      %cst_21 = arith.constant dense<0.000000e+00> : vector<8x128xf32>
      %37 = vector.multi_reduction <add>, %36, %cst_21 [0] : vector<87x8x128xf32> to vector<8x128xf32>
      %c0_22 = arith.constant 0 : index
      %c0_23 = arith.constant 0 : index
      %38 = vector.load %arg1[%c0_22, %c0_23] : memref<2x1xf32, #tpu.memory_space<vmem>>, vector<2x1xf32>
      %c0_24 = arith.constant 0 : index
      %c0_25 = arith.constant 0 : index
      %39 = vector.load %arg2[%c0_24, %c0_25] : memref<2x1xf32, #tpu.memory_space<vmem>>, vector<2x1xf32>
      %40 = arith.subf %38, %39 : vector<2x1xf32>
      %41 = arith.mulf %40, %40 : vector<2x1xf32>
      %c0_26 = arith.constant 0 : index
      %c0_27 = arith.constant 0 : index
      %42 = vector.load %arg3[%c0_26, %c0_27] : memref<2x4672xf32, #tpu.memory_space<vmem>>, vector<2x4672xf32>
      %c0_28 = arith.constant 0 : index
      %c0_29 = arith.constant 0 : index
      %43 = vector.load %arg4[%c0_28, %c0_29] : memref<2x4672xf32, #tpu.memory_space<vmem>>, vector<2x4672xf32>
      %cst_30 = arith.constant 0.000000e+00 : f32
      %44 = vector.broadcast %cst_30 : f32 to vector<2x4672xf32>
      %45 = arith.subf %44, %42 : vector<2x4672xf32>
      %cst_31 = arith.constant 9.99999997E-7 : f32
      %46 = vector.broadcast %cst_31 : f32 to vector<2x4672xf32>
      %47 = arith.addf %46, %43 : vector<2x4672xf32>
      %48 = math.log %47 : vector<2x4672xf32>
      %49 = arith.mulf %45, %48 : vector<2x4672xf32>
      %cst_32 = arith.constant dense<0.000000e+00> : vector<2xf32>
      %50 = vector.multi_reduction <add>, %49, %cst_32 [1] : vector<2x4672xf32> to vector<2xf32>
      %51 = vector.shape_cast %50 : vector<2xf32> to vector<2x1xf32>
      %52 = arith.addf %41, %51 : vector<2x1xf32>
      %53 = vector.shape_cast %52 : vector<2x1xf32> to vector<1x2x1xf32>
      %cst_33 = arith.constant dense<0.000000e+00> : vector<1xf32>
      %54 = vector.multi_reduction <add>, %53, %cst_33 [1, 2] : vector<1x2x1xf32> to vector<1xf32>
      %55 = vector.shape_cast %54 : vector<1xf32> to vector<1x1x1xf32>
      %56 = vector.extract %55[0, 0, 0] : f32 from vector<1x1x1xf32>
      %cst_34 = arith.constant 2.000000e+00 : f32
      %57 = arith.divf %56, %cst_34 : f32
      %58 = tpu.iota {dimensions = array<i32: 1>} : vector<8x128xi32>
      %59 = tpu.iota {dimensions = array<i32: 0>} : vector<8x128xi32>
      %c0_i32_35 = arith.constant 0 : i32
      %60 = vector.broadcast %c0_i32_35 : i32 to vector<8x128xi32>
      %61 = arith.cmpi eq, %58, %60 : vector<8x128xi32>
      %c0_i32_36 = arith.constant 0 : i32
      %62 = vector.broadcast %c0_i32_36 : i32 to vector<8x128xi32>
      %63 = arith.cmpi eq, %59, %62 : vector<8x128xi32>
      %64 = arith.andi %61, %63 : vector<8x128xi1>
      %cst_37 = arith.constant 0.000000e+00 : f32
      %65 = vector.broadcast %57 : f32 to vector<8x128xf32>
      %66 = vector.broadcast %cst_37 : f32 to vector<8x128xf32>
      %67 = arith.select %64, %65, %66 : vector<8x128xi1>, vector<8x128xf32>
      %c0_38 = arith.constant 0 : index
      %c0_39 = arith.constant 0 : index
      %c0_40 = arith.constant 0 : index
      %68 = vector.load %arg11[%c0_38, %c0_39, %c0_40] : memref<1x8x128xf32, #tpu.memory_space<vmem>>, vector<1x8x128xf32>
      %69 = vector.shape_cast %68 : vector<1x8x128xf32> to vector<8x128xf32>
      %cst_41 = arith.constant 1.000000e-03 : f32
      %70 = vector.broadcast %cst_41 : f32 to vector<8x128xf32>
      %71 = arith.mulf %70, %37 : vector<8x128xf32>
      %72 = arith.addf %69, %71 : vector<8x128xf32>
      %73 = arith.addf %72, %67 : vector<8x128xf32>
      %c0_42 = arith.constant 0 : index
      %c0_43 = arith.constant 0 : index
      %c0_44 = arith.constant 0 : index
      %74 = vector.load %arg11[%c0_42, %c0_43, %c0_44] : memref<1x8x128xf32, #tpu.memory_space<vmem>>, vector<1x8x128xf32>
      %75 = vector.shape_cast %74 : vector<1x8x128xf32> to vector<8x128xf32>
      %76 = vector.shape_cast %73 : vector<8x128xf32> to vector<1x8x128xf32>
      tpu.vector_store %arg11[%c0_42, %c0_43, %c0_44], %76 {strides = array<i32>} : memref<1x8x128xf32, #tpu.memory_space<vmem>>, vector<1x8x128xf32>,
    } else {
    }
    return
  }
  func.func @transform_0(%arg0: i32) -> (i32, i32) {
    %c0_i32 = arith.constant 0 : i32
    %c0_i32_0 = arith.constant 0 : i32
    %c0_i32_1 = arith.constant 0 : i32
    return %c0_i32, %c0_i32_0 : i32, i32
  }
  func.func @transform_1(%arg0: i32) -> (i32, i32) {
    %c0_i32 = arith.constant 0 : i32
    %c0_i32_0 = arith.constant 0 : i32
    %c0_i32_1 = arith.constant 0 : i32
    return %c0_i32, %c0_i32_0 : i32, i32
  }
  func.func @transform_2(%arg0: i32) -> (i32, i32) {
    %c0_i32 = arith.constant 0 : i32
    %c0_i32_0 = arith.constant 0 : i32
    %c0_i32_1 = arith.constant 0 : i32
    return %c0_i32, %c0_i32_0 : i32, i32
  }
  func.func @transform_3(%arg0: i32) -> (i32, i32) {
    %c0_i32 = arith.constant 0 : i32
    %c0_i32_0 = arith.constant 0 : i32
    %c0_i32_1 = arith.constant 0 : i32
    return %c0_i32, %c0_i32_0 : i32, i32
  }
  func.func @transform_4(%arg0: i32) -> (i32, i32) {
    %c0_i32 = arith.constant 0 : i32
    %c0_i32_0 = arith.constant 0 : i32
    %c0_i32_1 = arith.constant 0 : i32
    return %c0_i32, %c0_i32_0 : i32, i32
  }
  func.func @transform_5(%arg0: i32) -> (i32, i32) {
    %c0_i32 = arith.constant 0 : i32
    %c0_i32_0 = arith.constant 0 : i32
    return %arg0, %c0_i32 : i32, i32
  }
  func.func @transform_6(%arg0: i32) -> (i32, i32) {
    %c0_i32 = arith.constant 0 : i32
    %c0_i32_0 = arith.constant 0 : i32
    return %arg0, %c0_i32 : i32, i32
  }
  func.func @transform_7(%arg0: i32) -> (i32, i32) {
    %c0_i32 = arith.constant 0 : i32
    %c0_i32_0 = arith.constant 0 : i32
    return %arg0, %c0_i32 : i32, i32
  }
  func.func @transform_8(%arg0: i32) -> (i32, i32) {
    %c0_i32 = arith.constant 0 : i32
    %c0_i32_0 = arith.constant 0 : i32
    return %arg0, %c0_i32 : i32, i32
  }
  func.func @transform_9(%arg0: i32) -> (i32, i32) {
    %c0_i32 = arith.constant 0 : i32
    %c0_i32_0 = arith.constant 0 : i32
    return %arg0, %c0_i32 : i32, i32
  }
  func.func @transform_10(%arg0: i32) -> (i32, i32, i32) {
    %c0_i32 = arith.constant 0 : i32
    %c0_i32_0 = arith.constant 0 : i32
    %c0_i32_1 = arith.constant 0 : i32
    return %arg0, %c0_i32, %c0_i32_0 : i32, i32, i32
  }
}

</mosaic_0001>

<llo_original>
// kernel: tpu_custom_call.1
$region0: #{tpu_custom_call.1}
  #allocation0 [shape = 'u32[]', space=smem, size = 0x4, offset = 0x4, fixed_abs, tag = 'smem constant byte address 0x4 - core index']
  #allocation1 [shape = 'u32[144,128]{1,0:T(1,128)}', space=vmem, size = 0x12000, scoped, tag = 'internal scratch']
  %s0 = inlined_call_operand.vmem [shape: f32[2,1], index: 0, kind: input, shape index: {}]
  %s1 = inlined_call_operand.vmem [shape: f32[2,1], index: 1, kind: input, shape index: {}]
  %s2 = inlined_call_operand.hbm [shape: f32[2,4672], index: 2, kind: input, shape index: {}]
  %s3 = inlined_call_operand.hbm [shape: f32[2,4672], index: 3, kind: input, shape index: {}]
  %s4 = inlined_call_operand.hbm [shape: f32[696,128], index: 4, kind: input, shape index: {}]
  %s5 = inlined_call_operand.hbm [shape: f32[4608,128], index: 5, kind: input, shape index: {}]
  %s6 = inlined_call_operand.hbm [shape: f32[4608,128], index: 6, kind: input, shape index: {}]
  %s7 = inlined_call_operand.hbm [shape: f32[4608,128], index: 7, kind: input, shape index: {}]
  %s8 = inlined_call_operand.hbm [shape: f32[4608,128], index: 8, kind: input, shape index: {}]
  %s9 = inlined_call_operand.hbm [shape: f32[4608,128], index: 9, kind: input, shape index: {}]
  %s10 = inlined_call_operand.hbm [shape: f32[2,8,128], index: 10, kind: output, shape index: {}]
  %s11 = sld [smem:[#allocation0]]
  $region109: #{tpu_custom_call.1} parent=0
    _
  %s13 = ssub.s32 1, %s11
  %s14 = scalar_select 0, %s13, %s11
  $region1: #{tpu_custom_call.1} parent=0
    #allocation2 [shape = 'u8[37888]{0}', space=vmem, size = 0x9400, scoped, tag = 'input window, operand 2, single buffered']
    #allocation3 [shape = 's32[2]{0}', space=sflag, size = 0x8, scoped, tag = 'scoped memory for tpu_custom_call.1']
    #allocation4 [shape = 's32[2]{0}', space=sflag, size = 0x8, scoped, tag = 'scoped memory for tpu_custom_call.1']
    #allocation5 [shape = 'u8[37888]{0}', space=vmem, size = 0x9400, scoped, tag = 'input window, operand 3, single buffered']
    #allocation6 [shape = 's32[1]{0}', space=sflag, size = 0x4, scoped, tag = 'scoped memory for tpu_custom_call.1']
    #allocation7 [shape = 'u8[356352]{0}', space=vmem, size = 0x57000, scoped, tag = 'input window, operand 4, single buffered']
    #allocation8 [shape = 'u8[2359296]{0}', space=vmem, size = 0x240000, scoped, tag = 'input window, operand 5']
    #allocation9 [shape = 's32[2]{0}', space=sflag, size = 0x8, scoped, tag = 'scoped memory for tpu_custom_call.1']
    #allocation10 [shape = 'u8[2359296]{0}', space=vmem, size = 0x240000, scoped, tag = 'input window, operand 6']
    #allocation11 [shape = 'u8[2359296]{0}', space=vmem, size = 0x240000, scoped, tag = 'input window, operand 7']
    #allocation12 [shape = 's32[2]{0}', space=sflag, size = 0x8, scoped, tag = 'scoped memory for tpu_custom_call.1']
    #allocation13 [shape = 'u8[2359296]{0}', space=vmem, size = 0x240000, scoped, tag = 'input window, operand 8']
    #allocation14 [shape = 'u8[2359296]{0}', space=vmem, size = 0x240000, scoped, tag = 'input window, operand 9']
    #allocation15 [shape = 's32[2]{0}', space=sflag, size = 0x8, scoped, tag = 'scoped memory for tpu_custom_call.1']
    #allocation16 [shape = 'u8[8192]{0}', space=vmem, size = 0x2000, scoped, tag = 'output window, operand 0']
    %15 = vsyncpa [#allocation3], 0
    %16 = vsyncpa [#allocation6], 0
    %17 = vsyncpa [#allocation9], 0
    %s18 = scalar_lea.sflag [#allocation9], 1
    %19 = vsyncpa %s18, 0
    %20 = vsyncpa [#allocation12], 0
    %s21 = scalar_lea.sflag [#allocation12], 1
    %22 = vsyncpa %s21, 0
    %23 = vsyncpa [#allocation15], 0
    %s24 = scalar_lea.sflag [#allocation15], 1
    %25 = vsyncpa %s24, 0
    %26 = vsyncpa [#allocation4], 0
    %s27 = scalar_lea.sflag [#allocation4], 1
    %28 = vsyncpa %s27, 0
    loop: start=0, step=1, limit=4
    $region2: #{tpu_custom_call.1} parent=1 // loop_pre_header
      _
    $region3: #{tpu_custom_call.1} parent=1 // loop_header
      %s30 = sphi 0, %s34
      %p31 = scmp.ge.s32.totalorder %s30, 4
      %s38 = sphi 0, %s38
      %s40 = sphi 0, %s38
      %s41 = sphi 0, %s40
      %s55 = sphi 0, %s41
      %s59 = sphi 0, %s59
      %s61 = sphi 0, %s59
      %s62 = sphi 0, %s61
      %s76 = sphi 0, %s62
      %s80 = sphi 0, %s80
      %s82 = sphi 0, %s80
      %s83 = sphi 0, %s82
      %s97 = sphi 0, %s83
      %s101 = sphi 0, %s101
      %s103 = sphi 0, %s101
      %s104 = sphi 0, %s103
      %s118 = sphi 0, %s104
      %s122 = sphi 0, %s122
      %s124 = sphi 0, %s122
      %s125 = sphi 0, %s124
      %s139 = sphi 0, %s125
      %s145 = sphi 0, %s147
      %s148 = sphi 0, %s145
      %s149 = sphi 0, %s148
      %s165 = sphi 0, %s149
      %s171 = sphi 0, %s173
      %s174 = sphi 0, %s171
      %s175 = sphi 0, %s174
      %s191 = sphi 0, %s175
      %s197 = sphi 0, %s199
      %s200 = sphi 0, %s197
      %s201 = sphi 0, %s200
      %s217 = sphi 0, %s201
      %s223 = sphi 0, %s225
      %s226 = sphi 0, %s223
      %s227 = sphi 0, %s226
      %s243 = sphi 0, %s227
      %s249 = sphi 0, %s251
      %s252 = sphi 0, %s249
      %s253 = sphi 0, %s252
      %s269 = sphi 0, %s253
      %s275 = sphi 0, %s277
      %s278 = sphi 0, %s275
      %s279 = sphi 0, %s278
      %s295 = sphi 0, %s279
    $region4: #{tpu_custom_call.1} parent=1 // loop_header_branch
      %33 = sbr.rel (%p31) target = $region8
    $region5: #{tpu_custom_call.1} parent=1 // loop_body
      %s35 = ssub.s32 %s30, 1
      %s36 = ssub.s32 %s30, 2
      %s37 = sadd.s32 %s30, 1
      %s39 = sadd.s32 %s38, 1
      %p42 = scmp.eq.s32.totalorder %s30, 1
      %p43 = scmp.ne.s32.totalorder %s38, %s40
      %p44 = scmp.eq.s32.totalorder %s30, 0
      %p45 = por %p43, %p44
      %p46 = scmp.ne.s32.totalorder %s38, %s40
      %p47 = scmp.eq.s32.totalorder %s35, 1
      %p48 = por %p46, %p47
      %p49 = scmp.ne.s32.totalorder %s40, %s41
      %p50 = scmp.eq.s32.totalorder %s35, 0
      %p51 = por %p49, %p50
      %p52 = scmp.ne.s32.totalorder %s40, %s41
      %p53 = scmp.eq.s32.totalorder %s36, 1
      %p54 = por %p52, %p53
      %p56 = scmp.ne.s32.totalorder %s41, %s55
      %p57 = scmp.eq.s32.totalorder %s36, 0
      %p58 = por %p56, %p57
      %s60 = sadd.s32 %s59, 1
      %p63 = scmp.eq.s32.totalorder %s30, 1
      %p64 = scmp.ne.s32.totalorder %s59, %s61
      %p65 = scmp.eq.s32.totalorder %s30, 0
      %p66 = por %p64, %p65
      %p67 = scmp.ne.s32.totalorder %s59, %s61
      %p68 = scmp.eq.s32.totalorder %s35, 1
      %p69 = por %p67, %p68
      %p70 = scmp.ne.s32.totalorder %s61, %s62
      %p71 = scmp.eq.s32.totalorder %s35, 0
      %p72 = por %p70, %p71
      %p73 = scmp.ne.s32.totalorder %s61, %s62
      %p74 = scmp.eq.s32.totalorder %s36, 1
      %p75 = por %p73, %p74
      %p77 = scmp.ne.s32.totalorder %s62, %s76
      %p78 = scmp.eq.s32.totalorder %s36, 0
      %p79 = por %p77, %p78
      %s81 = sadd.s32 %s80, 1
      %p84 = scmp.eq.s32.totalorder %s30, 1
      %p85 = scmp.ne.s32.totalorder %s80, %s82
      %p86 = scmp.eq.s32.totalorder %s30, 0
      %p87 = por %p85, %p86
      %p88 = scmp.ne.s32.totalorder %s80, %s82
      %p89 = scmp.eq.s32.totalorder %s35, 1
      %p90 = por %p88, %p89
      %p91 = scmp.ne.s32.totalorder %s82, %s83
      %p92 = scmp.eq.s32.totalorder %s35, 0
      %p93 = por %p91, %p92
      %p94 = scmp.ne.s32.totalorder %s82, %s83
      %p95 = scmp.eq.s32.totalorder %s36, 1
      %p96 = por %p94, %p95
      %p98 = scmp.ne.s32.totalorder %s83, %s97
      %p99 = scmp.eq.s32.totalorder %s36, 0
      %p100 = por %p98, %p99
      %s102 = sadd.s32 %s101, 1
      %p105 = scmp.eq.s32.totalorder %s30, 1
      %p106 = scmp.ne.s32.totalorder %s101, %s103
      %p107 = scmp.eq.s32.totalorder %s30, 0
      %p108 = por %p106, %p107
      %p109 = scmp.ne.s32.totalorder %s101, %s103
      %p110 = scmp.eq.s32.totalorder %s35, 1
      %p111 = por %p109, %p110
      %p112 = scmp.ne.s32.totalorder %s103, %s104
      %p113 = scmp.eq.s32.totalorder %s35, 0
      %p114 = por %p112, %p113
      %p115 = scmp.ne.s32.totalorder %s103, %s104
      %p116 = scmp.eq.s32.totalorder %s36, 1
      %p117 = por %p115, %p116
      %p119 = scmp.ne.s32.totalorder %s104, %s118
      %p120 = scmp.eq.s32.totalorder %s36, 0
      %p121 = por %p119, %p120
      %s123 = sadd.s32 %s122, 1
      %p126 = scmp.eq.s32.totalorder %s30, 1
      %p127 = scmp.ne.s32.totalorder %s122, %s124
      %p128 = scmp.eq.s32.totalorder %s30, 0
      %p129 = por %p127, %p128
      %p130 = scmp.ne.s32.totalorder %s122, %s124
      %p131 = scmp.eq.s32.totalorder %s35, 1
      %p132 = por %p130, %p131
      %p133 = scmp.ne.s32.totalorder %s124, %s125
      %p134 = scmp.eq.s32.totalorder %s35, 0
      %p135 = por %p133, %p134
      %p136 = scmp.ne.s32.totalorder %s124, %s125
      %p137 = scmp.eq.s32.totalorder %s36, 1
      %p138 = por %p136, %p137
      %p140 = scmp.ne.s32.totalorder %s125, %s139
      %p141 = scmp.eq.s32.totalorder %s36, 0
      %p142 = por %p140, %p141
      %s143 = ssub.s32 %s30, %s37
      %p144 = scmp.eq.s32.totalorder %s143, 0
      %s146 = sadd.s32 %s145, 1
      %s147 = scalar_select %p144, %s145, %s146
      %p150 = pneg %p144
      %p151 = scmp.eq.s32.totalorder %s30, 1
      %p152 = por %p150, %p151
      %p153 = scmp.ne.s32.totalorder %s145, %s148
      %p154 = scmp.eq.s32.totalorder %s30, 0
      %p155 = por %p153, %p154
      %p156 = scmp.ne.s32.totalorder %s145, %s148
      %p157 = scmp.eq.s32.totalorder %s35, 1
      %p158 = por %p156, %p157
      %p159 = scmp.ne.s32.totalorder %s148, %s149
      %p160 = scmp.eq.s32.totalorder %s35, 0
      %p161 = por %p159, %p160
      %p162 = scmp.ne.s32.totalorder %s148, %s149
      %p163 = scmp.eq.s32.totalorder %s36, 1
      %p164 = por %p162, %p163
      %p166 = scmp.ne.s32.totalorder %s149, %s165
      %p167 = scmp.eq.s32.totalorder %s36, 0
      %p168 = por %p166, %p167
      %s169 = ssub.s32 %s30, %s37
      %p170 = scmp.eq.s32.totalorder %s169, 0
      %s172 = sadd.s32 %s171, 1
      %s173 = scalar_select %p170, %s171, %s172
      %p176 = pneg %p170
      %p177 = scmp.eq.s32.totalorder %s30, 1
      %p178 = por %p176, %p177
      %p179 = scmp.ne.s32.totalorder %s171, %s174
      %p180 = scmp.eq.s32.totalorder %s30, 0
      %p181 = por %p179, %p180
      %p182 = scmp.ne.s32.totalorder %s171, %s174
      %p183 = scmp.eq.s32.totalorder %s35, 1
      %p184 = por %p182, %p183
      %p185 = scmp.ne.s32.totalorder %s174, %s175
      %p186 = scmp.eq.s32.totalorder %s35, 0
      %p187 = por %p185, %p186
      %p188 = scmp.ne.s32.totalorder %s174, %s175
      %p189 = scmp.eq.s32.totalorder %s36, 1
      %p190 = por %p188, %p189
      %p192 = scmp.ne.s32.totalorder %s175, %s191
      %p193 = scmp.eq.s32.totalorder %s36, 0
      %p194 = por %p192, %p193
      %s195 = ssub.s32 %s30, %s37
      %p196 = scmp.eq.s32.totalorder %s195, 0
      %s198 = sadd.s32 %s197, 1
      %s199 = scalar_select %p196, %s197, %s198
      %p202 = pneg %p196
      %p203 = scmp.eq.s32.totalorder %s30, 1
      %p204 = por %p202, %p203
      %p205 = scmp.ne.s32.totalorder %s197, %s200
      %p206 = scmp.eq.s32.totalorder %s30, 0
      %p207 = por %p205, %p206
      %p208 = scmp.ne.s32.totalorder %s197, %s200
      %p209 = scmp.eq.s32.totalorder %s35, 1
      %p210 = por %p208, %p209
      %p211 = scmp.ne.s32.totalorder %s200, %s201
      %p212 = scmp.eq.s32.totalorder %s35, 0
      %p213 = por %p211, %p212
      %p214 = scmp.ne.s32.totalorder %s200, %s201
      %p215 = scmp.eq.s32.totalorder %s36, 1
      %p216 = por %p214, %p215
      %p218 = scmp.ne.s32.totalorder %s201, %s217
      %p219 = scmp.eq.s32.totalorder %s36, 0
      %p220 = por %p218, %p219
      %s221 = ssub.s32 %s30, %s37
      %p222 = scmp.eq.s32.totalorder %s221, 0
      %s224 = sadd.s32 %s223, 1
      %s225 = scalar_select %p222, %s223, %s224
      %p228 = pneg %p222
      %p229 = scmp.eq.s32.totalorder %s30, 1
      %p230 = por %p228, %p229
      %p231 = scmp.ne.s32.totalorder %s223, %s226
      %p232 = scmp.eq.s32.totalorder %s30, 0
      %p233 = por %p231, %p232
      %p234 = scmp.ne.s32.totalorder %s223, %s226
      %p235 = scmp.eq.s32.totalorder %s35, 1
      %p236 = por %p234, %p235
      %p237 = scmp.ne.s32.totalorder %s226, %s227
      %p238 = scmp.eq.s32.totalorder %s35, 0
      %p239 = por %p237, %p238
      %p240 = scmp.ne.s32.totalorder %s226, %s227
      %p241 = scmp.eq.s32.totalorder %s36, 1
      %p242 = por %p240, %p241
      %p244 = scmp.ne.s32.totalorder %s227, %s243
      %p245 = scmp.eq.s32.totalorder %s36, 0
      %p246 = por %p244, %p245
      %s247 = ssub.s32 %s30, %s37
      %p248 = scmp.eq.s32.totalorder %s247, 0
      %s250 = sadd.s32 %s249, 1
      %s251 = scalar_select %p248, %s249, %s250
      %p254 = pneg %p248
      %p255 = scmp.eq.s32.totalorder %s30, 1
      %p256 = por %p254, %p255
      %p257 = scmp.ne.s32.totalorder %s249, %s252
      %p258 = scmp.eq.s32.totalorder %s30, 0
      %p259 = por %p257, %p258
      %p260 = scmp.ne.s32.totalorder %s249, %s252
      %p261 = scmp.eq.s32.totalorder %s35, 1
      %p262 = por %p260, %p261
      %p263 = scmp.ne.s32.totalorder %s252, %s253
      %p264 = scmp.eq.s32.totalorder %s35, 0
      %p265 = por %p263, %p264
      %p266 = scmp.ne.s32.totalorder %s252, %s253
      %p267 = scmp.eq.s32.totalorder %s36, 1
      %p268 = por %p266, %p267
      %p270 = scmp.ne.s32.totalorder %s253, %s269
      %p271 = scmp.eq.s32.totalorder %s36, 0
      %p272 = por %p270, %p271
      %s273 = ssub.s32 %s30, %s37
      %p274 = scmp.eq.s32.totalorder %s273, 0
      %s276 = sadd.s32 %s275, 1
      %s277 = scalar_select %p274, %s275, %s276
      %p280 = pneg %p274
      %p281 = scmp.eq.s32.totalorder %s30, 1
      %p282 = por %p280, %p281
      %p283 = scmp.ne.s32.totalorder %s275, %s278
      %p284 = scmp.eq.s32.totalorder %s30, 0
      %p285 = por %p283, %p284
      %p286 = scmp.ne.s32.totalorder %s275, %s278
      %p287 = scmp.eq.s32.totalorder %s35, 1
      %p288 = por %p286, %p287
      %p289 = scmp.ne.s32.totalorder %s278, %s279
      %p290 = scmp.eq.s32.totalorder %s35, 0
      %p291 = por %p289, %p290
      %p292 = scmp.ne.s32.totalorder %s278, %s279
      %p293 = scmp.eq.s32.totalorder %s36, 1
      %p294 = por %p292, %p293
      %p296 = scmp.ne.s32.totalorder %s279, %s295
      %p297 = scmp.eq.s32.totalorder %s36, 0
      %p298 = por %p296, %p297
      %p299 = scmp.le.s32.totalorder 1, %s30
      %p300 = scmp.lt.s32.totalorder %s30, 3
      %p301 = pnand %p299, %p300
      %p302 = pneg %p301
      // Predicated region
      $region9: #{tpu_custom_call.1} parent=5 // pred_check
        _
      $region10: #{tpu_custom_call.1} parent=5 // pred_check_branch
        %304 = sbr.rel (%p301) target = $region12
      $region11: #{tpu_custom_call.1} parent=5 // pred_region
        %s305 = ssub.s32 %s30, 1
        // Predicated region
        $region13: #{tpu_custom_call.1} parent=11 // pred_check
          %p306 = pneg %p51
        $region14: #{tpu_custom_call.1} parent=11 // pred_check_branch
          %308 = sbr.rel (%p306) target = $region16
        $region15: #{tpu_custom_call.1} parent=11 // pred_region
          _
        $region16: #{tpu_custom_call.1} parent=11 // pred_fallthru
          _
        // Predicated region
        $region17: #{tpu_custom_call.1} parent=11 // pred_check
          %p309 = pneg %p72
        $region18: #{tpu_custom_call.1} parent=11 // pred_check_branch
          %311 = sbr.rel (%p309) target = $region20
        $region19: #{tpu_custom_call.1} parent=11 // pred_region
          _
        $region20: #{tpu_custom_call.1} parent=11 // pred_fallthru
          _
        // Predicated region
        $region21: #{tpu_custom_call.1} parent=11 // pred_check
          %p312 = pneg %p93
        $region22: #{tpu_custom_call.1} parent=11 // pred_check_branch
          %314 = sbr.rel (%p312) target = $region24
        $region23: #{tpu_custom_call.1} parent=11 // pred_region
          %s316 = ssub.s32 1184, 1184
          %317 = vsyncadd [#allocation3], %s316
          %s319 = sshll.u32 [#allocation2], 4
          %s320 = int_to_ptr.vmem [resolvable:$true] %s319
          %322 = dma.hbm_to_vmem [thread:$0]  %s2, 1184, %s320, [#allocation3]
        $region24: #{tpu_custom_call.1} parent=11 // pred_fallthru
          _
        // Predicated region
        $region25: #{tpu_custom_call.1} parent=11 // pred_check
          %p323 = pneg %p114
        $region26: #{tpu_custom_call.1} parent=11 // pred_check_branch
          %325 = sbr.rel (%p323) target = $region28
        $region27: #{tpu_custom_call.1} parent=11 // pred_region
          %s327 = ssub.s32 1184, 1184
          %328 = vsyncadd [#allocation6], %s327
          %s330 = sshll.u32 [#allocation5], 4
          %s331 = int_to_ptr.vmem [resolvable:$true] %s330
          %333 = dma.hbm_to_vmem [thread:$0]  %s3, 1184, %s331, [#allocation6]
        $region28: #{tpu_custom_call.1} parent=11 // pred_fallthru
          _
        // Predicated region
        $region29: #{tpu_custom_call.1} parent=11 // pred_check
          %p334 = pneg %p135
        $region30: #{tpu_custom_call.1} parent=11 // pred_check_branch
          %336 = sbr.rel (%p334) target = $region32
        $region31: #{tpu_custom_call.1} parent=11 // pred_region
          %s338 = ssub.s32 11136, 11136
          %339 = vsyncadd [#allocation6], %s338
          %s340 = sshll.u32 [#allocation7], 4
          %s341 = int_to_ptr.vmem [resolvable:$true] %s340
          %346 = dma.hbm_to_vmem [thread:$0]  %s4, 11136, %s341, [#allocation6], 128, 128, 8
        $region32: #{tpu_custom_call.1} parent=11 // pred_fallthru
          _
      $region12: #{tpu_custom_call.1} parent=5 // pred_fallthru
        _
      %p347 = scmp.lt.s32.totalorder %s30, 2
      // Predicated region
      $region33: #{tpu_custom_call.1} parent=5 // pred_check
        %p348 = pneg %p347
      $region34: #{tpu_custom_call.1} parent=5 // pred_check_branch
        %350 = sbr.rel (%p348) target = $region36
      $region35: #{tpu_custom_call.1} parent=5 // pred_region
        // Predicated region
        $region37: #{tpu_custom_call.1} parent=35 // pred_check
          %p351 = pneg %p155
        $region38: #{tpu_custom_call.1} parent=35 // pred_check_branch
          %353 = sbr.rel (%p351) target = $region40
        $region39: #{tpu_custom_call.1} parent=35 // pred_region
          %s354 = sand.u32 %s30, 1
          %s355 = scalar_lea.sflag [#allocation9], %s354
          %s356 = sand.u32 %s145, 1
          %s357 = smul.addr %s356, 2304
          %s358 = scalar_lea.vmem [#allocation8], %s357
          %s359 = smul.u32 288, %s30
          %s361 = ssub.s32 36864, 36864
          %362 = vsyncadd %s355, %s361
          %s363 = smul.addr %s359, 128
          %s364 = scalar_lea.hbm %s5, %s363
          %s365 = sshll.u32 %s358, 4
          %s366 = int_to_ptr.vmem [resolvable:$true] %s365
          %371 = dma.hbm_to_vmem [thread:$0]  %s364, 36864, %s366, %s355, 128, 128, 8
        $region40: #{tpu_custom_call.1} parent=35 // pred_fallthru
          _
        // Predicated region
        $region41: #{tpu_custom_call.1} parent=35 // pred_check
          %p372 = pneg %p181
        $region42: #{tpu_custom_call.1} parent=35 // pred_check_branch
          %374 = sbr.rel (%p372) target = $region44
        $region43: #{tpu_custom_call.1} parent=35 // pred_region
          %s375 = sand.u32 %s30, 1
          %s376 = scalar_lea.sflag [#allocation9], %s375
          %s377 = sand.u32 %s171, 1
          %s378 = smul.addr %s377, 2304
          %s379 = scalar_lea.vmem [#allocation10], %s378
          %s380 = smul.u32 288, %s30
          %s382 = ssub.s32 36864, 36864
          %383 = vsyncadd %s376, %s382
          %s384 = smul.addr %s380, 128
          %s385 = scalar_lea.hbm %s6, %s384
          %s386 = sshll.u32 %s379, 4
          %s387 = int_to_ptr.vmem [resolvable:$true] %s386
          %392 = dma.hbm_to_vmem [thread:$0]  %s385, 36864, %s387, %s376, 128, 128, 8
        $region44: #{tpu_custom_call.1} parent=35 // pred_fallthru
          _
        // Predicated region
        $region45: #{tpu_custom_call.1} parent=35 // pred_check
          %p393 = pneg %p207
        $region46: #{tpu_custom_call.1} parent=35 // pred_check_branch
          %395 = sbr.rel (%p393) target = $region48
        $region47: #{tpu_custom_call.1} parent=35 // pred_region
          %s396 = sand.u32 %s30, 1
          %s397 = scalar_lea.sflag [#allocation12], %s396
          %s398 = sand.u32 %s197, 1
          %s399 = smul.addr %s398, 2304
          %s400 = scalar_lea.vmem [#allocation11], %s399
          %s401 = smul.u32 288, %s30
          %s403 = ssub.s32 36864, 36864
          %404 = vsyncadd %s397, %s403
          %s405 = smul.addr %s401, 128
          %s406 = scalar_lea.hbm %s7, %s405
          %s407 = sshll.u32 %s400, 4
          %s408 = int_to_ptr.vmem [resolvable:$true] %s407
          %413 = dma.hbm_to_vmem [thread:$0]  %s406, 36864, %s408, %s397, 128, 128, 8
        $region48: #{tpu_custom_call.1} parent=35 // pred_fallthru
          _
        // Predicated region
        $region49: #{tpu_custom_call.1} parent=35 // pred_check
          %p414 = pneg %p233
        $region50: #{tpu_custom_call.1} parent=35 // pred_check_branch
          %416 = sbr.rel (%p414) target = $region52
        $region51: #{tpu_custom_call.1} parent=35 // pred_region
          %s417 = sand.u32 %s30, 1
          %s418 = scalar_lea.sflag [#allocation12], %s417
          %s419 = sand.u32 %s223, 1
          %s420 = smul.addr %s419, 2304
          %s421 = scalar_lea.vmem [#allocation13], %s420
          %s422 = smul.u32 288, %s30
          %s424 = ssub.s32 36864, 36864
          %425 = vsyncadd %s418, %s424
          %s426 = smul.addr %s422, 128
          %s427 = scalar_lea.hbm %s8, %s426
          %s428 = sshll.u32 %s421, 4
          %s429 = int_to_ptr.vmem [resolvable:$true] %s428
          %434 = dma.hbm_to_vmem [thread:$0]  %s427, 36864, %s429, %s418, 128, 128, 8
        $region52: #{tpu_custom_call.1} parent=35 // pred_fallthru
          _
        // Predicated region
        $region53: #{tpu_custom_call.1} parent=35 // pred_check
          %p435 = pneg %p259
        $region54: #{tpu_custom_call.1} parent=35 // pred_check_branch
          %437 = sbr.rel (%p435) target = $region56
        $region55: #{tpu_custom_call.1} parent=35 // pred_region
          %s438 = sand.u32 %s249, 1
          %s439 = scalar_lea.sflag [#allocation15], %s438
          %s440 = sand.u32 %s249, 1
          %s441 = smul.addr %s440, 2304
          %s442 = scalar_lea.vmem [#allocation14], %s441
          %s443 = smul.u32 288, %s30
          %s445 = ssub.s32 36864, 36864
          %446 = vsyncadd %s439, %s445
          %s447 = smul.addr %s443, 128
          %s448 = scalar_lea.hbm %s9, %s447
          %s449 = sshll.u32 %s442, 4
          %s450 = int_to_ptr.vmem [resolvable:$true] %s449
          %455 = dma.hbm_to_vmem [thread:$0]  %s448, 36864, %s450, %s439, 128, 128, 8
        $region56: #{tpu_custom_call.1} parent=35 // pred_fallthru
          _
      $region36: #{tpu_custom_call.1} parent=5 // pred_fallthru
        _
      %p456 = scmp.le.s32.totalorder 1, %s30
      %p457 = scmp.lt.s32.totalorder %s30, 3
      %p458 = pnand %p456, %p457
      %p459 = pneg %p458
      // Predicated region
      $region57: #{tpu_custom_call.1} parent=5 // pred_check
        _
      $region58: #{tpu_custom_call.1} parent=5 // pred_check_branch
        %461 = sbr.rel (%p458) target = $region60
      $region59: #{tpu_custom_call.1} parent=5 // pred_region
        %s462 = ssub.s32 %s30, 1
        // Predicated region
        $region61: #{tpu_custom_call.1} parent=59 // pred_check
          %p463 = pneg %p93
        $region62: #{tpu_custom_call.1} parent=59 // pred_check_branch
          %465 = sbr.rel (%p463) target = $region64
        $region63: #{tpu_custom_call.1} parent=59 // pred_region
          %466 = dma.done [#allocation3], 1184
        $region64: #{tpu_custom_call.1} parent=59 // pred_fallthru
          _
        // Predicated region
        $region65: #{tpu_custom_call.1} parent=59 // pred_check
          %p467 = pneg %p114
        $region66: #{tpu_custom_call.1} parent=59 // pred_check_branch
          %469 = sbr.rel (%p467) target = $region68
        $region67: #{tpu_custom_call.1} parent=59 // pred_region
          %470 = dma.done [#allocation6], 1184
        $region68: #{tpu_custom_call.1} parent=59 // pred_fallthru
          _
        // Predicated region
        $region69: #{tpu_custom_call.1} parent=59 // pred_check
          %p471 = pneg %p135
        $region70: #{tpu_custom_call.1} parent=59 // pred_check_branch
          %473 = sbr.rel (%p471) target = $region72
        $region71: #{tpu_custom_call.1} parent=59 // pred_region
          %474 = dma.done [#allocation6], 11136
        $region72: #{tpu_custom_call.1} parent=59 // pred_fallthru
          _
        %s475 = sand.u32 %s35, 1
        %s476 = scalar_lea.sflag [#allocation9], %s475
        %s477 = sand.u32 %s148, 1
        %s478 = smul.addr %s477, 2304
        %s479 = scalar_lea.vmem [#allocation8], %s478
        // Predicated region
        $region73: #{tpu_custom_call.1} parent=59 // pred_check
          %p480 = pneg %p161
        $region74: #{tpu_custom_call.1} parent=59 // pred_check_branch
          %482 = sbr.rel (%p480) target = $region76
        $region75: #{tpu_custom_call.1} parent=59 // pred_region
          %483 = dma.done %s476, 36864
        $region76: #{tpu_custom_call.1} parent=59 // pred_fallthru
          _
        %s484 = sand.u32 %s35, 1
        %s485 = scalar_lea.sflag [#allocation9], %s484
        %s486 = sand.u32 %s174, 1
        %s487 = smul.addr %s486, 2304
        %s488 = scalar_lea.vmem [#allocation10], %s487
        // Predicated region
        $region77: #{tpu_custom_call.1} parent=59 // pred_check
          %p489 = pneg %p187
        $region78: #{tpu_custom_call.1} parent=59 // pred_check_branch
          %491 = sbr.rel (%p489) target = $region80
        $region79: #{tpu_custom_call.1} parent=59 // pred_region
          %492 = dma.done %s485, 36864
        $region80: #{tpu_custom_call.1} parent=59 // pred_fallthru
          _
        %s493 = sand.u32 %s35, 1
        %s494 = scalar_lea.sflag [#allocation12], %s493
        %s495 = sand.u32 %s200, 1
        %s496 = smul.addr %s495, 2304
        %s497 = scalar_lea.vmem [#allocation11], %s496
        // Predicated region
        $region81: #{tpu_custom_call.1} parent=59 // pred_check
          %p498 = pneg %p213
        $region82: #{tpu_custom_call.1} parent=59 // pred_check_branch
          %500 = sbr.rel (%p498) target = $region84
        $region83: #{tpu_custom_call.1} parent=59 // pred_region
          %501 = dma.done %s494, 36864
        $region84: #{tpu_custom_call.1} parent=59 // pred_fallthru
          _
        %s502 = sand.u32 %s35, 1
        %s503 = scalar_lea.sflag [#allocation12], %s502
        %s504 = sand.u32 %s226, 1
        %s505 = smul.addr %s504, 2304
        %s506 = scalar_lea.vmem [#allocation13], %s505
        // Predicated region
        $region85: #{tpu_custom_call.1} parent=59 // pred_check
          %p507 = pneg %p239
        $region86: #{tpu_custom_call.1} parent=59 // pred_check_branch
          %509 = sbr.rel (%p507) target = $region88
        $region87: #{tpu_custom_call.1} parent=59 // pred_region
          %510 = dma.done %s503, 36864
        $region88: #{tpu_custom_call.1} parent=59 // pred_fallthru
          _
        %s511 = sand.u32 %s252, 1
        %s512 = scalar_lea.sflag [#allocation15], %s511
        %s513 = sand.u32 %s252, 1
        %s514 = smul.addr %s513, 2304
        %s515 = scalar_lea.vmem [#allocation14], %s514
        // Predicated region
        $region89: #{tpu_custom_call.1} parent=59 // pred_check
          %p516 = pneg %p265
        $region90: #{tpu_custom_call.1} parent=59 // pred_check_branch
          %518 = sbr.rel (%p516) target = $region92
        $region91: #{tpu_custom_call.1} parent=59 // pred_region
          %519 = dma.done %s512, 36864
        $region92: #{tpu_custom_call.1} parent=59 // pred_fallthru
          _
        %p520 = pneg %p51
        %p521 = pneg %p48
        %p522 = pneg %p72
        %p523 = pneg %p69
        %p524 = pneg %p93
        %p525 = pneg %p90
        %p526 = pneg %p114
        %p527 = pneg %p111
        %p528 = pneg %p135
        %p529 = pneg %p132
        %s530 = sand.u32 %s35, 1
        %s531 = scalar_lea.sflag [#allocation9], %s530
        %s532 = sand.u32 %s148, 1
        %s533 = smul.addr %s532, 2304
        %s534 = scalar_lea.vmem [#allocation8], %s533
        %p535 = pneg %p161
        %p536 = pneg %p158
        %s537 = sand.u32 %s35, 1
        %s538 = scalar_lea.sflag [#allocation9], %s537
        %s539 = sand.u32 %s174, 1
        %s540 = smul.addr %s539, 2304
        %s541 = scalar_lea.vmem [#allocation10], %s540
        %p542 = pneg %p187
        %p543 = pneg %p184
        %s544 = sand.u32 %s35, 1
        %s545 = scalar_lea.sflag [#allocation12], %s544
        %s546 = sand.u32 %s200, 1
        %s547 = smul.addr %s546, 2304
        %s548 = scalar_lea.vmem [#allocation11], %s547
        %p549 = pneg %p213
        %p550 = pneg %p210
        %s551 = sand.u32 %s35, 1
        %s552 = scalar_lea.sflag [#allocation12], %s551
        %s553 = sand.u32 %s226, 1
        %s554 = smul.addr %s553, 2304
        %s555 = scalar_lea.vmem [#allocation13], %s554
        %p556 = pneg %p239
        %p557 = pneg %p236
        %s558 = sand.u32 %s252, 1
        %s559 = scalar_lea.sflag [#allocation15], %s558
        %s560 = sand.u32 %s252, 1
        %s561 = smul.addr %s560, 2304
        %s562 = scalar_lea.vmem [#allocation14], %s561
        %p563 = pneg %p265
        %p564 = pneg %p262
        %p565 = pneg %p291
        %p566 = pneg %p288
        %s567 = sand.u32 %s278, 1
        %s568 = scalar_lea.sflag [#allocation4], %s567
        %s569 = sand.u32 %s278, 1
        %s570 = smul.addr %s569, 8
        %s571 = scalar_lea.vmem [#allocation16], %s570
        %s572 = smul.u32 288, %s35
        %s573 = smul.u32 288, %s35
        %s574 = smul.u32 288, %s35
        %s575 = smul.u32 288, %s35
        %s576 = smul.u32 288, %s35
        %v577 = vld [vmem:[%s479] sm:$0xff]
        %v578 = vld [vmem:[%s479 + $0x8] sm:$0xff]
        %v579 = vld [vmem:[%s479 + $0x10] sm:$0xff]
        %v580 = vld [vmem:[%s479 + $0x18] sm:$0xff]
        %v581 = vld [vmem:[%s479 + $0x20] sm:$0xff]
        %v582 = vld [vmem:[%s479 + $0x28] sm:$0xff]
        %v583 = vld [vmem:[%s479 + $0x30] sm:$0xff]
        %v584 = vld [vmem:[%s479 + $0x38] sm:$0xff]
        %v585 = vld [vmem:[%s479 + $0x40] sm:$0xff]
        %v586 = vld [vmem:[%s479 + $0x48] sm:$0xff]
        %v587 = vld [vmem:[%s479 + $0x50] sm:$0xff]
        %v588 = vld [vmem:[%s479 + $0x58] sm:$0xff]
        %v589 = vld [vmem:[%s479 + $0x60] sm:$0xff]
        %v590 = vld [vmem:[%s479 + $0x68] sm:$0xff]
        %v591 = vld [vmem:[%s479 + $0x70] sm:$0xff]
        %v592 = vld [vmem:[%s479 + $0x78] sm:$0xff]
        %v593 = vld [vmem:[%s479 + $0x80] sm:$0xff]
        %v594 = vld [vmem:[%s479 + $0x88] sm:$0xff]
        %v595 = vld [vmem:[%s479 + $0x90] sm:$0xff]
        %v596 = vld [vmem:[%s479 + $0x98] sm:$0xff]
        %v597 = vld [vmem:[%s479 + $0xa0] sm:$0xff]
        %v598 = vld [vmem:[%s479 + $0xa8] sm:$0xff]
        %v599 = vld [vmem:[%s479 + $0xb0] sm:$0xff]
        %v600 = vld [vmem:[%s479 + $0xb8] sm:$0xff]
        %v601 = vld [vmem:[%s479 + $0xc0] sm:$0xff]
        %v602 = vld [vmem:[%s479 + $0xc8] sm:$0xff]
        %v603 = vld [vmem:[%s479 + $0xd0] sm:$0xff]
        %v604 = vld [vmem:[%s479 + $0xd8] sm:$0xff]
        %v605 = vld [vmem:[%s479 + $0xe0] sm:$0xff]
        %v606 = vld [vmem:[%s479 + $0xe8] sm:$0xff]
        %v607 = vld [vmem:[%s479 + $0xf0] sm:$0xff]
        %v608 = vld [vmem:[%s479 + $0xf8] sm:$0xff]
        %v609 = vld [vmem:[%s479 + $0x100] sm:$0xff]
        %v610 = vld [vmem:[%s479 + $0x108] sm:$0xff]
        %v611 = vld [vmem:[%s479 + $0x110] sm:$0xff]
        %v612 = vld [vmem:[%s479 + $0x118] sm:$0xff]
        %v613 = vld [vmem:[%s479 + $0x120] sm:$0xff]
        %v614 = vld [vmem:[%s479 + $0x128] sm:$0xff]
        %v615 = vld [vmem:[%s479 + $0x130] sm:$0xff]
        %v616 = vld [vmem:[%s479 + $0x138] sm:$0xff]
        %v617 = vld [vmem:[%s479 + $0x140] sm:$0xff]
        %v618 = vld [vmem:[%s479 + $0x148] sm:$0xff]
        %v619 = vld [vmem:[%s479 + $0x150] sm:$0xff]
        %v620 = vld [vmem:[%s479 + $0x158] sm:$0xff]
        %v621 = vld [vmem:[%s479 + $0x160] sm:$0xff]
        %v622 = vld [vmem:[%s479 + $0x168] sm:$0xff]
        %v623 = vld [vmem:[%s479 + $0x170] sm:$0xff]
        %v624 = vld [vmem:[%s479 + $0x178] sm:$0xff]
        %v625 = vld [vmem:[%s479 + $0x180] sm:$0xff]
        %v626 = vld [vmem:[%s479 + $0x188] sm:$0xff]
        %v627 = vld [vmem:[%s479 + $0x190] sm:$0xff]
        %v628 = vld [vmem:[%s479 + $0x198] sm:$0xff]
        %v629 = vld [vmem:[%s479 + $0x1a0] sm:$0xff]
        %v630 = vld [vmem:[%s479 + $0x1a8] sm:$0xff]
        %v631 = vld [vmem:[%s479 + $0x1b0] sm:$0xff]
        %v632 = vld [vmem:[%s479 + $0x1b8] sm:$0xff]
        %v633 = vld [vmem:[%s479 + $0x1c0] sm:$0xff]
        %v634 = vld [vmem:[%s479 + $0x1c8] sm:$0xff]
        %v635 = vld [vmem:[%s479 + $0x1d0] sm:$0xff]
        %v636 = vld [vmem:[%s479 + $0x1d8] sm:$0xff]
        %v637 = vld [vmem:[%s479 + $0x1e0] sm:$0xff]
        %v638 = vld [vmem:[%s479 + $0x1e8] sm:$0xff]
        %v639 = vld [vmem:[%s479 + $0x1f0] sm:$0xff]
        %v640 = vld [vmem:[%s479 + $0x1f8] sm:$0xff]
        %v641 = vld [vmem:[%s479 + $0x200] sm:$0xff]
        %v642 = vld [vmem:[%s479 + $0x208] sm:$0xff]
        %v643 = vld [vmem:[%s479 + $0x210] sm:$0xff]
        %v644 = vld [vmem:[%s479 + $0x218] sm:$0xff]
        %v645 = vld [vmem:[%s479 + $0x220] sm:$0xff]
        %v646 = vld [vmem:[%s479 + $0x228] sm:$0xff]
        %v647 = vld [vmem:[%s479 + $0x230] sm:$0xff]
        %v648 = vld [vmem:[%s479 + $0x238] sm:$0xff]
        %v649 = vld [vmem:[%s479 + $0x240] sm:$0xff]
        %v650 = vld [vmem:[%s479 + $0x248] sm:$0xff]
        %v651 = vld [vmem:[%s479 + $0x250] sm:$0xff]
        %v652 = vld [vmem:[%s479 + $0x258] sm:$0xff]
        %v653 = vld [vmem:[%s479 + $0x260] sm:$0xff]
        %v654 = vld [vmem:[%s479 + $0x268] sm:$0xff]
        %v655 = vld [vmem:[%s479 + $0x270] sm:$0xff]
        %v656 = vld [vmem:[%s479 + $0x278] sm:$0xff]
        %v657 = vld [vmem:[%s479 + $0x280] sm:$0xff]
        %v658 = vld [vmem:[%s479 + $0x288] sm:$0xff]
        %v659 = vld [vmem:[%s479 + $0x290] sm:$0xff]
        %v660 = vld [vmem:[%s479 + $0x298] sm:$0xff]
        %v661 = vld [vmem:[%s479 + $0x2a0] sm:$0xff]
        %v662 = vld [vmem:[%s479 + $0x2a8] sm:$0xff]
        %v663 = vld [vmem:[%s479 + $0x2b0] sm:$0xff]
        %v664 = vld [vmem:[%s479 + $0x2b8] sm:$0xff]
        %v665 = vld [vmem:[%s479 + $0x2c0] sm:$0xff]
        %v666 = vld [vmem:[%s479 + $0x2c8] sm:$0xff]
        %v667 = vld [vmem:[%s479 + $0x2d0] sm:$0xff]
        %v668 = vld [vmem:[%s479 + $0x2d8] sm:$0xff]
        %v669 = vld [vmem:[%s479 + $0x2e0] sm:$0xff]
        %v670 = vld [vmem:[%s479 + $0x2e8] sm:$0xff]
        %v671 = vld [vmem:[%s479 + $0x2f0] sm:$0xff]
        %v672 = vld [vmem:[%s479 + $0x2f8] sm:$0xff]
        %v673 = vld [vmem:[%s479 + $0x300] sm:$0xff]
        %v674 = vld [vmem:[%s479 + $0x308] sm:$0xff]
        %v675 = vld [vmem:[%s479 + $0x310] sm:$0xff]
        %v676 = vld [vmem:[%s479 + $0x318] sm:$0xff]
        %v677 = vld [vmem:[%s479 + $0x320] sm:$0xff]
        %v678 = vld [vmem:[%s479 + $0x328] sm:$0xff]
        %v679 = vld [vmem:[%s479 + $0x330] sm:$0xff]
        %v680 = vld [vmem:[%s479 + $0x338] sm:$0xff]
        %v681 = vld [vmem:[%s479 + $0x340] sm:$0xff]
        %v682 = vld [vmem:[%s479 + $0x348] sm:$0xff]
        %v683 = vld [vmem:[%s479 + $0x350] sm:$0xff]
        %v684 = vld [vmem:[%s479 + $0x358] sm:$0xff]
        %v685 = vld [vmem:[%s479 + $0x360] sm:$0xff]
        %v686 = vld [vmem:[%s479 + $0x368] sm:$0xff]
        %v687 = vld [vmem:[%s479 + $0x370] sm:$0xff]
        %v688 = vld [vmem:[%s479 + $0x378] sm:$0xff]
        %v689 = vld [vmem:[%s479 + $0x380] sm:$0xff]
        %v690 = vld [vmem:[%s479 + $0x388] sm:$0xff]
        %v691 = vld [vmem:[%s479 + $0x390] sm:$0xff]
        %v692 = vld [vmem:[%s479 + $0x398] sm:$0xff]
        %v693 = vld [vmem:[%s479 + $0x3a0] sm:$0xff]
        %v694 = vld [vmem:[%s479 + $0x3a8] sm:$0xff]
        %v695 = vld [vmem:[%s479 + $0x3b0] sm:$0xff]
        %v696 = vld [vmem:[%s479 + $0x3b8] sm:$0xff]
        %v697 = vld [vmem:[%s479 + $0x3c0] sm:$0xff]
        %v698 = vld [vmem:[%s479 + $0x3c8] sm:$0xff]
        %v699 = vld [vmem:[%s479 + $0x3d0] sm:$0xff]
        %v700 = vld [vmem:[%s479 + $0x3d8] sm:$0xff]
        %v701 = vld [vmem:[%s479 + $0x3e0] sm:$0xff]
        %v702 = vld [vmem:[%s479 + $0x3e8] sm:$0xff]
        %v703 = vld [vmem:[%s479 + $0x3f0] sm:$0xff]
        %v704 = vld [vmem:[%s479 + $0x3f8] sm:$0xff]
        %v705 = vld [vmem:[%s479 + $0x400] sm:$0xff]
        %v706 = vld [vmem:[%s479 + $0x408] sm:$0xff]
        %v707 = vld [vmem:[%s479 + $0x410] sm:$0xff]
        %v708 = vld [vmem:[%s479 + $0x418] sm:$0xff]
        %v709 = vld [vmem:[%s479 + $0x420] sm:$0xff]
        %v710 = vld [vmem:[%s479 + $0x428] sm:$0xff]
        %v711 = vld [vmem:[%s479 + $0x430] sm:$0xff]
        %v712 = vld [vmem:[%s479 + $0x438] sm:$0xff]
        %v713 = vld [vmem:[%s479 + $0x440] sm:$0xff]
        %v714 = vld [vmem:[%s479 + $0x448] sm:$0xff]
        %v715 = vld [vmem:[%s479 + $0x450] sm:$0xff]
        %v716 = vld [vmem:[%s479 + $0x458] sm:$0xff]
        %v717 = vld [vmem:[%s479 + $0x460] sm:$0xff]
        %v718 = vld [vmem:[%s479 + $0x468] sm:$0xff]
        %v719 = vld [vmem:[%s479 + $0x470] sm:$0xff]
        %v720 = vld [vmem:[%s479 + $0x478] sm:$0xff]
        %v721 = vld [vmem:[%s479 + $0x480] sm:$0xff]
        %v722 = vld [vmem:[%s479 + $0x488] sm:$0xff]
        %v723 = vld [vmem:[%s479 + $0x490] sm:$0xff]
        %v724 = vld [vmem:[%s479 + $0x498] sm:$0xff]
        %v725 = vld [vmem:[%s479 + $0x4a0] sm:$0xff]
        %v726 = vld [vmem:[%s479 + $0x4a8] sm:$0xff]
        %v727 = vld [vmem:[%s479 + $0x4b0] sm:$0xff]
        %v728 = vld [vmem:[%s479 + $0x4b8] sm:$0xff]
        %v729 = vld [vmem:[%s479 + $0x4c0] sm:$0xff]
        %v730 = vld [vmem:[%s479 + $0x4c8] sm:$0xff]
        %v731 = vld [vmem:[%s479 + $0x4d0] sm:$0xff]
        %v732 = vld [vmem:[%s479 + $0x4d8] sm:$0xff]
        %v733 = vld [vmem:[%s479 + $0x4e0] sm:$0xff]
        %v734 = vld [vmem:[%s479 + $0x4e8] sm:$0xff]
        %v735 = vld [vmem:[%s479 + $0x4f0] sm:$0xff]
        %v736 = vld [vmem:[%s479 + $0x4f8] sm:$0xff]
        %v737 = vld [vmem:[%s479 + $0x500] sm:$0xff]
        %v738 = vld [vmem:[%s479 + $0x508] sm:$0xff]
        %v739 = vld [vmem:[%s479 + $0x510] sm:$0xff]
        %v740 = vld [vmem:[%s479 + $0x518] sm:$0xff]
        %v741 = vld [vmem:[%s479 + $0x520] sm:$0xff]
        %v742 = vld [vmem:[%s479 + $0x528] sm:$0xff]
        %v743 = vld [vmem:[%s479 + $0x530] sm:$0xff]
        %v744 = vld [vmem:[%s479 + $0x538] sm:$0xff]
        %v745 = vld [vmem:[%s479 + $0x540] sm:$0xff]
        %v746 = vld [vmem:[%s479 + $0x548] sm:$0xff]
        %v747 = vld [vmem:[%s479 + $0x550] sm:$0xff]
        %v748 = vld [vmem:[%s479 + $0x558] sm:$0xff]
        %v749 = vld [vmem:[%s479 + $0x560] sm:$0xff]
        %v750 = vld [vmem:[%s479 + $0x568] sm:$0xff]
        %v751 = vld [vmem:[%s479 + $0x570] sm:$0xff]
        %v752 = vld [vmem:[%s479 + $0x578] sm:$0xff]
        %v753 = vld [vmem:[%s479 + $0x580] sm:$0xff]
        %v754 = vld [vmem:[%s479 + $0x588] sm:$0xff]
        %v755 = vld [vmem:[%s479 + $0x590] sm:$0xff]
        %v756 = vld [vmem:[%s479 + $0x598] sm:$0xff]
        %v757 = vld [vmem:[%s479 + $0x5a0] sm:$0xff]
        %v758 = vld [vmem:[%s479 + $0x5a8] sm:$0xff]
        %v759 = vld [vmem:[%s479 + $0x5b0] sm:$0xff]
        %v760 = vld [vmem:[%s479 + $0x5b8] sm:$0xff]
        %v761 = vld [vmem:[%s479 + $0x5c0] sm:$0xff]
        %v762 = vld [vmem:[%s479 + $0x5c8] sm:$0xff]
        %v763 = vld [vmem:[%s479 + $0x5d0] sm:$0xff]
        %v764 = vld [vmem:[%s479 + $0x5d8] sm:$0xff]
        %v765 = vld [vmem:[%s479 + $0x5e0] sm:$0xff]
        %v766 = vld [vmem:[%s479 + $0x5e8] sm:$0xff]
        %v767 = vld [vmem:[%s479 + $0x5f0] sm:$0xff]
        %v768 = vld [vmem:[%s479 + $0x5f8] sm:$0xff]
        %v769 = vld [vmem:[%s479 + $0x600] sm:$0xff]
        %v770 = vld [vmem:[%s479 + $0x608] sm:$0xff]
        %v771 = vld [vmem:[%s479 + $0x610] sm:$0xff]
        %v772 = vld [vmem:[%s479 + $0x618] sm:$0xff]
        %v773 = vld [vmem:[%s479 + $0x620] sm:$0xff]
        %v774 = vld [vmem:[%s479 + $0x628] sm:$0xff]
        %v775 = vld [vmem:[%s479 + $0x630] sm:$0xff]
        %v776 = vld [vmem:[%s479 + $0x638] sm:$0xff]
        %v777 = vld [vmem:[%s479 + $0x640] sm:$0xff]
        %v778 = vld [vmem:[%s479 + $0x648] sm:$0xff]
        %v779 = vld [vmem:[%s479 + $0x650] sm:$0xff]
        %v780 = vld [vmem:[%s479 + $0x658] sm:$0xff]
        %v781 = vld [vmem:[%s479 + $0x660] sm:$0xff]
        %v782 = vld [vmem:[%s479 + $0x668] sm:$0xff]
        %v783 = vld [vmem:[%s479 + $0x670] sm:$0xff]
        %v784 = vld [vmem:[%s479 + $0x678] sm:$0xff]
        %v785 = vld [vmem:[%s479 + $0x680] sm:$0xff]
        %v786 = vld [vmem:[%s479 + $0x688] sm:$0xff]
        %v787 = vld [vmem:[%s479 + $0x690] sm:$0xff]
        %v788 = vld [vmem:[%s479 + $0x698] sm:$0xff]
        %v789 = vld [vmem:[%s479 + $0x6a0] sm:$0xff]
        %v790 = vld [vmem:[%s479 + $0x6a8] sm:$0xff]
        %v791 = vld [vmem:[%s479 + $0x6b0] sm:$0xff]
        %v792 = vld [vmem:[%s479 + $0x6b8] sm:$0xff]
        %v793 = vld [vmem:[%s479 + $0x6c0] sm:$0xff]
        %v794 = vld [vmem:[%s479 + $0x6c8] sm:$0xff]
        %v795 = vld [vmem:[%s479 + $0x6d0] sm:$0xff]
        %v796 = vld [vmem:[%s479 + $0x6d8] sm:$0xff]
        %v797 = vld [vmem:[%s479 + $0x6e0] sm:$0xff]
        %v798 = vld [vmem:[%s479 + $0x6e8] sm:$0xff]
        %v799 = vld [vmem:[%s479 + $0x6f0] sm:$0xff]
        %v800 = vld [vmem:[%s479 + $0x6f8] sm:$0xff]
        %v801 = vld [vmem:[%s479 + $0x700] sm:$0xff]
        %v802 = vld [vmem:[%s479 + $0x708] sm:$0xff]
        %v803 = vld [vmem:[%s479 + $0x710] sm:$0xff]
        %v804 = vld [vmem:[%s479 + $0x718] sm:$0xff]
        %v805 = vld [vmem:[%s479 + $0x720] sm:$0xff]
        %v806 = vld [vmem:[%s479 + $0x728] sm:$0xff]
        %v807 = vld [vmem:[%s479 + $0x730] sm:$0xff]
        %v808 = vld [vmem:[%s479 + $0x738] sm:$0xff]
        %v809 = vld [vmem:[%s479 + $0x740] sm:$0xff]
        %v810 = vld [vmem:[%s479 + $0x748] sm:$0xff]
        %v811 = vld [vmem:[%s479 + $0x750] sm:$0xff]
        %v812 = vld [vmem:[%s479 + $0x758] sm:$0xff]
        %v813 = vld [vmem:[%s479 + $0x760] sm:$0xff]
        %v814 = vld [vmem:[%s479 + $0x768] sm:$0xff]
        %v815 = vld [vmem:[%s479 + $0x770] sm:$0xff]
        %v816 = vld [vmem:[%s479 + $0x778] sm:$0xff]
        %v817 = vld [vmem:[%s479 + $0x780] sm:$0xff]
        %v818 = vld [vmem:[%s479 + $0x788] sm:$0xff]
        %v819 = vld [vmem:[%s479 + $0x790] sm:$0xff]
        %v820 = vld [vmem:[%s479 + $0x798] sm:$0xff]
        %v821 = vld [vmem:[%s479 + $0x7a0] sm:$0xff]
        %v822 = vld [vmem:[%s479 + $0x7a8] sm:$0xff]
        %v823 = vld [vmem:[%s479 + $0x7b0] sm:$0xff]
        %v824 = vld [vmem:[%s479 + $0x7b8] sm:$0xff]
        %v825 = vld [vmem:[%s479 + $0x7c0] sm:$0xff]
        %v826 = vld [vmem:[%s479 + $0x7c8] sm:$0xff]
        %v827 = vld [vmem:[%s479 + $0x7d0] sm:$0xff]
        %v828 = vld [vmem:[%s479 + $0x7d8] sm:$0xff]
        %v829 = vld [vmem:[%s479 + $0x7e0] sm:$0xff]
        %v830 = vld [vmem:[%s479 + $0x7e8] sm:$0xff]
        %v831 = vld [vmem:[%s479 + $0x7f0] sm:$0xff]
        %v832 = vld [vmem:[%s479 + $0x7f8] sm:$0xff]
        %v833 = vld [vmem:[%s479 + $0x800] sm:$0xff]
        %v834 = vld [vmem:[%s479 + $0x808] sm:$0xff]
        %v835 = vld [vmem:[%s479 + $0x810] sm:$0xff]
        %v836 = vld [vmem:[%s479 + $0x818] sm:$0xff]
        %v837 = vld [vmem:[%s479 + $0x820] sm:$0xff]
        %v838 = vld [vmem:[%s479 + $0x828] sm:$0xff]
        %v839 = vld [vmem:[%s479 + $0x830] sm:$0xff]
        %v840 = vld [vmem:[%s479 + $0x838] sm:$0xff]
        %v841 = vld [vmem:[%s479 + $0x840] sm:$0xff]
        %v842 = vld [vmem:[%s479 + $0x848] sm:$0xff]
        %v843 = vld [vmem:[%s479 + $0x850] sm:$0xff]
        %v844 = vld [vmem:[%s479 + $0x858] sm:$0xff]
        %v845 = vld [vmem:[%s479 + $0x860] sm:$0xff]
        %v846 = vld [vmem:[%s479 + $0x868] sm:$0xff]
        %v847 = vld [vmem:[%s479 + $0x870] sm:$0xff]
        %v848 = vld [vmem:[%s479 + $0x878] sm:$0xff]
        %v849 = vld [vmem:[%s479 + $0x880] sm:$0xff]
        %v850 = vld [vmem:[%s479 + $0x888] sm:$0xff]
        %v851 = vld [vmem:[%s479 + $0x890] sm:$0xff]
        %v852 = vld [vmem:[%s479 + $0x898] sm:$0xff]
        %v853 = vld [vmem:[%s479 + $0x8a0] sm:$0xff]
        %v854 = vld [vmem:[%s479 + $0x8a8] sm:$0xff]
        %v855 = vld [vmem:[%s479 + $0x8b0] sm:$0xff]
        %v856 = vld [vmem:[%s479 + $0x8b8] sm:$0xff]
        %v857 = vld [vmem:[%s479 + $0x8c0] sm:$0xff]
        %v858 = vld [vmem:[%s479 + $0x8c8] sm:$0xff]
        %v859 = vld [vmem:[%s479 + $0x8d0] sm:$0xff]
        %v860 = vld [vmem:[%s479 + $0x8d8] sm:$0xff]
        %v861 = vld [vmem:[%s479 + $0x8e0] sm:$0xff]
        %v862 = vld [vmem:[%s479 + $0x8e8] sm:$0xff]
        %v863 = vld [vmem:[%s479 + $0x8f0] sm:$0xff]
        %v864 = vld [vmem:[%s479 + $0x8f8] sm:$0xff]
        %v865 = vmul.f32 %v577, %v577
        %v866 = vmul.f32 %v578, %v578
        %v867 = vmul.f32 %v579, %v579
        %v868 = vmul.f32 %v580, %v580
        %v869 = vmul.f32 %v581, %v581
        %v870 = vmul.f32 %v582, %v582
        %v871 = vmul.f32 %v583, %v583
        %v872 = vmul.f32 %v584, %v584
        %v873 = vmul.f32 %v585, %v585
        %v874 = vmul.f32 %v586, %v586
        %v875 = vmul.f32 %v587, %v587
        %v876 = vmul.f32 %v588, %v588
        %v877 = vmul.f32 %v589, %v589
        %v878 = vmul.f32 %v590, %v590
        %v879 = vmul.f32 %v591, %v591
        %v880 = vmul.f32 %v592, %v592
        %v881 = vmul.f32 %v593, %v593
        %v882 = vmul.f32 %v594, %v594
        %v883 = vmul.f32 %v595, %v595
        %v884 = vmul.f32 %v596, %v596
        %v885 = vmul.f32 %v597, %v597
        %v886 = vmul.f32 %v598, %v598
        %v887 = vmul.f32 %v599, %v599
        %v888 = vmul.f32 %v600, %v600
        %v889 = vmul.f32 %v601, %v601
        %v890 = vmul.f32 %v602, %v602
        %v891 = vmul.f32 %v603, %v603
        %v892 = vmul.f32 %v604, %v604
        %v893 = vmul.f32 %v605, %v605
        %v894 = vmul.f32 %v606, %v606
        %v895 = vmul.f32 %v607, %v607
        %v896 = vmul.f32 %v608, %v608
        %v897 = vmul.f32 %v609, %v609
        %v898 = vmul.f32 %v610, %v610
        %v899 = vmul.f32 %v611, %v611
        %v900 = vmul.f32 %v612, %v612
        %v901 = vmul.f32 %v613, %v613
        %v902 = vmul.f32 %v614, %v614
        %v903 = vmul.f32 %v615, %v615
        %v904 = vmul.f32 %v616, %v616
        %v905 = vmul.f32 %v617, %v617
        %v906 = vmul.f32 %v618, %v618
        %v907 = vmul.f32 %v619, %v619
        %v908 = vmul.f32 %v620, %v620
        %v909 = vmul.f32 %v621, %v621
        %v910 = vmul.f32 %v622, %v622
        %v911 = vmul.f32 %v623, %v623
        %v912 = vmul.f32 %v624, %v624
        %v913 = vmul.f32 %v625, %v625
        %v914 = vmul.f32 %v626, %v626
        %v915 = vmul.f32 %v627, %v627
        %v916 = vmul.f32 %v628, %v628
        %v917 = vmul.f32 %v629, %v629
        %v918 = vmul.f32 %v630, %v630
        %v919 = vmul.f32 %v631, %v631
        %v920 = vmul.f32 %v632, %v632
        %v921 = vmul.f32 %v633, %v633
        %v922 = vmul.f32 %v634, %v634
        %v923 = vmul.f32 %v635, %v635
        %v924 = vmul.f32 %v636, %v636
        %v925 = vmul.f32 %v637, %v637
        %v926 = vmul.f32 %v638, %v638
        %v927 = vmul.f32 %v639, %v639
        %v928 = vmul.f32 %v640, %v640
        %v929 = vmul.f32 %v641, %v641
        %v930 = vmul.f32 %v642, %v642
        %v931 = vmul.f32 %v643, %v643
        %v932 = vmul.f32 %v644, %v644
        %v933 = vmul.f32 %v645, %v645
        %v934 = vmul.f32 %v646, %v646
        %v935 = vmul.f32 %v647, %v647
        %v936 = vmul.f32 %v648, %v648
        %v937 = vmul.f32 %v649, %v649
        %v938 = vmul.f32 %v650, %v650
        %v939 = vmul.f32 %v651, %v651
        %v940 = vmul.f32 %v652, %v652
        %v941 = vmul.f32 %v653, %v653
        %v942 = vmul.f32 %v654, %v654
        %v943 = vmul.f32 %v655, %v655
        %v944 = vmul.f32 %v656, %v656
        %v945 = vmul.f32 %v657, %v657
        %v946 = vmul.f32 %v658, %v658
        %v947 = vmul.f32 %v659, %v659
        %v948 = vmul.f32 %v660, %v660
        %v949 = vmul.f32 %v661, %v661
        %v950 = vmul.f32 %v662, %v662
        %v951 = vmul.f32 %v663, %v663
        %v952 = vmul.f32 %v664, %v664
        %v953 = vmul.f32 %v665, %v665
        %v954 = vmul.f32 %v666, %v666
        %v955 = vmul.f32 %v667, %v667
        %v956 = vmul.f32 %v668, %v668
        %v957 = vmul.f32 %v669, %v669
        %v958 = vmul.f32 %v670, %v670
        %v959 = vmul.f32 %v671, %v671
        %v960 = vmul.f32 %v672, %v672
        %v961 = vmul.f32 %v673, %v673
        %v962 = vmul.f32 %v674, %v674
        %v963 = vmul.f32 %v675, %v675
        %v964 = vmul.f32 %v676, %v676
        %v965 = vmul.f32 %v677, %v677
        %v966 = vmul.f32 %v678, %v678
        %v967 = vmul.f32 %v679, %v679
        %v968 = vmul.f32 %v680, %v680
        %v969 = vmul.f32 %v681, %v681
        %v970 = vmul.f32 %v682, %v682
        %v971 = vmul.f32 %v683, %v683
        %v972 = vmul.f32 %v684, %v684
        %v973 = vmul.f32 %v685, %v685
        %v974 = vmul.f32 %v686, %v686
        %v975 = vmul.f32 %v687, %v687
        %v976 = vmul.f32 %v688, %v688
        %v977 = vmul.f32 %v689, %v689
        %v978 = vmul.f32 %v690, %v690
        %v979 = vmul.f32 %v691, %v691
        %v980 = vmul.f32 %v692, %v692
        %v981 = vmul.f32 %v693, %v693
        %v982 = vmul.f32 %v694, %v694
        %v983 = vmul.f32 %v695, %v695
        %v984 = vmul.f32 %v696, %v696
        %v985 = vmul.f32 %v697, %v697
        %v986 = vmul.f32 %v698, %v698
        %v987 = vmul.f32 %v699, %v699
        %v988 = vmul.f32 %v700, %v700
        %v989 = vmul.f32 %v701, %v701
        %v990 = vmul.f32 %v702, %v702
        %v991 = vmul.f32 %v703, %v703
        %v992 = vmul.f32 %v704, %v704
        %v993 = vmul.f32 %v705, %v705
        %v994 = vmul.f32 %v706, %v706
        %v995 = vmul.f32 %v707, %v707
        %v996 = vmul.f32 %v708, %v708
        %v997 = vmul.f32 %v709, %v709
        %v998 = vmul.f32 %v710, %v710
        %v999 = vmul.f32 %v711, %v711
        %v1000 = vmul.f32 %v712, %v712
        %v1001 = vmul.f32 %v713, %v713
        %v1002 = vmul.f32 %v714, %v714
        %v1003 = vmul.f32 %v715, %v715
        %v1004 = vmul.f32 %v716, %v716
        %v1005 = vmul.f32 %v717, %v717
        %v1006 = vmul.f32 %v718, %v718
        %v1007 = vmul.f32 %v719, %v719
        %v1008 = vmul.f32 %v720, %v720
        %v1009 = vmul.f32 %v721, %v721
        %v1010 = vmul.f32 %v722, %v722
        %v1011 = vmul.f32 %v723, %v723
        %v1012 = vmul.f32 %v724, %v724
        %v1013 = vmul.f32 %v725, %v725
        %v1014 = vmul.f32 %v726, %v726
        %v1015 = vmul.f32 %v727, %v727
        %v1016 = vmul.f32 %v728, %v728
        %v1017 = vmul.f32 %v729, %v729
        %v1018 = vmul.f32 %v730, %v730
        %v1019 = vmul.f32 %v731, %v731
        %v1020 = vmul.f32 %v732, %v732
        %v1021 = vmul.f32 %v733, %v733
        %v1022 = vmul.f32 %v734, %v734
        %v1023 = vmul.f32 %v735, %v735
        %v1024 = vmul.f32 %v736, %v736
        %v1025 = vmul.f32 %v737, %v737
        %v1026 = vmul.f32 %v738, %v738
        %v1027 = vmul.f32 %v739, %v739
        %v1028 = vmul.f32 %v740, %v740
        %v1029 = vmul.f32 %v741, %v741
        %v1030 = vmul.f32 %v742, %v742
        %v1031 = vmul.f32 %v743, %v743
        %v1032 = vmul.f32 %v744, %v744
        %v1033 = vmul.f32 %v745, %v745
        %v1034 = vmul.f32 %v746, %v746
        %v1035 = vmul.f32 %v747, %v747
        %v1036 = vmul.f32 %v748, %v748
        %v1037 = vmul.f32 %v749, %v749
        %v1038 = vmul.f32 %v750, %v750
        %v1039 = vmul.f32 %v751, %v751
        %v1040 = vmul.f32 %v752, %v752
        %v1041 = vmul.f32 %v753, %v753
        %v1042 = vmul.f32 %v754, %v754
        %v1043 = vmul.f32 %v755, %v755
        %v1044 = vmul.f32 %v756, %v756
        %v1045 = vmul.f32 %v757, %v757
        %v1046 = vmul.f32 %v758, %v758
        %v1047 = vmul.f32 %v759, %v759
        %v1048 = vmul.f32 %v760, %v760
        %v1049 = vmul.f32 %v761, %v761
        %v1050 = vmul.f32 %v762, %v762
        %v1051 = vmul.f32 %v763, %v763
        %v1052 = vmul.f32 %v764, %v764
        %v1053 = vmul.f32 %v765, %v765
        %v1054 = vmul.f32 %v766, %v766
        %v1055 = vmul.f32 %v767, %v767
        %v1056 = vmul.f32 %v768, %v768
        %v1057 = vmul.f32 %v769, %v769
        %v1058 = vmul.f32 %v770, %v770
        %v1059 = vmul.f32 %v771, %v771
        %v1060 = vmul.f32 %v772, %v772
        %v1061 = vmul.f32 %v773, %v773
        %v1062 = vmul.f32 %v774, %v774
        %v1063 = vmul.f32 %v775, %v775
        %v1064 = vmul.f32 %v776, %v776
        %v1065 = vmul.f32 %v777, %v777
        %v1066 = vmul.f32 %v778, %v778
        %v1067 = vmul.f32 %v779, %v779
        %v1068 = vmul.f32 %v780, %v780
        %v1069 = vmul.f32 %v781, %v781
        %v1070 = vmul.f32 %v782, %v782
        %v1071 = vmul.f32 %v783, %v783
        %v1072 = vmul.f32 %v784, %v784
        %v1073 = vmul.f32 %v785, %v785
        %v1074 = vmul.f32 %v786, %v786
        %v1075 = vmul.f32 %v787, %v787
        %v1076 = vmul.f32 %v788, %v788
        %v1077 = vmul.f32 %v789, %v789
        %v1078 = vmul.f32 %v790, %v790
        %v1079 = vmul.f32 %v791, %v791
        %v1080 = vmul.f32 %v792, %v792
        %v1081 = vmul.f32 %v793, %v793
        %v1082 = vmul.f32 %v794, %v794
        %v1083 = vmul.f32 %v795, %v795
        %v1084 = vmul.f32 %v796, %v796
        %v1085 = vmul.f32 %v797, %v797
        %v1086 = vmul.f32 %v798, %v798
        %v1087 = vmul.f32 %v799, %v799
        %v1088 = vmul.f32 %v800, %v800
        %v1089 = vmul.f32 %v801, %v801
        %v1090 = vmul.f32 %v802, %v802
        %v1091 = vmul.f32 %v803, %v803
        %v1092 = vmul.f32 %v804, %v804
        %v1093 = vmul.f32 %v805, %v805
        %v1094 = vmul.f32 %v806, %v806
        %v1095 = vmul.f32 %v807, %v807
        %v1096 = vmul.f32 %v808, %v808
        %v1097 = vmul.f32 %v809, %v809
        %v1098 = vmul.f32 %v810, %v810
        %v1099 = vmul.f32 %v811, %v811
        %v1100 = vmul.f32 %v812, %v812
        %v1101 = vmul.f32 %v813, %v813
        %v1102 = vmul.f32 %v814, %v814
        %v1103 = vmul.f32 %v815, %v815
        %v1104 = vmul.f32 %v816, %v816
        %v1105 = vmul.f32 %v817, %v817
        %v1106 = vmul.f32 %v818, %v818
        %v1107 = vmul.f32 %v819, %v819
        %v1108 = vmul.f32 %v820, %v820
        %v1109 = vmul.f32 %v821, %v821
        %v1110 = vmul.f32 %v822, %v822
        %v1111 = vmul.f32 %v823, %v823
        %v1112 = vmul.f32 %v824, %v824
        %v1113 = vmul.f32 %v825, %v825
        %v1114 = vmul.f32 %v826, %v826
        %v1115 = vmul.f32 %v827, %v827
        %v1116 = vmul.f32 %v828, %v828
        %v1117 = vmul.f32 %v829, %v829
        %v1118 = vmul.f32 %v830, %v830
        %v1119 = vmul.f32 %v831, %v831
        %v1120 = vmul.f32 %v832, %v832
        %v1121 = vmul.f32 %v833, %v833
        %v1122 = vmul.f32 %v834, %v834
        %v1123 = vmul.f32 %v835, %v835
        %v1124 = vmul.f32 %v836, %v836
        %v1125 = vmul.f32 %v837, %v837
        %v1126 = vmul.f32 %v838, %v838
        %v1127 = vmul.f32 %v839, %v839
        %v1128 = vmul.f32 %v840, %v840
        %v1129 = vmul.f32 %v841, %v841
        %v1130 = vmul.f32 %v842, %v842
        %v1131 = vmul.f32 %v843, %v843
        %v1132 = vmul.f32 %v844, %v844
        %v1133 = vmul.f32 %v845, %v845
        %v1134 = vmul.f32 %v846, %v846
        %v1135 = vmul.f32 %v847, %v847
        %v1136 = vmul.f32 %v848, %v848
        %v1137 = vmul.f32 %v849, %v849
        %v1138 = vmul.f32 %v850, %v850
        %v1139 = vmul.f32 %v851, %v851
        %v1140 = vmul.f32 %v852, %v852
        %v1141 = vmul.f32 %v853, %v853
        %v1142 = vmul.f32 %v854, %v854
        %v1143 = vmul.f32 %v855, %v855
        %v1144 = vmul.f32 %v856, %v856
        %v1145 = vmul.f32 %v857, %v857
        %v1146 = vmul.f32 %v858, %v858
        %v1147 = vmul.f32 %v859, %v859
        %v1148 = vmul.f32 %v860, %v860
        %v1149 = vmul.f32 %v861, %v861
        %v1150 = vmul.f32 %v862, %v862
        %v1151 = vmul.f32 %v863, %v863
        %v1152 = vmul.f32 %v864, %v864
        %v1153 = vadd.f32 %v865, %v866
        %v1154 = vadd.f32 %v1153, %v867
        %v1155 = vadd.f32 %v1154, %v868
        %v1156 = vadd.f32 %v1155, %v869
        %v1157 = vadd.f32 %v1156, %v870
        %v1158 = vadd.f32 %v1157, %v871
        %v1159 = vadd.f32 %v1158, %v872
        %v1160 = vadd.f32 %v1159, %v873
        %v1161 = vadd.f32 %v1160, %v874
        %v1162 = vadd.f32 %v1161, %v875
        %v1163 = vadd.f32 %v1162, %v876
        %v1164 = vadd.f32 %v1163, %v877
        %v1165 = vadd.f32 %v1164, %v878
        %v1166 = vadd.f32 %v1165, %v879
        %v1167 = vadd.f32 %v1166, %v880
        %v1168 = vadd.f32 %v1167, %v881
        %v1169 = vadd.f32 %v1168, %v882
        %v1170 = vadd.f32 %v1169, %v883
        %v1171 = vadd.f32 %v1170, %v884
        %v1172 = vadd.f32 %v1171, %v885
        %v1173 = vadd.f32 %v1172, %v886
        %v1174 = vadd.f32 %v1173, %v887
        %v1175 = vadd.f32 %v1174, %v888
        %v1176 = vadd.f32 %v1175, %v889
        %v1177 = vadd.f32 %v1176, %v890
        %v1178 = vadd.f32 %v1177, %v891
        %v1179 = vadd.f32 %v1178, %v892
        %v1180 = vadd.f32 %v1179, %v893
        %v1181 = vadd.f32 %v1180, %v894
        %v1182 = vadd.f32 %v1181, %v895
        %v1183 = vadd.f32 %v1182, %v896
        %v1184 = vadd.f32 %v1183, %v897
        %v1185 = vadd.f32 %v1184, %v898
        %v1186 = vadd.f32 %v1185, %v899
        %v1187 = vadd.f32 %v1186, %v900
        %v1188 = vadd.f32 %v1187, %v901
        %v1189 = vadd.f32 %v1188, %v902
        %v1190 = vadd.f32 %v1189, %v903
        %v1191 = vadd.f32 %v1190, %v904
        %v1192 = vadd.f32 %v1191, %v905
        %v1193 = vadd.f32 %v1192, %v906
        %v1194 = vadd.f32 %v1193, %v907
        %v1195 = vadd.f32 %v1194, %v908
        %v1196 = vadd.f32 %v1195, %v909
        %v1197 = vadd.f32 %v1196, %v910
        %v1198 = vadd.f32 %v1197, %v911
        %v1199 = vadd.f32 %v1198, %v912
        %v1200 = vadd.f32 %v1199, %v913
        %v1201 = vadd.f32 %v1200, %v914
        %v1202 = vadd.f32 %v1201, %v915
        %v1203 = vadd.f32 %v1202, %v916
        %v1204 = vadd.f32 %v1203, %v917
        %v1205 = vadd.f32 %v1204, %v918
        %v1206 = vadd.f32 %v1205, %v919
        %v1207 = vadd.f32 %v1206, %v920
        %v1208 = vadd.f32 %v1207, %v921
        %v1209 = vadd.f32 %v1208, %v922
        %v1210 = vadd.f32 %v1209, %v923
        %v1211 = vadd.f32 %v1210, %v924
        %v1212 = vadd.f32 %v1211, %v925
        %v1213 = vadd.f32 %v1212, %v926
        %v1214 = vadd.f32 %v1213, %v927
        %v1215 = vadd.f32 %v1214, %v928
        %v1216 = vadd.f32 %v1215, %v929
        %v1217 = vadd.f32 %v1216, %v930
        %v1218 = vadd.f32 %v1217, %v931
        %v1219 = vadd.f32 %v1218, %v932
        %v1220 = vadd.f32 %v1219, %v933
        %v1221 = vadd.f32 %v1220, %v934
        %v1222 = vadd.f32 %v1221, %v935
        %v1223 = vadd.f32 %v1222, %v936
        %v1224 = vadd.f32 %v1223, %v937
        %v1225 = vadd.f32 %v1224, %v938
        %v1226 = vadd.f32 %v1225, %v939
        %v1227 = vadd.f32 %v1226, %v940
        %v1228 = vadd.f32 %v1227, %v941
        %v1229 = vadd.f32 %v1228, %v942
        %v1230 = vadd.f32 %v1229, %v943
        %v1231 = vadd.f32 %v1230, %v944
        %v1232 = vadd.f32 %v1231, %v945
        %v1233 = vadd.f32 %v1232, %v946
        %v1234 = vadd.f32 %v1233, %v947
        %v1235 = vadd.f32 %v1234, %v948
        %v1236 = vadd.f32 %v1235, %v949
        %v1237 = vadd.f32 %v1236, %v950
        %v1238 = vadd.f32 %v1237, %v951
        %v1239 = vadd.f32 %v1238, %v952
        %v1240 = vadd.f32 %v1239, %v953
        %v1241 = vadd.f32 %v1240, %v954
        %v1242 = vadd.f32 %v1241, %v955
        %v1243 = vadd.f32 %v1242, %v956
        %v1244 = vadd.f32 %v1243, %v957
        %v1245 = vadd.f32 %v1244, %v958
        %v1246 = vadd.f32 %v1245, %v959
        %v1247 = vadd.f32 %v1246, %v960
        %v1248 = vadd.f32 %v1247, %v961
        %v1249 = vadd.f32 %v1248, %v962
        %v1250 = vadd.f32 %v1249, %v963
        %v1251 = vadd.f32 %v1250, %v964
        %v1252 = vadd.f32 %v1251, %v965
        %v1253 = vadd.f32 %v1252, %v966
        %v1254 = vadd.f32 %v1253, %v967
        %v1255 = vadd.f32 %v1254, %v968
        %v1256 = vadd.f32 %v1255, %v969
        %v1257 = vadd.f32 %v1256, %v970
        %v1258 = vadd.f32 %v1257, %v971
        %v1259 = vadd.f32 %v1258, %v972
        %v1260 = vadd.f32 %v1259, %v973
        %v1261 = vadd.f32 %v1260, %v974
        %v1262 = vadd.f32 %v1261, %v975
        %v1263 = vadd.f32 %v1262, %v976
        %v1264 = vadd.f32 %v1263, %v977
        %v1265 = vadd.f32 %v1264, %v978
        %v1266 = vadd.f32 %v1265, %v979
        %v1267 = vadd.f32 %v1266, %v980
        %v1268 = vadd.f32 %v1267, %v981
        %v1269 = vadd.f32 %v1268, %v982
        %v1270 = vadd.f32 %v1269, %v983
        %v1271 = vadd.f32 %v1270, %v984
        %v1272 = vadd.f32 %v1271, %v985
        %v1273 = vadd.f32 %v1272, %v986
        %v1274 = vadd.f32 %v1273, %v987
        %v1275 = vadd.f32 %v1274, %v988
        %v1276 = vadd.f32 %v1275, %v989
        %v1277 = vadd.f32 %v1276, %v990
        %v1278 = vadd.f32 %v1277, %v991
        %v1279 = vadd.f32 %v1278, %v992
        %v1280 = vadd.f32 %v1279, %v993
        %v1281 = vadd.f32 %v1280, %v994
        %v1282 = vadd.f32 %v1281, %v995
        %v1283 = vadd.f32 %v1282, %v996
        %v1284 = vadd.f32 %v1283, %v997
        %v1285 = vadd.f32 %v1284, %v998
        %v1286 = vadd.f32 %v1285, %v999
        %v1287 = vadd.f32 %v1286, %v1000
        %v1288 = vadd.f32 %v1287, %v1001
        %v1289 = vadd.f32 %v1288, %v1002
        %v1290 = vadd.f32 %v1289, %v1003
        %v1291 = vadd.f32 %v1290, %v1004
        %v1292 = vadd.f32 %v1291, %v1005
        %v1293 = vadd.f32 %v1292, %v1006
        %v1294 = vadd.f32 %v1293, %v1007
        %v1295 = vadd.f32 %v1294, %v1008
        %v1296 = vadd.f32 %v1295, %v1009
        %v1297 = vadd.f32 %v1296, %v1010
        %v1298 = vadd.f32 %v1297, %v1011
        %v1299 = vadd.f32 %v1298, %v1012
        %v1300 = vadd.f32 %v1299, %v1013
        %v1301 = vadd.f32 %v1300, %v1014
        %v1302 = vadd.f32 %v1301, %v1015
        %v1303 = vadd.f32 %v1302, %v1016
        %v1304 = vadd.f32 %v1303, %v1017
        %v1305 = vadd.f32 %v1304, %v1018
        %v1306 = vadd.f32 %v1305, %v1019
        %v1307 = vadd.f32 %v1306, %v1020
        %v1308 = vadd.f32 %v1307, %v1021
        %v1309 = vadd.f32 %v1308, %v1022
        %v1310 = vadd.f32 %v1309, %v1023
        %v1311 = vadd.f32 %v1310, %v1024
        %v1312 = vadd.f32 %v1311, %v1025
        %v1313 = vadd.f32 %v1312, %v1026
        %v1314 = vadd.f32 %v1313, %v1027
        %v1315 = vadd.f32 %v1314, %v1028
        %v1316 = vadd.f32 %v1315, %v1029
        %v1317 = vadd.f32 %v1316, %v1030
        %v1318 = vadd.f32 %v1317, %v1031
        %v1319 = vadd.f32 %v1318, %v1032
        %v1320 = vadd.f32 %v1319, %v1033
        %v1321 = vadd.f32 %v1320, %v1034
        %v1322 = vadd.f32 %v1321, %v1035
        %v1323 = vadd.f32 %v1322, %v1036
        %v1324 = vadd.f32 %v1323, %v1037
        %v1325 = vadd.f32 %v1324, %v1038
        %v1326 = vadd.f32 %v1325, %v1039
        %v1327 = vadd.f32 %v1326, %v1040
        %v1328 = vadd.f32 %v1327, %v1041
        %v1329 = vadd.f32 %v1328, %v1042
        %v1330 = vadd.f32 %v1329, %v1043
        %v1331 = vadd.f32 %v1330, %v1044
        %v1332 = vadd.f32 %v1331, %v1045
        %v1333 = vadd.f32 %v1332, %v1046
        %v1334 = vadd.f32 %v1333, %v1047
        %v1335 = vadd.f32 %v1334, %v1048
        %v1336 = vadd.f32 %v1335, %v1049
        %v1337 = vadd.f32 %v1336, %v1050
        %v1338 = vadd.f32 %v1337, %v1051
        %v1339 = vadd.f32 %v1338, %v1052
        %v1340 = vadd.f32 %v1339, %v1053
        %v1341 = vadd.f32 %v1340, %v1054
        %v1342 = vadd.f32 %v1341, %v1055
        %v1343 = vadd.f32 %v1342, %v1056
        %v1344 = vadd.f32 %v1343, %v1057
        %v1345 = vadd.f32 %v1344, %v1058
        %v1346 = vadd.f32 %v1345, %v1059
        %v1347 = vadd.f32 %v1346, %v1060
        %v1348 = vadd.f32 %v1347, %v1061
        %v1349 = vadd.f32 %v1348, %v1062
        %v1350 = vadd.f32 %v1349, %v1063
        %v1351 = vadd.f32 %v1350, %v1064
        %v1352 = vadd.f32 %v1351, %v1065
        %v1353 = vadd.f32 %v1352, %v1066
        %v1354 = vadd.f32 %v1353, %v1067
        %v1355 = vadd.f32 %v1354, %v1068
        %v1356 = vadd.f32 %v1355, %v1069
        %v1357 = vadd.f32 %v1356, %v1070
        %v1358 = vadd.f32 %v1357, %v1071
        %v1359 = vadd.f32 %v1358, %v1072
        %v1360 = vadd.f32 %v1359, %v1073
        %v1361 = vadd.f32 %v1360, %v1074
        %v1362 = vadd.f32 %v1361, %v1075
        %v1363 = vadd.f32 %v1362, %v1076
        %v1364 = vadd.f32 %v1363, %v1077
        %v1365 = vadd.f32 %v1364, %v1078
        %v1366 = vadd.f32 %v1365, %v1079
        %v1367 = vadd.f32 %v1366, %v1080
        %v1368 = vadd.f32 %v1367, %v1081
        %v1369 = vadd.f32 %v1368, %v1082
        %v1370 = vadd.f32 %v1369, %v1083
        %v1371 = vadd.f32 %v1370, %v1084
        %v1372 = vadd.f32 %v1371, %v1085
        %v1373 = vadd.f32 %v1372, %v1086
        %v1374 = vadd.f32 %v1373, %v1087
        %v1375 = vadd.f32 %v1374, %v1088
        %v1376 = vadd.f32 %v1375, %v1089
        %v1377 = vadd.f32 %v1376, %v1090
        %v1378 = vadd.f32 %v1377, %v1091
        %v1379 = vadd.f32 %v1378, %v1092
        %v1380 = vadd.f32 %v1379, %v1093
        %v1381 = vadd.f32 %v1380, %v1094
        %v1382 = vadd.f32 %v1381, %v1095
        %v1383 = vadd.f32 %v1382, %v1096
        %v1384 = vadd.f32 %v1383, %v1097
        %v1385 = vadd.f32 %v1384, %v1098
        %v1386 = vadd.f32 %v1385, %v1099
        %v1387 = vadd.f32 %v1386, %v1100
        %v1388 = vadd.f32 %v1387, %v1101
        %v1389 = vadd.f32 %v1388, %v1102
        %v1390 = vadd.f32 %v1389, %v1103
        %v1391 = vadd.f32 %v1390, %v1104
        %v1392 = vadd.f32 %v1391, %v1105
        %v1393 = vadd.f32 %v1392, %v1106
        %v1394 = vadd.f32 %v1393, %v1107
        %v1395 = vadd.f32 %v1394, %v1108
        %v1396 = vadd.f32 %v1395, %v1109
        %v1397 = vadd.f32 %v1396, %v1110
        %v1398 = vadd.f32 %v1397, %v1111
        %v1399 = vadd.f32 %v1398, %v1112
        %v1400 = vadd.f32 %v1399, %v1113
        %v1401 = vadd.f32 %v1400, %v1114
        %v1402 = vadd.f32 %v1401, %v1115
        %v1403 = vadd.f32 %v1402, %v1116
        %v1404 = vadd.f32 %v1403, %v1117
        %v1405 = vadd.f32 %v1404, %v1118
        %v1406 = vadd.f32 %v1405, %v1119
        %v1407 = vadd.f32 %v1406, %v1120
        %v1408 = vadd.f32 %v1407, %v1121
        %v1409 = vadd.f32 %v1408, %v1122
        %v1410 = vadd.f32 %v1409, %v1123
        %v1411 = vadd.f32 %v1410, %v1124
        %v1412 = vadd.f32 %v1411, %v1125
        %v1413 = vadd.f32 %v1412, %v1126
        %v1414 = vadd.f32 %v1413, %v1127
        %v1415 = vadd.f32 %v1414, %v1128
        %v1416 = vadd.f32 %v1415, %v1129
        %v1417 = vadd.f32 %v1416, %v1130
        %v1418 = vadd.f32 %v1417, %v1131
        %v1419 = vadd.f32 %v1418, %v1132
        %v1420 = vadd.f32 %v1419, %v1133
        %v1421 = vadd.f32 %v1420, %v1134
        %v1422 = vadd.f32 %v1421, %v1135
        %v1423 = vadd.f32 %v1422, %v1136
        %v1424 = vadd.f32 %v1423, %v1137
        %v1425 = vadd.f32 %v1424, %v1138
        %v1426 = vadd.f32 %v1425, %v1139
        %v1427 = vadd.f32 %v1426, %v1140
        %v1428 = vadd.f32 %v1427, %v1141
        %v1429 = vadd.f32 %v1428, %v1142
        %v1430 = vadd.f32 %v1429, %v1143
        %v1431 = vadd.f32 %v1430, %v1144
        %v1432 = vadd.f32 %v1431, %v1145
        %v1433 = vadd.f32 %v1432, %v1146
        %v1434 = vadd.f32 %v1433, %v1147
        %v1435 = vadd.f32 %v1434, %v1148
        %v1436 = vadd.f32 %v1435, %v1149
        %v1437 = vadd.f32 %v1436, %v1150
        %v1438 = vadd.f32 %v1437, %v1151
        %v1439 = vadd.f32 %v1438, %v1152
        %v1440 = vadd.f32 %v1439, 0.0
        %v1441 = vld [vmem:[%s488] sm:$0xff]
        %v1442 = vld [vmem:[%s488 + $0x8] sm:$0xff]
        %v1443 = vld [vmem:[%s488 + $0x10] sm:$0xff]
        %v1444 = vld [vmem:[%s488 + $0x18] sm:$0xff]
        %v1445 = vld [vmem:[%s488 + $0x20] sm:$0xff]
        %v1446 = vld [vmem:[%s488 + $0x28] sm:$0xff]
        %v1447 = vld [vmem:[%s488 + $0x30] sm:$0xff]
        %v1448 = vld [vmem:[%s488 + $0x38] sm:$0xff]
        %v1449 = vld [vmem:[%s488 + $0x40] sm:$0xff]
        %v1450 = vld [vmem:[%s488 + $0x48] sm:$0xff]
        %v1451 = vld [vmem:[%s488 + $0x50] sm:$0xff]
        %v1452 = vld [vmem:[%s488 + $0x58] sm:$0xff]
        %v1453 = vld [vmem:[%s488 + $0x60] sm:$0xff]
        %v1454 = vld [vmem:[%s488 + $0x68] sm:$0xff]
        %v1455 = vld [vmem:[%s488 + $0x70] sm:$0xff]
        %v1456 = vld [vmem:[%s488 + $0x78] sm:$0xff]
        %v1457 = vld [vmem:[%s488 + $0x80] sm:$0xff]
        %v1458 = vld [vmem:[%s488 + $0x88] sm:$0xff]
        %v1459 = vld [vmem:[%s488 + $0x90] sm:$0xff]
        %v1460 = vld [vmem:[%s488 + $0x98] sm:$0xff]
        %v1461 = vld [vmem:[%s488 + $0xa0] sm:$0xff]
        %v1462 = vld [vmem:[%s488 + $0xa8] sm:$0xff]
        %v1463 = vld [vmem:[%s488 + $0xb0] sm:$0xff]
        %v1464 = vld [vmem:[%s488 + $0xb8] sm:$0xff]
        %v1465 = vld [vmem:[%s488 + $0xc0] sm:$0xff]
        %v1466 = vld [vmem:[%s488 + $0xc8] sm:$0xff]
        %v1467 = vld [vmem:[%s488 + $0xd0] sm:$0xff]
        %v1468 = vld [vmem:[%s488 + $0xd8] sm:$0xff]
        %v1469 = vld [vmem:[%s488 + $0xe0] sm:$0xff]
        %v1470 = vld [vmem:[%s488 + $0xe8] sm:$0xff]
        %v1471 = vld [vmem:[%s488 + $0xf0] sm:$0xff]
        %v1472 = vld [vmem:[%s488 + $0xf8] sm:$0xff]
        %v1473 = vld [vmem:[%s488 + $0x100] sm:$0xff]
        %v1474 = vld [vmem:[%s488 + $0x108] sm:$0xff]
        %v1475 = vld [vmem:[%s488 + $0x110] sm:$0xff]
        %v1476 = vld [vmem:[%s488 + $0x118] sm:$0xff]
        %v1477 = vld [vmem:[%s488 + $0x120] sm:$0xff]
        %v1478 = vld [vmem:[%s488 + $0x128] sm:$0xff]
        %v1479 = vld [vmem:[%s488 + $0x130] sm:$0xff]
        %v1480 = vld [vmem:[%s488 + $0x138] sm:$0xff]
        %v1481 = vld [vmem:[%s488 + $0x140] sm:$0xff]
        %v1482 = vld [vmem:[%s488 + $0x148] sm:$0xff]
        %v1483 = vld [vmem:[%s488 + $0x150] sm:$0xff]
        %v1484 = vld [vmem:[%s488 + $0x158] sm:$0xff]
        %v1485 = vld [vmem:[%s488 + $0x160] sm:$0xff]
        %v1486 = vld [vmem:[%s488 + $0x168] sm:$0xff]
        %v1487 = vld [vmem:[%s488 + $0x170] sm:$0xff]
        %v1488 = vld [vmem:[%s488 + $0x178] sm:$0xff]
        %v1489 = vld [vmem:[%s488 + $0x180] sm:$0xff]
        %v1490 = vld [vmem:[%s488 + $0x188] sm:$0xff]
        %v1491 = vld [vmem:[%s488 + $0x190] sm:$0xff]
        %v1492 = vld [vmem:[%s488 + $0x198] sm:$0xff]
        %v1493 = vld [vmem:[%s488 + $0x1a0] sm:$0xff]
        %v1494 = vld [vmem:[%s488 + $0x1a8] sm:$0xff]
        %v1495 = vld [vmem:[%s488 + $0x1b0] sm:$0xff]
        %v1496 = vld [vmem:[%s488 + $0x1b8] sm:$0xff]
        %v1497 = vld [vmem:[%s488 + $0x1c0] sm:$0xff]
        %v1498 = vld [vmem:[%s488 + $0x1c8] sm:$0xff]
        %v1499 = vld [vmem:[%s488 + $0x1d0] sm:$0xff]
        %v1500 = vld [vmem:[%s488 + $0x1d8] sm:$0xff]
        %v1501 = vld [vmem:[%s488 + $0x1e0] sm:$0xff]
        %v1502 = vld [vmem:[%s488 + $0x1e8] sm:$0xff]
        %v1503 = vld [vmem:[%s488 + $0x1f0] sm:$0xff]
        %v1504 = vld [vmem:[%s488 + $0x1f8] sm:$0xff]
        %v1505 = vld [vmem:[%s488 + $0x200] sm:$0xff]
        %v1506 = vld [vmem:[%s488 + $0x208] sm:$0xff]
        %v1507 = vld [vmem:[%s488 + $0x210] sm:$0xff]
        %v1508 = vld [vmem:[%s488 + $0x218] sm:$0xff]
        %v1509 = vld [vmem:[%s488 + $0x220] sm:$0xff]
        %v1510 = vld [vmem:[%s488 + $0x228] sm:$0xff]
        %v1511 = vld [vmem:[%s488 + $0x230] sm:$0xff]
        %v1512 = vld [vmem:[%s488 + $0x238] sm:$0xff]
        %v1513 = vld [vmem:[%s488 + $0x240] sm:$0xff]
        %v1514 = vld [vmem:[%s488 + $0x248] sm:$0xff]
        %v1515 = vld [vmem:[%s488 + $0x250] sm:$0xff]
        %v1516 = vld [vmem:[%s488 + $0x258] sm:$0xff]
        %v1517 = vld [vmem:[%s488 + $0x260] sm:$0xff]
        %v1518 = vld [vmem:[%s488 + $0x268] sm:$0xff]
        %v1519 = vld [vmem:[%s488 + $0x270] sm:$0xff]
        %v1520 = vld [vmem:[%s488 + $0x278] sm:$0xff]
        %v1521 = vld [vmem:[%s488 + $0x280] sm:$0xff]
        %v1522 = vld [vmem:[%s488 + $0x288] sm:$0xff]
        %v1523 = vld [vmem:[%s488 + $0x290] sm:$0xff]
        %v1524 = vld [vmem:[%s488 + $0x298] sm:$0xff]
        %v1525 = vld [vmem:[%s488 + $0x2a0] sm:$0xff]
        %v1526 = vld [vmem:[%s488 + $0x2a8] sm:$0xff]
        %v1527 = vld [vmem:[%s488 + $0x2b0] sm:$0xff]
        %v1528 = vld [vmem:[%s488 + $0x2b8] sm:$0xff]
        %v1529 = vld [vmem:[%s488 + $0x2c0] sm:$0xff]
        %v1530 = vld [vmem:[%s488 + $0x2c8] sm:$0xff]
        %v1531 = vld [vmem:[%s488 + $0x2d0] sm:$0xff]
        %v1532 = vld [vmem:[%s488 + $0x2d8] sm:$0xff]
        %v1533 = vld [vmem:[%s488 + $0x2e0] sm:$0xff]
        %v1534 = vld [vmem:[%s488 + $0x2e8] sm:$0xff]
        %v1535 = vld [vmem:[%s488 + $0x2f0] sm:$0xff]
        %v1536 = vld [vmem:[%s488 + $0x2f8] sm:$0xff]
        %v1537 = vld [vmem:[%s488 + $0x300] sm:$0xff]
        %v1538 = vld [vmem:[%s488 + $0x308] sm:$0xff]
        %v1539 = vld [vmem:[%s488 + $0x310] sm:$0xff]
        %v1540 = vld [vmem:[%s488 + $0x318] sm:$0xff]
        %v1541 = vld [vmem:[%s488 + $0x320] sm:$0xff]
        %v1542 = vld [vmem:[%s488 + $0x328] sm:$0xff]
        %v1543 = vld [vmem:[%s488 + $0x330] sm:$0xff]
        %v1544 = vld [vmem:[%s488 + $0x338] sm:$0xff]
        %v1545 = vld [vmem:[%s488 + $0x340] sm:$0xff]
        %v1546 = vld [vmem:[%s488 + $0x348] sm:$0xff]
        %v1547 = vld [vmem:[%s488 + $0x350] sm:$0xff]
        %v1548 = vld [vmem:[%s488 + $0x358] sm:$0xff]
        %v1549 = vld [vmem:[%s488 + $0x360] sm:$0xff]
        %v1550 = vld [vmem:[%s488 + $0x368] sm:$0xff]
        %v1551 = vld [vmem:[%s488 + $0x370] sm:$0xff]
        %v1552 = vld [vmem:[%s488 + $0x378] sm:$0xff]
        %v1553 = vld [vmem:[%s488 + $0x380] sm:$0xff]
        %v1554 = vld [vmem:[%s488 + $0x388] sm:$0xff]
        %v1555 = vld [vmem:[%s488 + $0x390] sm:$0xff]
        %v1556 = vld [vmem:[%s488 + $0x398] sm:$0xff]
        %v1557 = vld [vmem:[%s488 + $0x3a0] sm:$0xff]
        %v1558 = vld [vmem:[%s488 + $0x3a8] sm:$0xff]
        %v1559 = vld [vmem:[%s488 + $0x3b0] sm:$0xff]
        %v1560 = vld [vmem:[%s488 + $0x3b8] sm:$0xff]
        %v1561 = vld [vmem:[%s488 + $0x3c0] sm:$0xff]
        %v1562 = vld [vmem:[%s488 + $0x3c8] sm:$0xff]
        %v1563 = vld [vmem:[%s488 + $0x3d0] sm:$0xff]
        %v1564 = vld [vmem:[%s488 + $0x3d8] sm:$0xff]
        %v1565 = vld [vmem:[%s488 + $0x3e0] sm:$0xff]
        %v1566 = vld [vmem:[%s488 + $0x3e8] sm:$0xff]
        %v1567 = vld [vmem:[%s488 + $0x3f0] sm:$0xff]
        %v1568 = vld [vmem:[%s488 + $0x3f8] sm:$0xff]
        %v1569 = vld [vmem:[%s488 + $0x400] sm:$0xff]
        %v1570 = vld [vmem:[%s488 + $0x408] sm:$0xff]
        %v1571 = vld [vmem:[%s488 + $0x410] sm:$0xff]
        %v1572 = vld [vmem:[%s488 + $0x418] sm:$0xff]
        %v1573 = vld [vmem:[%s488 + $0x420] sm:$0xff]
        %v1574 = vld [vmem:[%s488 + $0x428] sm:$0xff]
        %v1575 = vld [vmem:[%s488 + $0x430] sm:$0xff]
        %v1576 = vld [vmem:[%s488 + $0x438] sm:$0xff]
        %v1577 = vld [vmem:[%s488 + $0x440] sm:$0xff]
        %v1578 = vld [vmem:[%s488 + $0x448] sm:$0xff]
        %v1579 = vld [vmem:[%s488 + $0x450] sm:$0xff]
        %v1580 = vld [vmem:[%s488 + $0x458] sm:$0xff]
        %v1581 = vld [vmem:[%s488 + $0x460] sm:$0xff]
        %v1582 = vld [vmem:[%s488 + $0x468] sm:$0xff]
        %v1583 = vld [vmem:[%s488 + $0x470] sm:$0xff]
        %v1584 = vld [vmem:[%s488 + $0x478] sm:$0xff]
        %v1585 = vld [vmem:[%s488 + $0x480] sm:$0xff]
        %v1586 = vld [vmem:[%s488 + $0x488] sm:$0xff]
        %v1587 = vld [vmem:[%s488 + $0x490] sm:$0xff]
        %v1588 = vld [vmem:[%s488 + $0x498] sm:$0xff]
        %v1589 = vld [vmem:[%s488 + $0x4a0] sm:$0xff]
        %v1590 = vld [vmem:[%s488 + $0x4a8] sm:$0xff]
        %v1591 = vld [vmem:[%s488 + $0x4b0] sm:$0xff]
        %v1592 = vld [vmem:[%s488 + $0x4b8] sm:$0xff]
        %v1593 = vld [vmem:[%s488 + $0x4c0] sm:$0xff]
        %v1594 = vld [vmem:[%s488 + $0x4c8] sm:$0xff]
        %v1595 = vld [vmem:[%s488 + $0x4d0] sm:$0xff]
        %v1596 = vld [vmem:[%s488 + $0x4d8] sm:$0xff]
        %v1597 = vld [vmem:[%s488 + $0x4e0] sm:$0xff]
        %v1598 = vld [vmem:[%s488 + $0x4e8] sm:$0xff]
        %v1599 = vld [vmem:[%s488 + $0x4f0] sm:$0xff]
        %v1600 = vld [vmem:[%s488 + $0x4f8] sm:$0xff]
        %v1601 = vld [vmem:[%s488 + $0x500] sm:$0xff]
        %v1602 = vld [vmem:[%s488 + $0x508] sm:$0xff]
        %v1603 = vld [vmem:[%s488 + $0x510] sm:$0xff]
        %v1604 = vld [vmem:[%s488 + $0x518] sm:$0xff]
        %v1605 = vld [vmem:[%s488 + $0x520] sm:$0xff]
        %v1606 = vld [vmem:[%s488 + $0x528] sm:$0xff]
        %v1607 = vld [vmem:[%s488 + $0x530] sm:$0xff]
        %v1608 = vld [vmem:[%s488 + $0x538] sm:$0xff]
        %v1609 = vld [vmem:[%s488 + $0x540] sm:$0xff]
        %v1610 = vld [vmem:[%s488 + $0x548] sm:$0xff]
        %v1611 = vld [vmem:[%s488 + $0x550] sm:$0xff]
        %v1612 = vld [vmem:[%s488 + $0x558] sm:$0xff]
        %v1613 = vld [vmem:[%s488 + $0x560] sm:$0xff]
        %v1614 = vld [vmem:[%s488 + $0x568] sm:$0xff]
        %v1615 = vld [vmem:[%s488 + $0x570] sm:$0xff]
        %v1616 = vld [vmem:[%s488 + $0x578] sm:$0xff]
        %v1617 = vld [vmem:[%s488 + $0x580] sm:$0xff]
        %v1618 = vld [vmem:[%s488 + $0x588] sm:$0xff]
        %v1619 = vld [vmem:[%s488 + $0x590] sm:$0xff]
        %v1620 = vld [vmem:[%s488 + $0x598] sm:$0xff]
        %v1621 = vld [vmem:[%s488 + $0x5a0] sm:$0xff]
        %v1622 = vld [vmem:[%s488 + $0x5a8] sm:$0xff]
        %v1623 = vld [vmem:[%s488 + $0x5b0] sm:$0xff]
        %v1624 = vld [vmem:[%s488 + $0x5b8] sm:$0xff]
        %v1625 = vld [vmem:[%s488 + $0x5c0] sm:$0xff]
        %v1626 = vld [vmem:[%s488 + $0x5c8] sm:$0xff]
        %v1627 = vld [vmem:[%s488 + $0x5d0] sm:$0xff]
        %v1628 = vld [vmem:[%s488 + $0x5d8] sm:$0xff]
        %v1629 = vld [vmem:[%s488 + $0x5e0] sm:$0xff]
        %v1630 = vld [vmem:[%s488 + $0x5e8] sm:$0xff]
        %v1631 = vld [vmem:[%s488 + $0x5f0] sm:$0xff]
        %v1632 = vld [vmem:[%s488 + $0x5f8] sm:$0xff]
        %v1633 = vld [vmem:[%s488 + $0x600] sm:$0xff]
        %v1634 = vld [vmem:[%s488 + $0x608] sm:$0xff]
        %v1635 = vld [vmem:[%s488 + $0x610] sm:$0xff]
        %v1636 = vld [vmem:[%s488 + $0x618] sm:$0xff]
        %v1637 = vld [vmem:[%s488 + $0x620] sm:$0xff]
        %v1638 = vld [vmem:[%s488 + $0x628] sm:$0xff]
        %v1639 = vld [vmem:[%s488 + $0x630] sm:$0xff]
        %v1640 = vld [vmem:[%s488 + $0x638] sm:$0xff]
        %v1641 = vld [vmem:[%s488 + $0x640] sm:$0xff]
        %v1642 = vld [vmem:[%s488 + $0x648] sm:$0xff]
        %v1643 = vld [vmem:[%s488 + $0x650] sm:$0xff]
        %v1644 = vld [vmem:[%s488 + $0x658] sm:$0xff]
        %v1645 = vld [vmem:[%s488 + $0x660] sm:$0xff]
        %v1646 = vld [vmem:[%s488 + $0x668] sm:$0xff]
        %v1647 = vld [vmem:[%s488 + $0x670] sm:$0xff]
        %v1648 = vld [vmem:[%s488 + $0x678] sm:$0xff]
        %v1649 = vld [vmem:[%s488 + $0x680] sm:$0xff]
        %v1650 = vld [vmem:[%s488 + $0x688] sm:$0xff]
        %v1651 = vld [vmem:[%s488 + $0x690] sm:$0xff]
        %v1652 = vld [vmem:[%s488 + $0x698] sm:$0xff]
        %v1653 = vld [vmem:[%s488 + $0x6a0] sm:$0xff]
        %v1654 = vld [vmem:[%s488 + $0x6a8] sm:$0xff]
        %v1655 = vld [vmem:[%s488 + $0x6b0] sm:$0xff]
        %v1656 = vld [vmem:[%s488 + $0x6b8] sm:$0xff]
        %v1657 = vld [vmem:[%s488 + $0x6c0] sm:$0xff]
        %v1658 = vld [vmem:[%s488 + $0x6c8] sm:$0xff]
        %v1659 = vld [vmem:[%s488 + $0x6d0] sm:$0xff]
        %v1660 = vld [vmem:[%s488 + $0x6d8] sm:$0xff]
        %v1661 = vld [vmem:[%s488 + $0x6e0] sm:$0xff]
        %v1662 = vld [vmem:[%s488 + $0x6e8] sm:$0xff]
        %v1663 = vld [vmem:[%s488 + $0x6f0] sm:$0xff]
        %v1664 = vld [vmem:[%s488 + $0x6f8] sm:$0xff]
        %v1665 = vld [vmem:[%s488 + $0x700] sm:$0xff]
        %v1666 = vld [vmem:[%s488 + $0x708] sm:$0xff]
        %v1667 = vld [vmem:[%s488 + $0x710] sm:$0xff]
        %v1668 = vld [vmem:[%s488 + $0x718] sm:$0xff]
        %v1669 = vld [vmem:[%s488 + $0x720] sm:$0xff]
        %v1670 = vld [vmem:[%s488 + $0x728] sm:$0xff]
        %v1671 = vld [vmem:[%s488 + $0x730] sm:$0xff]
        %v1672 = vld [vmem:[%s488 + $0x738] sm:$0xff]
        %v1673 = vld [vmem:[%s488 + $0x740] sm:$0xff]
        %v1674 = vld [vmem:[%s488 + $0x748] sm:$0xff]
        %v1675 = vld [vmem:[%s488 + $0x750] sm:$0xff]
        %v1676 = vld [vmem:[%s488 + $0x758] sm:$0xff]
        %v1677 = vld [vmem:[%s488 + $0x760] sm:$0xff]
        %v1678 = vld [vmem:[%s488 + $0x768] sm:$0xff]
        %v1679 = vld [vmem:[%s488 + $0x770] sm:$0xff]
        %v1680 = vld [vmem:[%s488 + $0x778] sm:$0xff]
        %v1681 = vld [vmem:[%s488 + $0x780] sm:$0xff]
        %v1682 = vld [vmem:[%s488 + $0x788] sm:$0xff]
        %v1683 = vld [vmem:[%s488 + $0x790] sm:$0xff]
        %v1684 = vld [vmem:[%s488 + $0x798] sm:$0xff]
        %v1685 = vld [vmem:[%s488 + $0x7a0] sm:$0xff]
        %v1686 = vld [vmem:[%s488 + $0x7a8] sm:$0xff]
        %v1687 = vld [vmem:[%s488 + $0x7b0] sm:$0xff]
        %v1688 = vld [vmem:[%s488 + $0x7b8] sm:$0xff]
        %v1689 = vld [vmem:[%s488 + $0x7c0] sm:$0xff]
        %v1690 = vld [vmem:[%s488 + $0x7c8] sm:$0xff]
        %v1691 = vld [vmem:[%s488 + $0x7d0] sm:$0xff]
        %v1692 = vld [vmem:[%s488 + $0x7d8] sm:$0xff]
        %v1693 = vld [vmem:[%s488 + $0x7e0] sm:$0xff]
        %v1694 = vld [vmem:[%s488 + $0x7e8] sm:$0xff]
        %v1695 = vld [vmem:[%s488 + $0x7f0] sm:$0xff]
        %v1696 = vld [vmem:[%s488 + $0x7f8] sm:$0xff]
        %v1697 = vld [vmem:[%s488 + $0x800] sm:$0xff]
        %v1698 = vld [vmem:[%s488 + $0x808] sm:$0xff]
        %v1699 = vld [vmem:[%s488 + $0x810] sm:$0xff]
        %v1700 = vld [vmem:[%s488 + $0x818] sm:$0xff]
        %v1701 = vld [vmem:[%s488 + $0x820] sm:$0xff]
        %v1702 = vld [vmem:[%s488 + $0x828] sm:$0xff]
        %v1703 = vld [vmem:[%s488 + $0x830] sm:$0xff]
        %v1704 = vld [vmem:[%s488 + $0x838] sm:$0xff]
        %v1705 = vld [vmem:[%s488 + $0x840] sm:$0xff]
        %v1706 = vld [vmem:[%s488 + $0x848] sm:$0xff]
        %v1707 = vld [vmem:[%s488 + $0x850] sm:$0xff]
        %v1708 = vld [vmem:[%s488 + $0x858] sm:$0xff]
        %v1709 = vld [vmem:[%s488 + $0x860] sm:$0xff]
        %v1710 = vld [vmem:[%s488 + $0x868] sm:$0xff]
        %v1711 = vld [vmem:[%s488 + $0x870] sm:$0xff]
        %v1712 = vld [vmem:[%s488 + $0x878] sm:$0xff]
        %v1713 = vld [vmem:[%s488 + $0x880] sm:$0xff]
        %v1714 = vld [vmem:[%s488 + $0x888] sm:$0xff]
        %v1715 = vld [vmem:[%s488 + $0x890] sm:$0xff]
        %v1716 = vld [vmem:[%s488 + $0x898] sm:$0xff]
        %v1717 = vld [vmem:[%s488 + $0x8a0] sm:$0xff]
        %v1718 = vld [vmem:[%s488 + $0x8a8] sm:$0xff]
        %v1719 = vld [vmem:[%s488 + $0x8b0] sm:$0xff]
        %v1720 = vld [vmem:[%s488 + $0x8b8] sm:$0xff]
        %v1721 = vld [vmem:[%s488 + $0x8c0] sm:$0xff]
        %v1722 = vld [vmem:[%s488 + $0x8c8] sm:$0xff]
        %v1723 = vld [vmem:[%s488 + $0x8d0] sm:$0xff]
        %v1724 = vld [vmem:[%s488 + $0x8d8] sm:$0xff]
        %v1725 = vld [vmem:[%s488 + $0x8e0] sm:$0xff]
        %v1726 = vld [vmem:[%s488 + $0x8e8] sm:$0xff]
        %v1727 = vld [vmem:[%s488 + $0x8f0] sm:$0xff]
        %v1728 = vld [vmem:[%s488 + $0x8f8] sm:$0xff]
        %v1729 = vmul.f32 %v1441, %v1441
        %v1730 = vmul.f32 %v1442, %v1442
        %v1731 = vmul.f32 %v1443, %v1443
        %v1732 = vmul.f32 %v1444, %v1444
        %v1733 = vmul.f32 %v1445, %v1445
        %v1734 = vmul.f32 %v1446, %v1446
        %v1735 = vmul.f32 %v1447, %v1447
        %v1736 = vmul.f32 %v1448, %v1448
        %v1737 = vmul.f32 %v1449, %v1449
        %v1738 = vmul.f32 %v1450, %v1450
        %v1739 = vmul.f32 %v1451, %v1451
        %v1740 = vmul.f32 %v1452, %v1452
        %v1741 = vmul.f32 %v1453, %v1453
        %v1742 = vmul.f32 %v1454, %v1454
        %v1743 = vmul.f32 %v1455, %v1455
        %v1744 = vmul.f32 %v1456, %v1456
        %v1745 = vmul.f32 %v1457, %v1457
        %v1746 = vmul.f32 %v1458, %v1458
        %v1747 = vmul.f32 %v1459, %v1459
        %v1748 = vmul.f32 %v1460, %v1460
        %v1749 = vmul.f32 %v1461, %v1461
        %v1750 = vmul.f32 %v1462, %v1462
        %v1751 = vmul.f32 %v1463, %v1463
        %v1752 = vmul.f32 %v1464, %v1464
        %v1753 = vmul.f32 %v1465, %v1465
        %v1754 = vmul.f32 %v1466, %v1466
        %v1755 = vmul.f32 %v1467, %v1467
        %v1756 = vmul.f32 %v1468, %v1468
        %v1757 = vmul.f32 %v1469, %v1469
        %v1758 = vmul.f32 %v1470, %v1470
        %v1759 = vmul.f32 %v1471, %v1471
        %v1760 = vmul.f32 %v1472, %v1472
        %v1761 = vmul.f32 %v1473, %v1473
        %v1762 = vmul.f32 %v1474, %v1474
        %v1763 = vmul.f32 %v1475, %v1475
        %v1764 = vmul.f32 %v1476, %v1476
        %v1765 = vmul.f32 %v1477, %v1477
        %v1766 = vmul.f32 %v1478, %v1478
        %v1767 = vmul.f32 %v1479, %v1479
        %v1768 = vmul.f32 %v1480, %v1480
        %v1769 = vmul.f32 %v1481, %v1481
        %v1770 = vmul.f32 %v1482, %v1482
        %v1771 = vmul.f32 %v1483, %v1483
        %v1772 = vmul.f32 %v1484, %v1484
        %v1773 = vmul.f32 %v1485, %v1485
        %v1774 = vmul.f32 %v1486, %v1486
        %v1775 = vmul.f32 %v1487, %v1487
        %v1776 = vmul.f32 %v1488, %v1488
        %v1777 = vmul.f32 %v1489, %v1489
        %v1778 = vmul.f32 %v1490, %v1490
        %v1779 = vmul.f32 %v1491, %v1491
        %v1780 = vmul.f32 %v1492, %v1492
        %v1781 = vmul.f32 %v1493, %v1493
        %v1782 = vmul.f32 %v1494, %v1494
        %v1783 = vmul.f32 %v1495, %v1495
        %v1784 = vmul.f32 %v1496, %v1496
        %v1785 = vmul.f32 %v1497, %v1497
        %v1786 = vmul.f32 %v1498, %v1498
        %v1787 = vmul.f32 %v1499, %v1499
        %v1788 = vmul.f32 %v1500, %v1500
        %v1789 = vmul.f32 %v1501, %v1501
        %v1790 = vmul.f32 %v1502, %v1502
        %v1791 = vmul.f32 %v1503, %v1503
        %v1792 = vmul.f32 %v1504, %v1504
        %v1793 = vmul.f32 %v1505, %v1505
        %v1794 = vmul.f32 %v1506, %v1506
        %v1795 = vmul.f32 %v1507, %v1507
        %v1796 = vmul.f32 %v1508, %v1508
        %v1797 = vmul.f32 %v1509, %v1509
        %v1798 = vmul.f32 %v1510, %v1510
        %v1799 = vmul.f32 %v1511, %v1511
        %v1800 = vmul.f32 %v1512, %v1512
        %v1801 = vmul.f32 %v1513, %v1513
        %v1802 = vmul.f32 %v1514, %v1514
        %v1803 = vmul.f32 %v1515, %v1515
        %v1804 = vmul.f32 %v1516, %v1516
        %v1805 = vmul.f32 %v1517, %v1517
        %v1806 = vmul.f32 %v1518, %v1518
        %v1807 = vmul.f32 %v1519, %v1519
        %v1808 = vmul.f32 %v1520, %v1520
        %v1809 = vmul.f32 %v1521, %v1521
        %v1810 = vmul.f32 %v1522, %v1522
        %v1811 = vmul.f32 %v1523, %v1523
        %v1812 = vmul.f32 %v1524, %v1524
        %v1813 = vmul.f32 %v1525, %v1525
        %v1814 = vmul.f32 %v1526, %v1526
        %v1815 = vmul.f32 %v1527, %v1527
        %v1816 = vmul.f32 %v1528, %v1528
        %v1817 = vmul.f32 %v1529, %v1529
        %v1818 = vmul.f32 %v1530, %v1530
        %v1819 = vmul.f32 %v1531, %v1531
        %v1820 = vmul.f32 %v1532, %v1532
        %v1821 = vmul.f32 %v1533, %v1533
        %v1822 = vmul.f32 %v1534, %v1534
        %v1823 = vmul.f32 %v1535, %v1535
        %v1824 = vmul.f32 %v1536, %v1536
        %v1825 = vmul.f32 %v1537, %v1537
        %v1826 = vmul.f32 %v1538, %v1538
        %v1827 = vmul.f32 %v1539, %v1539
        %v1828 = vmul.f32 %v1540, %v1540
        %v1829 = vmul.f32 %v1541, %v1541
        %v1830 = vmul.f32 %v1542, %v1542
        %v1831 = vmul.f32 %v1543, %v1543
        %v1832 = vmul.f32 %v1544, %v1544
        %v1833 = vmul.f32 %v1545, %v1545
        %v1834 = vmul.f32 %v1546, %v1546
        %v1835 = vmul.f32 %v1547, %v1547
        %v1836 = vmul.f32 %v1548, %v1548
        %v1837 = vmul.f32 %v1549, %v1549
        %v1838 = vmul.f32 %v1550, %v1550
        %v1839 = vmul.f32 %v1551, %v1551
        %v1840 = vmul.f32 %v1552, %v1552
        %v1841 = vmul.f32 %v1553, %v1553
        %v1842 = vmul.f32 %v1554, %v1554
        %v1843 = vmul.f32 %v1555, %v1555
        %v1844 = vmul.f32 %v1556, %v1556
        %v1845 = vmul.f32 %v1557, %v1557
        %v1846 = vmul.f32 %v1558, %v1558
        %v1847 = vmul.f32 %v1559, %v1559
        %v1848 = vmul.f32 %v1560, %v1560
        %v1849 = vmul.f32 %v1561, %v1561
        %v1850 = vmul.f32 %v1562, %v1562
        %v1851 = vmul.f32 %v1563, %v1563
        %v1852 = vmul.f32 %v1564, %v1564
        %v1853 = vmul.f32 %v1565, %v1565
        %v1854 = vmul.f32 %v1566, %v1566
        %v1855 = vmul.f32 %v1567, %v1567
        %v1856 = vmul.f32 %v1568, %v1568
        %v1857 = vmul.f32 %v1569, %v1569
        %v1858 = vmul.f32 %v1570, %v1570
        %v1859 = vmul.f32 %v1571, %v1571
        %v1860 = vmul.f32 %v1572, %v1572
        %v1861 = vmul.f32 %v1573, %v1573
        %v1862 = vmul.f32 %v1574, %v1574
        %v1863 = vmul.f32 %v1575, %v1575
        %v1864 = vmul.f32 %v1576, %v1576
        %v1865 = vmul.f32 %v1577, %v1577
        %v1866 = vmul.f32 %v1578, %v1578
        %v1867 = vmul.f32 %v1579, %v1579
        %v1868 = vmul.f32 %v1580, %v1580
        %v1869 = vmul.f32 %v1581, %v1581
        %v1870 = vmul.f32 %v1582, %v1582
        %v1871 = vmul.f32 %v1583, %v1583
        %v1872 = vmul.f32 %v1584, %v1584
        %v1873 = vmul.f32 %v1585, %v1585
        %v1874 = vmul.f32 %v1586, %v1586
        %v1875 = vmul.f32 %v1587, %v1587
        %v1876 = vmul.f32 %v1588, %v1588
        %v1877 = vmul.f32 %v1589, %v1589
        %v1878 = vmul.f32 %v1590, %v1590
        %v1879 = vmul.f32 %v1591, %v1591
        %v1880 = vmul.f32 %v1592, %v1592
        %v1881 = vmul.f32 %v1593, %v1593
        %v1882 = vmul.f32 %v1594, %v1594
        %v1883 = vmul.f32 %v1595, %v1595
        %v1884 = vmul.f32 %v1596, %v1596
        %v1885 = vmul.f32 %v1597, %v1597
        %v1886 = vmul.f32 %v1598, %v1598
        %v1887 = vmul.f32 %v1599, %v1599
        %v1888 = vmul.f32 %v1600, %v1600
        %v1889 = vmul.f32 %v1601, %v1601
        %v1890 = vmul.f32 %v1602, %v1602
        %v1891 = vmul.f32 %v1603, %v1603
        %v1892 = vmul.f32 %v1604, %v1604
        %v1893 = vmul.f32 %v1605, %v1605
        %v1894 = vmul.f32 %v1606, %v1606
        %v1895 = vmul.f32 %v1607, %v1607
        %v1896 = vmul.f32 %v1608, %v1608
        %v1897 = vmul.f32 %v1609, %v1609
        %v1898 = vmul.f32 %v1610, %v1610
        %v1899 = vmul.f32 %v1611, %v1611
        %v1900 = vmul.f32 %v1612, %v1612
        %v1901 = vmul.f32 %v1613, %v1613
        %v1902 = vmul.f32 %v1614, %v1614
        %v1903 = vmul.f32 %v1615, %v1615
        %v1904 = vmul.f32 %v1616, %v1616
        %v1905 = vmul.f32 %v1617, %v1617
        %v1906 = vmul.f32 %v1618, %v1618
        %v1907 = vmul.f32 %v1619, %v1619
        %v1908 = vmul.f32 %v1620, %v1620
        %v1909 = vmul.f32 %v1621, %v1621
        %v1910 = vmul.f32 %v1622, %v1622
        %v1911 = vmul.f32 %v1623, %v1623
        %v1912 = vmul.f32 %v1624, %v1624
        %v1913 = vmul.f32 %v1625, %v1625
        %v1914 = vmul.f32 %v1626, %v1626
        %v1915 = vmul.f32 %v1627, %v1627
        %v1916 = vmul.f32 %v1628, %v1628
        %v1917 = vmul.f32 %v1629, %v1629
        %v1918 = vmul.f32 %v1630, %v1630
        %v1919 = vmul.f32 %v1631, %v1631
        %v1920 = vmul.f32 %v1632, %v1632
        %v1921 = vmul.f32 %v1633, %v1633
        %v1922 = vmul.f32 %v1634, %v1634
        %v1923 = vmul.f32 %v1635, %v1635
        %v1924 = vmul.f32 %v1636, %v1636
        %v1925 = vmul.f32 %v1637, %v1637
        %v1926 = vmul.f32 %v1638, %v1638
        %v1927 = vmul.f32 %v1639, %v1639
        %v1928 = vmul.f32 %v1640, %v1640
        %v1929 = vmul.f32 %v1641, %v1641
        %v1930 = vmul.f32 %v1642, %v1642
        %v1931 = vmul.f32 %v1643, %v1643
        %v1932 = vmul.f32 %v1644, %v1644
        %v1933 = vmul.f32 %v1645, %v1645
        %v1934 = vmul.f32 %v1646, %v1646
        %v1935 = vmul.f32 %v1647, %v1647
        %v1936 = vmul.f32 %v1648, %v1648
        %v1937 = vmul.f32 %v1649, %v1649
        %v1938 = vmul.f32 %v1650, %v1650
        %v1939 = vmul.f32 %v1651, %v1651
        %v1940 = vmul.f32 %v1652, %v1652
        %v1941 = vmul.f32 %v1653, %v1653
        %v1942 = vmul.f32 %v1654, %v1654
        %v1943 = vmul.f32 %v1655, %v1655
        %v1944 = vmul.f32 %v1656, %v1656
        %v1945 = vmul.f32 %v1657, %v1657
        %v1946 = vmul.f32 %v1658, %v1658
        %v1947 = vmul.f32 %v1659, %v1659
        %v1948 = vmul.f32 %v1660, %v1660
        %v1949 = vmul.f32 %v1661, %v1661
        %v1950 = vmul.f32 %v1662, %v1662
        %v1951 = vmul.f32 %v1663, %v1663
        %v1952 = vmul.f32 %v1664, %v1664
        %v1953 = vmul.f32 %v1665, %v1665
        %v1954 = vmul.f32 %v1666, %v1666
        %v1955 = vmul.f32 %v1667, %v1667
        %v1956 = vmul.f32 %v1668, %v1668
        %v1957 = vmul.f32 %v1669, %v1669
        %v1958 = vmul.f32 %v1670, %v1670
        %v1959 = vmul.f32 %v1671, %v1671
        %v1960 = vmul.f32 %v1672, %v1672
        %v1961 = vmul.f32 %v1673, %v1673
        %v1962 = vmul.f32 %v1674, %v1674
        %v1963 = vmul.f32 %v1675, %v1675
        %v1964 = vmul.f32 %v1676, %v1676
        %v1965 = vmul.f32 %v1677, %v1677
        %v1966 = vmul.f32 %v1678, %v1678
        %v1967 = vmul.f32 %v1679, %v1679
        %v1968 = vmul.f32 %v1680, %v1680
        %v1969 = vmul.f32 %v1681, %v1681
        %v1970 = vmul.f32 %v1682, %v1682
        %v1971 = vmul.f32 %v1683, %v1683
        %v1972 = vmul.f32 %v1684, %v1684
        %v1973 = vmul.f32 %v1685, %v1685
        %v1974 = vmul.f32 %v1686, %v1686
        %v1975 = vmul.f32 %v1687, %v1687
        %v1976 = vmul.f32 %v1688, %v1688
        %v1977 = vmul.f32 %v1689, %v1689
        %v1978 = vmul.f32 %v1690, %v1690
        %v1979 = vmul.f32 %v1691, %v1691
        %v1980 = vmul.f32 %v1692, %v1692
        %v1981 = vmul.f32 %v1693, %v1693
        %v1982 = vmul.f32 %v1694, %v1694
        %v1983 = vmul.f32 %v1695, %v1695
        %v1984 = vmul.f32 %v1696, %v1696
        %v1985 = vmul.f32 %v1697, %v1697
        %v1986 = vmul.f32 %v1698, %v1698
        %v1987 = vmul.f32 %v1699, %v1699
        %v1988 = vmul.f32 %v1700, %v1700
        %v1989 = vmul.f32 %v1701, %v1701
        %v1990 = vmul.f32 %v1702, %v1702
        %v1991 = vmul.f32 %v1703, %v1703
        %v1992 = vmul.f32 %v1704, %v1704
        %v1993 = vmul.f32 %v1705, %v1705
        %v1994 = vmul.f32 %v1706, %v1706
        %v1995 = vmul.f32 %v1707, %v1707
        %v1996 = vmul.f32 %v1708, %v1708
        %v1997 = vmul.f32 %v1709, %v1709
        %v1998 = vmul.f32 %v1710, %v1710
        %v1999 = vmul.f32 %v1711, %v1711
        %v2000 = vmul.f32 %v1712, %v1712
        %v2001 = vmul.f32 %v1713, %v1713
        %v2002 = vmul.f32 %v1714, %v1714
        %v2003 = vmul.f32 %v1715, %v1715
        %v2004 = vmul.f32 %v1716, %v1716
        %v2005 = vmul.f32 %v1717, %v1717
        %v2006 = vmul.f32 %v1718, %v1718
        %v2007 = vmul.f32 %v1719, %v1719
        %v2008 = vmul.f32 %v1720, %v1720
        %v2009 = vmul.f32 %v1721, %v1721
        %v2010 = vmul.f32 %v1722, %v1722
        %v2011 = vmul.f32 %v1723, %v1723
        %v2012 = vmul.f32 %v1724, %v1724
        %v2013 = vmul.f32 %v1725, %v1725
        %v2014 = vmul.f32 %v1726, %v1726
        %v2015 = vmul.f32 %v1727, %v1727
        %v2016 = vmul.f32 %v1728, %v1728
        %v2017 = vadd.f32 %v1729, %v1730
        %v2018 = vadd.f32 %v2017, %v1731
        %v2019 = vadd.f32 %v2018, %v1732
        %v2020 = vadd.f32 %v2019, %v1733
        %v2021 = vadd.f32 %v2020, %v1734
        %v2022 = vadd.f32 %v2021, %v1735
        %v2023 = vadd.f32 %v2022, %v1736
        %v2024 = vadd.f32 %v2023, %v1737
        %v2025 = vadd.f32 %v2024, %v1738
        %v2026 = vadd.f32 %v2025, %v1739
        %v2027 = vadd.f32 %v2026, %v1740
        %v2028 = vadd.f32 %v2027, %v1741
        %v2029 = vadd.f32 %v2028, %v1742
        %v2030 = vadd.f32 %v2029, %v1743
        %v2031 = vadd.f32 %v2030, %v1744
        %v2032 = vadd.f32 %v2031, %v1745
        %v2033 = vadd.f32 %v2032, %v1746
        %v2034 = vadd.f32 %v2033, %v1747
        %v2035 = vadd.f32 %v2034, %v1748
        %v2036 = vadd.f32 %v2035, %v1749
        %v2037 = vadd.f32 %v2036, %v1750
        %v2038 = vadd.f32 %v2037, %v1751
        %v2039 = vadd.f32 %v2038, %v1752
        %v2040 = vadd.f32 %v2039, %v1753
        %v2041 = vadd.f32 %v2040, %v1754
        %v2042 = vadd.f32 %v2041, %v1755
        %v2043 = vadd.f32 %v2042, %v1756
        %v2044 = vadd.f32 %v2043, %v1757
        %v2045 = vadd.f32 %v2044, %v1758
        %v2046 = vadd.f32 %v2045, %v1759
        %v2047 = vadd.f32 %v2046, %v1760
        %v2048 = vadd.f32 %v2047, %v1761
        %v2049 = vadd.f32 %v2048, %v1762
        %v2050 = vadd.f32 %v2049, %v1763
        %v2051 = vadd.f32 %v2050, %v1764
        %v2052 = vadd.f32 %v2051, %v1765
        %v2053 = vadd.f32 %v2052, %v1766
        %v2054 = vadd.f32 %v2053, %v1767
        %v2055 = vadd.f32 %v2054, %v1768
        %v2056 = vadd.f32 %v2055, %v1769
        %v2057 = vadd.f32 %v2056, %v1770
        %v2058 = vadd.f32 %v2057, %v1771
        %v2059 = vadd.f32 %v2058, %v1772
        %v2060 = vadd.f32 %v2059, %v1773
        %v2061 = vadd.f32 %v2060, %v1774
        %v2062 = vadd.f32 %v2061, %v1775
        %v2063 = vadd.f32 %v2062, %v1776
        %v2064 = vadd.f32 %v2063, %v1777
        %v2065 = vadd.f32 %v2064, %v1778
        %v2066 = vadd.f32 %v2065, %v1779
        %v2067 = vadd.f32 %v2066, %v1780
        %v2068 = vadd.f32 %v2067, %v1781
        %v2069 = vadd.f32 %v2068, %v1782
        %v2070 = vadd.f32 %v2069, %v1783
        %v2071 = vadd.f32 %v2070, %v1784
        %v2072 = vadd.f32 %v2071, %v1785
        %v2073 = vadd.f32 %v2072, %v1786
        %v2074 = vadd.f32 %v2073, %v1787
        %v2075 = vadd.f32 %v2074, %v1788
        %v2076 = vadd.f32 %v2075, %v1789
        %v2077 = vadd.f32 %v2076, %v1790
        %v2078 = vadd.f32 %v2077, %v1791
        %v2079 = vadd.f32 %v2078, %v1792
        %v2080 = vadd.f32 %v2079, %v1793
        %v2081 = vadd.f32 %v2080, %v1794
        %v2082 = vadd.f32 %v2081, %v1795
        %v2083 = vadd.f32 %v2082, %v1796
        %v2084 = vadd.f32 %v2083, %v1797
        %v2085 = vadd.f32 %v2084, %v1798
        %v2086 = vadd.f32 %v2085, %v1799
        %v2087 = vadd.f32 %v2086, %v1800
        %v2088 = vadd.f32 %v2087, %v1801
        %v2089 = vadd.f32 %v2088, %v1802
        %v2090 = vadd.f32 %v2089, %v1803
        %v2091 = vadd.f32 %v2090, %v1804
        %v2092 = vadd.f32 %v2091, %v1805
        %v2093 = vadd.f32 %v2092, %v1806
        %v2094 = vadd.f32 %v2093, %v1807
        %v2095 = vadd.f32 %v2094, %v1808
        %v2096 = vadd.f32 %v2095, %v1809
        %v2097 = vadd.f32 %v2096, %v1810
        %v2098 = vadd.f32 %v2097, %v1811
        %v2099 = vadd.f32 %v2098, %v1812
        %v2100 = vadd.f32 %v2099, %v1813
        %v2101 = vadd.f32 %v2100, %v1814
        %v2102 = vadd.f32 %v2101, %v1815
        %v2103 = vadd.f32 %v2102, %v1816
        %v2104 = vadd.f32 %v2103, %v1817
        %v2105 = vadd.f32 %v2104, %v1818
        %v2106 = vadd.f32 %v2105, %v1819
        %v2107 = vadd.f32 %v2106, %v1820
        %v2108 = vadd.f32 %v2107, %v1821
        %v2109 = vadd.f32 %v2108, %v1822
        %v2110 = vadd.f32 %v2109, %v1823
        %v2111 = vadd.f32 %v2110, %v1824
        %v2112 = vadd.f32 %v2111, %v1825
        %v2113 = vadd.f32 %v2112, %v1826
        %v2114 = vadd.f32 %v2113, %v1827
        %v2115 = vadd.f32 %v2114, %v1828
        %v2116 = vadd.f32 %v2115, %v1829
        %v2117 = vadd.f32 %v2116, %v1830
        %v2118 = vadd.f32 %v2117, %v1831
        %v2119 = vadd.f32 %v2118, %v1832
        %v2120 = vadd.f32 %v2119, %v1833
        %v2121 = vadd.f32 %v2120, %v1834
        %v2122 = vadd.f32 %v2121, %v1835
        %v2123 = vadd.f32 %v2122, %v1836
        %v2124 = vadd.f32 %v2123, %v1837
        %v2125 = vadd.f32 %v2124, %v1838
        %v2126 = vadd.f32 %v2125, %v1839
        %v2127 = vadd.f32 %v2126, %v1840
        %v2128 = vadd.f32 %v2127, %v1841
        %v2129 = vadd.f32 %v2128, %v1842
        %v2130 = vadd.f32 %v2129, %v1843
        %v2131 = vadd.f32 %v2130, %v1844
        %v2132 = vadd.f32 %v2131, %v1845
        %v2133 = vadd.f32 %v2132, %v1846
        %v2134 = vadd.f32 %v2133, %v1847
        %v2135 = vadd.f32 %v2134, %v1848
        %v2136 = vadd.f32 %v2135, %v1849
        %v2137 = vadd.f32 %v2136, %v1850
        %v2138 = vadd.f32 %v2137, %v1851
        %v2139 = vadd.f32 %v2138, %v1852
        %v2140 = vadd.f32 %v2139, %v1853
        %v2141 = vadd.f32 %v2140, %v1854
        %v2142 = vadd.f32 %v2141, %v1855
        %v2143 = vadd.f32 %v2142, %v1856
        %v2144 = vadd.f32 %v2143, %v1857
        %v2145 = vadd.f32 %v2144, %v1858
        %v2146 = vadd.f32 %v2145, %v1859
        %v2147 = vadd.f32 %v2146, %v1860
        %v2148 = vadd.f32 %v2147, %v1861
        %v2149 = vadd.f32 %v2148, %v1862
        %v2150 = vadd.f32 %v2149, %v1863
        %v2151 = vadd.f32 %v2150, %v1864
        %v2152 = vadd.f32 %v2151, %v1865
        %v2153 = vadd.f32 %v2152, %v1866
        %v2154 = vadd.f32 %v2153, %v1867
        %v2155 = vadd.f32 %v2154, %v1868
        %v2156 = vadd.f32 %v2155, %v1869
        %v2157 = vadd.f32 %v2156, %v1870
        %v2158 = vadd.f32 %v2157, %v1871
        %v2159 = vadd.f32 %v2158, %v1872
        %v2160 = vadd.f32 %v2159, %v1873
        %v2161 = vadd.f32 %v2160, %v1874
        %v2162 = vadd.f32 %v2161, %v1875
        %v2163 = vadd.f32 %v2162, %v1876
        %v2164 = vadd.f32 %v2163, %v1877
        %v2165 = vadd.f32 %v2164, %v1878
        %v2166 = vadd.f32 %v2165, %v1879
        %v2167 = vadd.f32 %v2166, %v1880
        %v2168 = vadd.f32 %v2167, %v1881
        %v2169 = vadd.f32 %v2168, %v1882
        %v2170 = vadd.f32 %v2169, %v1883
        %v2171 = vadd.f32 %v2170, %v1884
        %v2172 = vadd.f32 %v2171, %v1885
        %v2173 = vadd.f32 %v2172, %v1886
        %v2174 = vadd.f32 %v2173, %v1887
        %v2175 = vadd.f32 %v2174, %v1888
        %v2176 = vadd.f32 %v2175, %v1889
        %v2177 = vadd.f32 %v2176, %v1890
        %v2178 = vadd.f32 %v2177, %v1891
        %v2179 = vadd.f32 %v2178, %v1892
        %v2180 = vadd.f32 %v2179, %v1893
        %v2181 = vadd.f32 %v2180, %v1894
        %v2182 = vadd.f32 %v2181, %v1895
        %v2183 = vadd.f32 %v2182, %v1896
        %v2184 = vadd.f32 %v2183, %v1897
        %v2185 = vadd.f32 %v2184, %v1898
        %v2186 = vadd.f32 %v2185, %v1899
        %v2187 = vadd.f32 %v2186, %v1900
        %v2188 = vadd.f32 %v2187, %v1901
        %v2189 = vadd.f32 %v2188, %v1902
        %v2190 = vadd.f32 %v2189, %v1903
        %v2191 = vadd.f32 %v2190, %v1904
        %v2192 = vadd.f32 %v2191, %v1905
        %v2193 = vadd.f32 %v2192, %v1906
        %v2194 = vadd.f32 %v2193, %v1907
        %v2195 = vadd.f32 %v2194, %v1908
        %v2196 = vadd.f32 %v2195, %v1909
        %v2197 = vadd.f32 %v2196, %v1910
        %v2198 = vadd.f32 %v2197, %v1911
        %v2199 = vadd.f32 %v2198, %v1912
        %v2200 = vadd.f32 %v2199, %v1913
        %v2201 = vadd.f32 %v2200, %v1914
        %v2202 = vadd.f32 %v2201, %v1915
        %v2203 = vadd.f32 %v2202, %v1916
        %v2204 = vadd.f32 %v2203, %v1917
        %v2205 = vadd.f32 %v2204, %v1918
        %v2206 = vadd.f32 %v2205, %v1919
        %v2207 = vadd.f32 %v2206, %v1920
        %v2208 = vadd.f32 %v2207, %v1921
        %v2209 = vadd.f32 %v2208, %v1922
        %v2210 = vadd.f32 %v2209, %v1923
        %v2211 = vadd.f32 %v2210, %v1924
        %v2212 = vadd.f32 %v2211, %v1925
        %v2213 = vadd.f32 %v2212, %v1926
        %v2214 = vadd.f32 %v2213, %v1927
        %v2215 = vadd.f32 %v2214, %v1928
        %v2216 = vadd.f32 %v2215, %v1929
        %v2217 = vadd.f32 %v2216, %v1930
        %v2218 = vadd.f32 %v2217, %v1931
        %v2219 = vadd.f32 %v2218, %v1932
        %v2220 = vadd.f32 %v2219, %v1933
        %v2221 = vadd.f32 %v2220, %v1934
        %v2222 = vadd.f32 %v2221, %v1935
        %v2223 = vadd.f32 %v2222, %v1936
        %v2224 = vadd.f32 %v2223, %v1937
        %v2225 = vadd.f32 %v2224, %v1938
        %v2226 = vadd.f32 %v2225, %v1939
        %v2227 = vadd.f32 %v2226, %v1940
        %v2228 = vadd.f32 %v2227, %v1941
        %v2229 = vadd.f32 %v2228, %v1942
        %v2230 = vadd.f32 %v2229, %v1943
        %v2231 = vadd.f32 %v2230, %v1944
        %v2232 = vadd.f32 %v2231, %v1945
        %v2233 = vadd.f32 %v2232, %v1946
        %v2234 = vadd.f32 %v2233, %v1947
        %v2235 = vadd.f32 %v2234, %v1948
        %v2236 = vadd.f32 %v2235, %v1949
        %v2237 = vadd.f32 %v2236, %v1950
        %v2238 = vadd.f32 %v2237, %v1951
        %v2239 = vadd.f32 %v2238, %v1952
        %v2240 = vadd.f32 %v2239, %v1953
        %v2241 = vadd.f32 %v2240, %v1954
        %v2242 = vadd.f32 %v2241, %v1955
        %v2243 = vadd.f32 %v2242, %v1956
        %v2244 = vadd.f32 %v2243, %v1957
        %v2245 = vadd.f32 %v2244, %v1958
        %v2246 = vadd.f32 %v2245, %v1959
        %v2247 = vadd.f32 %v2246, %v1960
        %v2248 = vadd.f32 %v2247, %v1961
        %v2249 = vadd.f32 %v2248, %v1962
        %v2250 = vadd.f32 %v2249, %v1963
        %v2251 = vadd.f32 %v2250, %v1964
        %v2252 = vadd.f32 %v2251, %v1965
        %v2253 = vadd.f32 %v2252, %v1966
        %v2254 = vadd.f32 %v2253, %v1967
        %v2255 = vadd.f32 %v2254, %v1968
        %v2256 = vadd.f32 %v2255, %v1969
        %v2257 = vadd.f32 %v2256, %v1970
        %v2258 = vadd.f32 %v2257, %v1971
        %v2259 = vadd.f32 %v2258, %v1972
        %v2260 = vadd.f32 %v2259, %v1973
        %v2261 = vadd.f32 %v2260, %v1974
        %v2262 = vadd.f32 %v2261, %v1975
        %v2263 = vadd.f32 %v2262, %v1976
        %v2264 = vadd.f32 %v2263, %v1977
        %v2265 = vadd.f32 %v2264, %v1978
        %v2266 = vadd.f32 %v2265, %v1979
        %v2267 = vadd.f32 %v2266, %v1980
        %v2268 = vadd.f32 %v2267, %v1981
        %v2269 = vadd.f32 %v2268, %v1982
        %v2270 = vadd.f32 %v2269, %v1983
        %v2271 = vadd.f32 %v2270, %v1984
        %v2272 = vadd.f32 %v2271, %v1985
        %v2273 = vadd.f32 %v2272, %v1986
        %v2274 = vadd.f32 %v2273, %v1987
        %v2275 = vadd.f32 %v2274, %v1988
        %v2276 = vadd.f32 %v2275, %v1989
        %v2277 = vadd.f32 %v2276, %v1990
        %v2278 = vadd.f32 %v2277, %v1991
        %v2279 = vadd.f32 %v2278, %v1992
        %v2280 = vadd.f32 %v2279, %v1993
        %v2281 = vadd.f32 %v2280, %v1994
        %v2282 = vadd.f32 %v2281, %v1995
        %v2283 = vadd.f32 %v2282, %v1996
        %v2284 = vadd.f32 %v2283, %v1997
        %v2285 = vadd.f32 %v2284, %v1998
        %v2286 = vadd.f32 %v2285, %v1999
        %v2287 = vadd.f32 %v2286, %v2000
        %v2288 = vadd.f32 %v2287, %v2001
        %v2289 = vadd.f32 %v2288, %v2002
        %v2290 = vadd.f32 %v2289, %v2003
        %v2291 = vadd.f32 %v2290, %v2004
        %v2292 = vadd.f32 %v2291, %v2005
        %v2293 = vadd.f32 %v2292, %v2006
        %v2294 = vadd.f32 %v2293, %v2007
        %v2295 = vadd.f32 %v2294, %v2008
        %v2296 = vadd.f32 %v2295, %v2009
        %v2297 = vadd.f32 %v2296, %v2010
        %v2298 = vadd.f32 %v2297, %v2011
        %v2299 = vadd.f32 %v2298, %v2012
        %v2300 = vadd.f32 %v2299, %v2013
        %v2301 = vadd.f32 %v2300, %v2014
        %v2302 = vadd.f32 %v2301, %v2015
        %v2303 = vadd.f32 %v2302, %v2016
        %v2304 = vadd.f32 %v1440, %v2303
        %v2305 = vld [vmem:[%s497] sm:$0xff]
        %v2306 = vld [vmem:[%s497 + $0x8] sm:$0xff]
        %v2307 = vld [vmem:[%s497 + $0x10] sm:$0xff]
        %v2308 = vld [vmem:[%s497 + $0x18] sm:$0xff]
        %v2309 = vld [vmem:[%s497 + $0x20] sm:$0xff]
        %v2310 = vld [vmem:[%s497 + $0x28] sm:$0xff]
        %v2311 = vld [vmem:[%s497 + $0x30] sm:$0xff]
        %v2312 = vld [vmem:[%s497 + $0x38] sm:$0xff]
        %v2313 = vld [vmem:[%s497 + $0x40] sm:$0xff]
        %v2314 = vld [vmem:[%s497 + $0x48] sm:$0xff]
        %v2315 = vld [vmem:[%s497 + $0x50] sm:$0xff]
        %v2316 = vld [vmem:[%s497 + $0x58] sm:$0xff]
        %v2317 = vld [vmem:[%s497 + $0x60] sm:$0xff]
        %v2318 = vld [vmem:[%s497 + $0x68] sm:$0xff]
        %v2319 = vld [vmem:[%s497 + $0x70] sm:$0xff]
        %v2320 = vld [vmem:[%s497 + $0x78] sm:$0xff]
        %v2321 = vld [vmem:[%s497 + $0x80] sm:$0xff]
        %v2322 = vld [vmem:[%s497 + $0x88] sm:$0xff]
        %v2323 = vld [vmem:[%s497 + $0x90] sm:$0xff]
        %v2324 = vld [vmem:[%s497 + $0x98] sm:$0xff]
        %v2325 = vld [vmem:[%s497 + $0xa0] sm:$0xff]
        %v2326 = vld [vmem:[%s497 + $0xa8] sm:$0xff]
        %v2327 = vld [vmem:[%s497 + $0xb0] sm:$0xff]
        %v2328 = vld [vmem:[%s497 + $0xb8] sm:$0xff]
        %v2329 = vld [vmem:[%s497 + $0xc0] sm:$0xff]
        %v2330 = vld [vmem:[%s497 + $0xc8] sm:$0xff]
        %v2331 = vld [vmem:[%s497 + $0xd0] sm:$0xff]
        %v2332 = vld [vmem:[%s497 + $0xd8] sm:$0xff]
        %v2333 = vld [vmem:[%s497 + $0xe0] sm:$0xff]
        %v2334 = vld [vmem:[%s497 + $0xe8] sm:$0xff]
        %v2335 = vld [vmem:[%s497 + $0xf0] sm:$0xff]
        %v2336 = vld [vmem:[%s497 + $0xf8] sm:$0xff]
        %v2337 = vld [vmem:[%s497 + $0x100] sm:$0xff]
        %v2338 = vld [vmem:[%s497 + $0x108] sm:$0xff]
        %v2339 = vld [vmem:[%s497 + $0x110] sm:$0xff]
        %v2340 = vld [vmem:[%s497 + $0x118] sm:$0xff]
        %v2341 = vld [vmem:[%s497 + $0x120] sm:$0xff]
        %v2342 = vld [vmem:[%s497 + $0x128] sm:$0xff]
        %v2343 = vld [vmem:[%s497 + $0x130] sm:$0xff]
        %v2344 = vld [vmem:[%s497 + $0x138] sm:$0xff]
        %v2345 = vld [vmem:[%s497 + $0x140] sm:$0xff]
        %v2346 = vld [vmem:[%s497 + $0x148] sm:$0xff]
        %v2347 = vld [vmem:[%s497 + $0x150] sm:$0xff]
        %v2348 = vld [vmem:[%s497 + $0x158] sm:$0xff]
        %v2349 = vld [vmem:[%s497 + $0x160] sm:$0xff]
        %v2350 = vld [vmem:[%s497 + $0x168] sm:$0xff]
        %v2351 = vld [vmem:[%s497 + $0x170] sm:$0xff]
        %v2352 = vld [vmem:[%s497 + $0x178] sm:$0xff]
        %v2353 = vld [vmem:[%s497 + $0x180] sm:$0xff]
        %v2354 = vld [vmem:[%s497 + $0x188] sm:$0xff]
        %v2355 = vld [vmem:[%s497 + $0x190] sm:$0xff]
        %v2356 = vld [vmem:[%s497 + $0x198] sm:$0xff]
        %v2357 = vld [vmem:[%s497 + $0x1a0] sm:$0xff]
        %v2358 = vld [vmem:[%s497 + $0x1a8] sm:$0xff]
        %v2359 = vld [vmem:[%s497 + $0x1b0] sm:$0xff]
        %v2360 = vld [vmem:[%s497 + $0x1b8] sm:$0xff]
        %v2361 = vld [vmem:[%s497 + $0x1c0] sm:$0xff]
        %v2362 = vld [vmem:[%s497 + $0x1c8] sm:$0xff]
        %v2363 = vld [vmem:[%s497 + $0x1d0] sm:$0xff]
        %v2364 = vld [vmem:[%s497 + $0x1d8] sm:$0xff]
        %v2365 = vld [vmem:[%s497 + $0x1e0] sm:$0xff]
        %v2366 = vld [vmem:[%s497 + $0x1e8] sm:$0xff]
        %v2367 = vld [vmem:[%s497 + $0x1f0] sm:$0xff]
        %v2368 = vld [vmem:[%s497 + $0x1f8] sm:$0xff]
        %v2369 = vld [vmem:[%s497 + $0x200] sm:$0xff]
        %v2370 = vld [vmem:[%s497 + $0x208] sm:$0xff]
        %v2371 = vld [vmem:[%s497 + $0x210] sm:$0xff]
        %v2372 = vld [vmem:[%s497 + $0x218] sm:$0xff]
        %v2373 = vld [vmem:[%s497 + $0x220] sm:$0xff]
        %v2374 = vld [vmem:[%s497 + $0x228] sm:$0xff]
        %v2375 = vld [vmem:[%s497 + $0x230] sm:$0xff]
        %v2376 = vld [vmem:[%s497 + $0x238] sm:$0xff]
        %v2377 = vld [vmem:[%s497 + $0x240] sm:$0xff]
        %v2378 = vld [vmem:[%s497 + $0x248] sm:$0xff]
        %v2379 = vld [vmem:[%s497 + $0x250] sm:$0xff]
        %v2380 = vld [vmem:[%s497 + $0x258] sm:$0xff]
        %v2381 = vld [vmem:[%s497 + $0x260] sm:$0xff]
        %v2382 = vld [vmem:[%s497 + $0x268] sm:$0xff]
        %v2383 = vld [vmem:[%s497 + $0x270] sm:$0xff]
        %v2384 = vld [vmem:[%s497 + $0x278] sm:$0xff]
        %v2385 = vld [vmem:[%s497 + $0x280] sm:$0xff]
        %v2386 = vld [vmem:[%s497 + $0x288] sm:$0xff]
        %v2387 = vld [vmem:[%s497 + $0x290] sm:$0xff]
        %v2388 = vld [vmem:[%s497 + $0x298] sm:$0xff]
        %v2389 = vld [vmem:[%s497 + $0x2a0] sm:$0xff]
        %v2390 = vld [vmem:[%s497 + $0x2a8] sm:$0xff]
        %v2391 = vld [vmem:[%s497 + $0x2b0] sm:$0xff]
        %v2392 = vld [vmem:[%s497 + $0x2b8] sm:$0xff]
        %v2393 = vld [vmem:[%s497 + $0x2c0] sm:$0xff]
        %v2394 = vld [vmem:[%s497 + $0x2c8] sm:$0xff]
        %v2395 = vld [vmem:[%s497 + $0x2d0] sm:$0xff]
        %v2396 = vld [vmem:[%s497 + $0x2d8] sm:$0xff]
        %v2397 = vld [vmem:[%s497 + $0x2e0] sm:$0xff]
        %v2398 = vld [vmem:[%s497 + $0x2e8] sm:$0xff]
        %v2399 = vld [vmem:[%s497 + $0x2f0] sm:$0xff]
        %v2400 = vld [vmem:[%s497 + $0x2f8] sm:$0xff]
        %v2401 = vld [vmem:[%s497 + $0x300] sm:$0xff]
        %v2402 = vld [vmem:[%s497 + $0x308] sm:$0xff]
        %v2403 = vld [vmem:[%s497 + $0x310] sm:$0xff]
        %v2404 = vld [vmem:[%s497 + $0x318] sm:$0xff]
        %v2405 = vld [vmem:[%s497 + $0x320] sm:$0xff]
        %v2406 = vld [vmem:[%s497 + $0x328] sm:$0xff]
        %v2407 = vld [vmem:[%s497 + $0x330] sm:$0xff]
        %v2408 = vld [vmem:[%s497 + $0x338] sm:$0xff]
        %v2409 = vld [vmem:[%s497 + $0x340] sm:$0xff]
        %v2410 = vld [vmem:[%s497 + $0x348] sm:$0xff]
        %v2411 = vld [vmem:[%s497 + $0x350] sm:$0xff]
        %v2412 = vld [vmem:[%s497 + $0x358] sm:$0xff]
        %v2413 = vld [vmem:[%s497 + $0x360] sm:$0xff]
        %v2414 = vld [vmem:[%s497 + $0x368] sm:$0xff]
        %v2415 = vld [vmem:[%s497 + $0x370] sm:$0xff]
        %v2416 = vld [vmem:[%s497 + $0x378] sm:$0xff]
        %v2417 = vld [vmem:[%s497 + $0x380] sm:$0xff]
        %v2418 = vld [vmem:[%s497 + $0x388] sm:$0xff]
        %v2419 = vld [vmem:[%s497 + $0x390] sm:$0xff]
        %v2420 = vld [vmem:[%s497 + $0x398] sm:$0xff]
        %v2421 = vld [vmem:[%s497 + $0x3a0] sm:$0xff]
        %v2422 = vld [vmem:[%s497 + $0x3a8] sm:$0xff]
        %v2423 = vld [vmem:[%s497 + $0x3b0] sm:$0xff]
        %v2424 = vld [vmem:[%s497 + $0x3b8] sm:$0xff]
        %v2425 = vld [vmem:[%s497 + $0x3c0] sm:$0xff]
        %v2426 = vld [vmem:[%s497 + $0x3c8] sm:$0xff]
        %v2427 = vld [vmem:[%s497 + $0x3d0] sm:$0xff]
        %v2428 = vld [vmem:[%s497 + $0x3d8] sm:$0xff]
        %v2429 = vld [vmem:[%s497 + $0x3e0] sm:$0xff]
        %v2430 = vld [vmem:[%s497 + $0x3e8] sm:$0xff]
        %v2431 = vld [vmem:[%s497 + $0x3f0] sm:$0xff]
        %v2432 = vld [vmem:[%s497 + $0x3f8] sm:$0xff]
        %v2433 = vld [vmem:[%s497 + $0x400] sm:$0xff]
        %v2434 = vld [vmem:[%s497 + $0x408] sm:$0xff]
        %v2435 = vld [vmem:[%s497 + $0x410] sm:$0xff]
        %v2436 = vld [vmem:[%s497 + $0x418] sm:$0xff]
        %v2437 = vld [vmem:[%s497 + $0x420] sm:$0xff]
        %v2438 = vld [vmem:[%s497 + $0x428] sm:$0xff]
        %v2439 = vld [vmem:[%s497 + $0x430] sm:$0xff]
        %v2440 = vld [vmem:[%s497 + $0x438] sm:$0xff]
        %v2441 = vld [vmem:[%s497 + $0x440] sm:$0xff]
        %v2442 = vld [vmem:[%s497 + $0x448] sm:$0xff]
        %v2443 = vld [vmem:[%s497 + $0x450] sm:$0xff]
        %v2444 = vld [vmem:[%s497 + $0x458] sm:$0xff]
        %v2445 = vld [vmem:[%s497 + $0x460] sm:$0xff]
        %v2446 = vld [vmem:[%s497 + $0x468] sm:$0xff]
        %v2447 = vld [vmem:[%s497 + $0x470] sm:$0xff]
        %v2448 = vld [vmem:[%s497 + $0x478] sm:$0xff]
        %v2449 = vld [vmem:[%s497 + $0x480] sm:$0xff]
        %v2450 = vld [vmem:[%s497 + $0x488] sm:$0xff]
        %v2451 = vld [vmem:[%s497 + $0x490] sm:$0xff]
        %v2452 = vld [vmem:[%s497 + $0x498] sm:$0xff]
        %v2453 = vld [vmem:[%s497 + $0x4a0] sm:$0xff]
        %v2454 = vld [vmem:[%s497 + $0x4a8] sm:$0xff]
        %v2455 = vld [vmem:[%s497 + $0x4b0] sm:$0xff]
        %v2456 = vld [vmem:[%s497 + $0x4b8] sm:$0xff]
        %v2457 = vld [vmem:[%s497 + $0x4c0] sm:$0xff]
        %v2458 = vld [vmem:[%s497 + $0x4c8] sm:$0xff]
        %v2459 = vld [vmem:[%s497 + $0x4d0] sm:$0xff]
        %v2460 = vld [vmem:[%s497 + $0x4d8] sm:$0xff]
        %v2461 = vld [vmem:[%s497 + $0x4e0] sm:$0xff]
        %v2462 = vld [vmem:[%s497 + $0x4e8] sm:$0xff]
        %v2463 = vld [vmem:[%s497 + $0x4f0] sm:$0xff]
        %v2464 = vld [vmem:[%s497 + $0x4f8] sm:$0xff]
        %v2465 = vld [vmem:[%s497 + $0x500] sm:$0xff]
        %v2466 = vld [vmem:[%s497 + $0x508] sm:$0xff]
        %v2467 = vld [vmem:[%s497 + $0x510] sm:$0xff]
        %v2468 = vld [vmem:[%s497 + $0x518] sm:$0xff]
        %v2469 = vld [vmem:[%s497 + $0x520] sm:$0xff]
        %v2470 = vld [vmem:[%s497 + $0x528] sm:$0xff]
        %v2471 = vld [vmem:[%s497 + $0x530] sm:$0xff]
        %v2472 = vld [vmem:[%s497 + $0x538] sm:$0xff]
        %v2473 = vld [vmem:[%s497 + $0x540] sm:$0xff]
        %v2474 = vld [vmem:[%s497 + $0x548] sm:$0xff]
        %v2475 = vld [vmem:[%s497 + $0x550] sm:$0xff]
        %v2476 = vld [vmem:[%s497 + $0x558] sm:$0xff]
        %v2477 = vld [vmem:[%s497 + $0x560] sm:$0xff]
        %v2478 = vld [vmem:[%s497 + $0x568] sm:$0xff]
        %v2479 = vld [vmem:[%s497 + $0x570] sm:$0xff]
        %v2480 = vld [vmem:[%s497 + $0x578] sm:$0xff]
        %v2481 = vld [vmem:[%s497 + $0x580] sm:$0xff]
        %v2482 = vld [vmem:[%s497 + $0x588] sm:$0xff]
        %v2483 = vld [vmem:[%s497 + $0x590] sm:$0xff]
        %v2484 = vld [vmem:[%s497 + $0x598] sm:$0xff]
        %v2485 = vld [vmem:[%s497 + $0x5a0] sm:$0xff]
        %v2486 = vld [vmem:[%s497 + $0x5a8] sm:$0xff]
        %v2487 = vld [vmem:[%s497 + $0x5b0] sm:$0xff]
        %v2488 = vld [vmem:[%s497 + $0x5b8] sm:$0xff]
        %v2489 = vld [vmem:[%s497 + $0x5c0] sm:$0xff]
        %v2490 = vld [vmem:[%s497 + $0x5c8] sm:$0xff]
        %v2491 = vld [vmem:[%s497 + $0x5d0] sm:$0xff]
        %v2492 = vld [vmem:[%s497 + $0x5d8] sm:$0xff]
        %v2493 = vld [vmem:[%s497 + $0x5e0] sm:$0xff]
        %v2494 = vld [vmem:[%s497 + $0x5e8] sm:$0xff]
        %v2495 = vld [vmem:[%s497 + $0x5f0] sm:$0xff]
        %v2496 = vld [vmem:[%s497 + $0x5f8] sm:$0xff]
        %v2497 = vld [vmem:[%s497 + $0x600] sm:$0xff]
        %v2498 = vld [vmem:[%s497 + $0x608] sm:$0xff]
        %v2499 = vld [vmem:[%s497 + $0x610] sm:$0xff]
        %v2500 = vld [vmem:[%s497 + $0x618] sm:$0xff]
        %v2501 = vld [vmem:[%s497 + $0x620] sm:$0xff]
        %v2502 = vld [vmem:[%s497 + $0x628] sm:$0xff]
        %v2503 = vld [vmem:[%s497 + $0x630] sm:$0xff]
        %v2504 = vld [vmem:[%s497 + $0x638] sm:$0xff]
        %v2505 = vld [vmem:[%s497 + $0x640] sm:$0xff]
        %v2506 = vld [vmem:[%s497 + $0x648] sm:$0xff]
        %v2507 = vld [vmem:[%s497 + $0x650] sm:$0xff]
        %v2508 = vld [vmem:[%s497 + $0x658] sm:$0xff]
        %v2509 = vld [vmem:[%s497 + $0x660] sm:$0xff]
        %v2510 = vld [vmem:[%s497 + $0x668] sm:$0xff]
        %v2511 = vld [vmem:[%s497 + $0x670] sm:$0xff]
        %v2512 = vld [vmem:[%s497 + $0x678] sm:$0xff]
        %v2513 = vld [vmem:[%s497 + $0x680] sm:$0xff]
        %v2514 = vld [vmem:[%s497 + $0x688] sm:$0xff]
        %v2515 = vld [vmem:[%s497 + $0x690] sm:$0xff]
        %v2516 = vld [vmem:[%s497 + $0x698] sm:$0xff]
        %v2517 = vld [vmem:[%s497 + $0x6a0] sm:$0xff]
        %v2518 = vld [vmem:[%s497 + $0x6a8] sm:$0xff]
        %v2519 = vld [vmem:[%s497 + $0x6b0] sm:$0xff]
        %v2520 = vld [vmem:[%s497 + $0x6b8] sm:$0xff]
        %v2521 = vld [vmem:[%s497 + $0x6c0] sm:$0xff]
        %v2522 = vld [vmem:[%s497 + $0x6c8] sm:$0xff]
        %v2523 = vld [vmem:[%s497 + $0x6d0] sm:$0xff]
        %v2524 = vld [vmem:[%s497 + $0x6d8] sm:$0xff]
        %v2525 = vld [vmem:[%s497 + $0x6e0] sm:$0xff]
        %v2526 = vld [vmem:[%s497 + $0x6e8] sm:$0xff]
        %v2527 = vld [vmem:[%s497 + $0x6f0] sm:$0xff]
        %v2528 = vld [vmem:[%s497 + $0x6f8] sm:$0xff]
        %v2529 = vld [vmem:[%s497 + $0x700] sm:$0xff]
        %v2530 = vld [vmem:[%s497 + $0x708] sm:$0xff]
        %v2531 = vld [vmem:[%s497 + $0x710] sm:$0xff]
        %v2532 = vld [vmem:[%s497 + $0x718] sm:$0xff]
        %v2533 = vld [vmem:[%s497 + $0x720] sm:$0xff]
        %v2534 = vld [vmem:[%s497 + $0x728] sm:$0xff]
        %v2535 = vld [vmem:[%s497 + $0x730] sm:$0xff]
        %v2536 = vld [vmem:[%s497 + $0x738] sm:$0xff]
        %v2537 = vld [vmem:[%s497 + $0x740] sm:$0xff]
        %v2538 = vld [vmem:[%s497 + $0x748] sm:$0xff]
        %v2539 = vld [vmem:[%s497 + $0x750] sm:$0xff]
        %v2540 = vld [vmem:[%s497 + $0x758] sm:$0xff]
        %v2541 = vld [vmem:[%s497 + $0x760] sm:$0xff]
        %v2542 = vld [vmem:[%s497 + $0x768] sm:$0xff]
        %v2543 = vld [vmem:[%s497 + $0x770] sm:$0xff]
        %v2544 = vld [vmem:[%s497 + $0x778] sm:$0xff]
        %v2545 = vld [vmem:[%s497 + $0x780] sm:$0xff]
        %v2546 = vld [vmem:[%s497 + $0x788] sm:$0xff]
        %v2547 = vld [vmem:[%s497 + $0x790] sm:$0xff]
        %v2548 = vld [vmem:[%s497 + $0x798] sm:$0xff]
        %v2549 = vld [vmem:[%s497 + $0x7a0] sm:$0xff]
        %v2550 = vld [vmem:[%s497 + $0x7a8] sm:$0xff]
        %v2551 = vld [vmem:[%s497 + $0x7b0] sm:$0xff]
        %v2552 = vld [vmem:[%s497 + $0x7b8] sm:$0xff]
        %v2553 = vld [vmem:[%s497 + $0x7c0] sm:$0xff]
        %v2554 = vld [vmem:[%s497 + $0x7c8] sm:$0xff]
        %v2555 = vld [vmem:[%s497 + $0x7d0] sm:$0xff]
        %v2556 = vld [vmem:[%s497 + $0x7d8] sm:$0xff]
        %v2557 = vld [vmem:[%s497 + $0x7e0] sm:$0xff]
        %v2558 = vld [vmem:[%s497 + $0x7e8] sm:$0xff]
        %v2559 = vld [vmem:[%s497 + $0x7f0] sm:$0xff]
        %v2560 = vld [vmem:[%s497 + $0x7f8] sm:$0xff]
        %v2561 = vld [vmem:[%s497 + $0x800] sm:$0xff]
        %v2562 = vld [vmem:[%s497 + $0x808] sm:$0xff]
        %v2563 = vld [vmem:[%s497 + $0x810] sm:$0xff]
        %v2564 = vld [vmem:[%s497 + $0x818] sm:$0xff]
        %v2565 = vld [vmem:[%s497 + $0x820] sm:$0xff]
        %v2566 = vld [vmem:[%s497 + $0x828] sm:$0xff]
        %v2567 = vld [vmem:[%s497 + $0x830] sm:$0xff]
        %v2568 = vld [vmem:[%s497 + $0x838] sm:$0xff]
        %v2569 = vld [vmem:[%s497 + $0x840] sm:$0xff]
        %v2570 = vld [vmem:[%s497 + $0x848] sm:$0xff]
        %v2571 = vld [vmem:[%s497 + $0x850] sm:$0xff]
        %v2572 = vld [vmem:[%s497 + $0x858] sm:$0xff]
        %v2573 = vld [vmem:[%s497 + $0x860] sm:$0xff]
        %v2574 = vld [vmem:[%s497 + $0x868] sm:$0xff]
        %v2575 = vld [vmem:[%s497 + $0x870] sm:$0xff]
        %v2576 = vld [vmem:[%s497 + $0x878] sm:$0xff]
        %v2577 = vld [vmem:[%s497 + $0x880] sm:$0xff]
        %v2578 = vld [vmem:[%s497 + $0x888] sm:$0xff]
        %v2579 = vld [vmem:[%s497 + $0x890] sm:$0xff]
        %v2580 = vld [vmem:[%s497 + $0x898] sm:$0xff]
        %v2581 = vld [vmem:[%s497 + $0x8a0] sm:$0xff]
        %v2582 = vld [vmem:[%s497 + $0x8a8] sm:$0xff]
        %v2583 = vld [vmem:[%s497 + $0x8b0] sm:$0xff]
        %v2584 = vld [vmem:[%s497 + $0x8b8] sm:$0xff]
        %v2585 = vld [vmem:[%s497 + $0x8c0] sm:$0xff]
        %v2586 = vld [vmem:[%s497 + $0x8c8] sm:$0xff]
        %v2587 = vld [vmem:[%s497 + $0x8d0] sm:$0xff]
        %v2588 = vld [vmem:[%s497 + $0x8d8] sm:$0xff]
        %v2589 = vld [vmem:[%s497 + $0x8e0] sm:$0xff]
        %v2590 = vld [vmem:[%s497 + $0x8e8] sm:$0xff]
        %v2591 = vld [vmem:[%s497 + $0x8f0] sm:$0xff]
        %v2592 = vld [vmem:[%s497 + $0x8f8] sm:$0xff]
        %v2593 = vmul.f32 %v2305, %v2305
        %v2594 = vmul.f32 %v2306, %v2306
        %v2595 = vmul.f32 %v2307, %v2307
        %v2596 = vmul.f32 %v2308, %v2308
        %v2597 = vmul.f32 %v2309, %v2309
        %v2598 = vmul.f32 %v2310, %v2310
        %v2599 = vmul.f32 %v2311, %v2311
        %v2600 = vmul.f32 %v2312, %v2312
        %v2601 = vmul.f32 %v2313, %v2313
        %v2602 = vmul.f32 %v2314, %v2314
        %v2603 = vmul.f32 %v2315, %v2315
        %v2604 = vmul.f32 %v2316, %v2316
        %v2605 = vmul.f32 %v2317, %v2317
        %v2606 = vmul.f32 %v2318, %v2318
        %v2607 = vmul.f32 %v2319, %v2319
        %v2608 = vmul.f32 %v2320, %v2320
        %v2609 = vmul.f32 %v2321, %v2321
        %v2610 = vmul.f32 %v2322, %v2322
        %v2611 = vmul.f32 %v2323, %v2323
        %v2612 = vmul.f32 %v2324, %v2324
        %v2613 = vmul.f32 %v2325, %v2325
        %v2614 = vmul.f32 %v2326, %v2326
        %v2615 = vmul.f32 %v2327, %v2327
        %v2616 = vmul.f32 %v2328, %v2328
        %v2617 = vmul.f32 %v2329, %v2329
        %v2618 = vmul.f32 %v2330, %v2330
        %v2619 = vmul.f32 %v2331, %v2331
        %v2620 = vmul.f32 %v2332, %v2332
        %v2621 = vmul.f32 %v2333, %v2333
        %v2622 = vmul.f32 %v2334, %v2334
        %v2623 = vmul.f32 %v2335, %v2335
        %v2624 = vmul.f32 %v2336, %v2336
        %v2625 = vmul.f32 %v2337, %v2337
        %v2626 = vmul.f32 %v2338, %v2338
        %v2627 = vmul.f32 %v2339, %v2339
        %v2628 = vmul.f32 %v2340, %v2340
        %v2629 = vmul.f32 %v2341, %v2341
        %v2630 = vmul.f32 %v2342, %v2342
        %v2631 = vmul.f32 %v2343, %v2343
        %v2632 = vmul.f32 %v2344, %v2344
        %v2633 = vmul.f32 %v2345, %v2345
        %v2634 = vmul.f32 %v2346, %v2346
        %v2635 = vmul.f32 %v2347, %v2347
        %v2636 = vmul.f32 %v2348, %v2348
        %v2637 = vmul.f32 %v2349, %v2349
        %v2638 = vmul.f32 %v2350, %v2350
        %v2639 = vmul.f32 %v2351, %v2351
        %v2640 = vmul.f32 %v2352, %v2352
        %v2641 = vmul.f32 %v2353, %v2353
        %v2642 = vmul.f32 %v2354, %v2354
        %v2643 = vmul.f32 %v2355, %v2355
        %v2644 = vmul.f32 %v2356, %v2356
        %v2645 = vmul.f32 %v2357, %v2357
        %v2646 = vmul.f32 %v2358, %v2358
        %v2647 = vmul.f32 %v2359, %v2359
        %v2648 = vmul.f32 %v2360, %v2360
        %v2649 = vmul.f32 %v2361, %v2361
        %v2650 = vmul.f32 %v2362, %v2362
        %v2651 = vmul.f32 %v2363, %v2363
        %v2652 = vmul.f32 %v2364, %v2364
        %v2653 = vmul.f32 %v2365, %v2365
        %v2654 = vmul.f32 %v2366, %v2366
        %v2655 = vmul.f32 %v2367, %v2367
        %v2656 = vmul.f32 %v2368, %v2368
        %v2657 = vmul.f32 %v2369, %v2369
        %v2658 = vmul.f32 %v2370, %v2370
        %v2659 = vmul.f32 %v2371, %v2371
        %v2660 = vmul.f32 %v2372, %v2372
        %v2661 = vmul.f32 %v2373, %v2373
        %v2662 = vmul.f32 %v2374, %v2374
        %v2663 = vmul.f32 %v2375, %v2375
        %v2664 = vmul.f32 %v2376, %v2376
        %v2665 = vmul.f32 %v2377, %v2377
        %v2666 = vmul.f32 %v2378, %v2378
        %v2667 = vmul.f32 %v2379, %v2379
        %v2668 = vmul.f32 %v2380, %v2380
        %v2669 = vmul.f32 %v2381, %v2381
        %v2670 = vmul.f32 %v2382, %v2382
        %v2671 = vmul.f32 %v2383, %v2383
        %v2672 = vmul.f32 %v2384, %v2384
        %v2673 = vmul.f32 %v2385, %v2385
        %v2674 = vmul.f32 %v2386, %v2386
        %v2675 = vmul.f32 %v2387, %v2387
        %v2676 = vmul.f32 %v2388, %v2388
        %v2677 = vmul.f32 %v2389, %v2389
        %v2678 = vmul.f32 %v2390, %v2390
        %v2679 = vmul.f32 %v2391, %v2391
        %v2680 = vmul.f32 %v2392, %v2392
        %v2681 = vmul.f32 %v2393, %v2393
        %v2682 = vmul.f32 %v2394, %v2394
        %v2683 = vmul.f32 %v2395, %v2395
        %v2684 = vmul.f32 %v2396, %v2396
        %v2685 = vmul.f32 %v2397, %v2397
        %v2686 = vmul.f32 %v2398, %v2398
        %v2687 = vmul.f32 %v2399, %v2399
        %v2688 = vmul.f32 %v2400, %v2400
        %v2689 = vmul.f32 %v2401, %v2401
        %v2690 = vmul.f32 %v2402, %v2402
        %v2691 = vmul.f32 %v2403, %v2403
        %v2692 = vmul.f32 %v2404, %v2404
        %v2693 = vmul.f32 %v2405, %v2405
        %v2694 = vmul.f32 %v2406, %v2406
        %v2695 = vmul.f32 %v2407, %v2407
        %v2696 = vmul.f32 %v2408, %v2408
        %v2697 = vmul.f32 %v2409, %v2409
        %v2698 = vmul.f32 %v2410, %v2410
        %v2699 = vmul.f32 %v2411, %v2411
        %v2700 = vmul.f32 %v2412, %v2412
        %v2701 = vmul.f32 %v2413, %v2413
        %v2702 = vmul.f32 %v2414, %v2414
        %v2703 = vmul.f32 %v2415, %v2415
        %v2704 = vmul.f32 %v2416, %v2416
        %v2705 = vmul.f32 %v2417, %v2417
        %v2706 = vmul.f32 %v2418, %v2418
        %v2707 = vmul.f32 %v2419, %v2419
        %v2708 = vmul.f32 %v2420, %v2420
        %v2709 = vmul.f32 %v2421, %v2421
        %v2710 = vmul.f32 %v2422, %v2422
        %v2711 = vmul.f32 %v2423, %v2423
        %v2712 = vmul.f32 %v2424, %v2424
        %v2713 = vmul.f32 %v2425, %v2425
        %v2714 = vmul.f32 %v2426, %v2426
        %v2715 = vmul.f32 %v2427, %v2427
        %v2716 = vmul.f32 %v2428, %v2428
        %v2717 = vmul.f32 %v2429, %v2429
        %v2718 = vmul.f32 %v2430, %v2430
        %v2719 = vmul.f32 %v2431, %v2431
        %v2720 = vmul.f32 %v2432, %v2432
        %v2721 = vmul.f32 %v2433, %v2433
        %v2722 = vmul.f32 %v2434, %v2434
        %v2723 = vmul.f32 %v2435, %v2435
        %v2724 = vmul.f32 %v2436, %v2436
        %v2725 = vmul.f32 %v2437, %v2437
        %v2726 = vmul.f32 %v2438, %v2438
        %v2727 = vmul.f32 %v2439, %v2439
        %v2728 = vmul.f32 %v2440, %v2440
        %v2729 = vmul.f32 %v2441, %v2441
        %v2730 = vmul.f32 %v2442, %v2442
        %v2731 = vmul.f32 %v2443, %v2443
        %v2732 = vmul.f32 %v2444, %v2444
        %v2733 = vmul.f32 %v2445, %v2445
        %v2734 = vmul.f32 %v2446, %v2446
        %v2735 = vmul.f32 %v2447, %v2447
        %v2736 = vmul.f32 %v2448, %v2448
        %v2737 = vmul.f32 %v2449, %v2449
        %v2738 = vmul.f32 %v2450, %v2450
        %v2739 = vmul.f32 %v2451, %v2451
        %v2740 = vmul.f32 %v2452, %v2452
        %v2741 = vmul.f32 %v2453, %v2453
        %v2742 = vmul.f32 %v2454, %v2454
        %v2743 = vmul.f32 %v2455, %v2455
        %v2744 = vmul.f32 %v2456, %v2456
        %v2745 = vmul.f32 %v2457, %v2457
        %v2746 = vmul.f32 %v2458, %v2458
        %v2747 = vmul.f32 %v2459, %v2459
        %v2748 = vmul.f32 %v2460, %v2460
        %v2749 = vmul.f32 %v2461, %v2461
        %v2750 = vmul.f32 %v2462, %v2462
        %v2751 = vmul.f32 %v2463, %v2463
        %v2752 = vmul.f32 %v2464, %v2464
        %v2753 = vmul.f32 %v2465, %v2465
        %v2754 = vmul.f32 %v2466, %v2466
        %v2755 = vmul.f32 %v2467, %v2467
        %v2756 = vmul.f32 %v2468, %v2468
        %v2757 = vmul.f32 %v2469, %v2469
        %v2758 = vmul.f32 %v2470, %v2470
        %v2759 = vmul.f32 %v2471, %v2471
        %v2760 = vmul.f32 %v2472, %v2472
        %v2761 = vmul.f32 %v2473, %v2473
        %v2762 = vmul.f32 %v2474, %v2474
        %v2763 = vmul.f32 %v2475, %v2475
        %v2764 = vmul.f32 %v2476, %v2476
        %v2765 = vmul.f32 %v2477, %v2477
        %v2766 = vmul.f32 %v2478, %v2478
        %v2767 = vmul.f32 %v2479, %v2479
        %v2768 = vmul.f32 %v2480, %v2480
        %v2769 = vmul.f32 %v2481, %v2481
        %v2770 = vmul.f32 %v2482, %v2482
        %v2771 = vmul.f32 %v2483, %v2483
        %v2772 = vmul.f32 %v2484, %v2484
        %v2773 = vmul.f32 %v2485, %v2485
        %v2774 = vmul.f32 %v2486, %v2486
        %v2775 = vmul.f32 %v2487, %v2487
        %v2776 = vmul.f32 %v2488, %v2488
        %v2777 = vmul.f32 %v2489, %v2489
        %v2778 = vmul.f32 %v2490, %v2490
        %v2779 = vmul.f32 %v2491, %v2491
        %v2780 = vmul.f32 %v2492, %v2492
        %v2781 = vmul.f32 %v2493, %v2493
        %v2782 = vmul.f32 %v2494, %v2494
        %v2783 = vmul.f32 %v2495, %v2495
        %v2784 = vmul.f32 %v2496, %v2496
        %v2785 = vmul.f32 %v2497, %v2497
        %v2786 = vmul.f32 %v2498, %v2498
        %v2787 = vmul.f32 %v2499, %v2499
        %v2788 = vmul.f32 %v2500, %v2500
        %v2789 = vmul.f32 %v2501, %v2501
        %v2790 = vmul.f32 %v2502, %v2502
        %v2791 = vmul.f32 %v2503, %v2503
        %v2792 = vmul.f32 %v2504, %v2504
        %v2793 = vmul.f32 %v2505, %v2505
        %v2794 = vmul.f32 %v2506, %v2506
        %v2795 = vmul.f32 %v2507, %v2507
        %v2796 = vmul.f32 %v2508, %v2508
        %v2797 = vmul.f32 %v2509, %v2509
        %v2798 = vmul.f32 %v2510, %v2510
        %v2799 = vmul.f32 %v2511, %v2511
        %v2800 = vmul.f32 %v2512, %v2512
        %v2801 = vmul.f32 %v2513, %v2513
        %v2802 = vmul.f32 %v2514, %v2514
        %v2803 = vmul.f32 %v2515, %v2515
        %v2804 = vmul.f32 %v2516, %v2516
        %v2805 = vmul.f32 %v2517, %v2517
        %v2806 = vmul.f32 %v2518, %v2518
        %v2807 = vmul.f32 %v2519, %v2519
        %v2808 = vmul.f32 %v2520, %v2520
        %v2809 = vmul.f32 %v2521, %v2521
        %v2810 = vmul.f32 %v2522, %v2522
        %v2811 = vmul.f32 %v2523, %v2523
        %v2812 = vmul.f32 %v2524, %v2524
        %v2813 = vmul.f32 %v2525, %v2525
        %v2814 = vmul.f32 %v2526, %v2526
        %v2815 = vmul.f32 %v2527, %v2527
        %v2816 = vmul.f32 %v2528, %v2528
        %v2817 = vmul.f32 %v2529, %v2529
        %v2818 = vmul.f32 %v2530, %v2530
        %v2819 = vmul.f32 %v2531, %v2531
        %v2820 = vmul.f32 %v2532, %v2532
        %v2821 = vmul.f32 %v2533, %v2533
        %v2822 = vmul.f32 %v2534, %v2534
        %v2823 = vmul.f32 %v2535, %v2535
        %v2824 = vmul.f32 %v2536, %v2536
        %v2825 = vmul.f32 %v2537, %v2537
        %v2826 = vmul.f32 %v2538, %v2538
        %v2827 = vmul.f32 %v2539, %v2539
        %v2828 = vmul.f32 %v2540, %v2540
        %v2829 = vmul.f32 %v2541, %v2541
        %v2830 = vmul.f32 %v2542, %v2542
        %v2831 = vmul.f32 %v2543, %v2543
        %v2832 = vmul.f32 %v2544, %v2544
        %v2833 = vmul.f32 %v2545, %v2545
        %v2834 = vmul.f32 %v2546, %v2546
        %v2835 = vmul.f32 %v2547, %v2547
        %v2836 = vmul.f32 %v2548, %v2548
        %v2837 = vmul.f32 %v2549, %v2549
        %v2838 = vmul.f32 %v2550, %v2550
        %v2839 = vmul.f32 %v2551, %v2551
        %v2840 = vmul.f32 %v2552, %v2552
        %v2841 = vmul.f32 %v2553, %v2553
        %v2842 = vmul.f32 %v2554, %v2554
        %v2843 = vmul.f32 %v2555, %v2555
        %v2844 = vmul.f32 %v2556, %v2556
        %v2845 = vmul.f32 %v2557, %v2557
        %v2846 = vmul.f32 %v2558, %v2558
        %v2847 = vmul.f32 %v2559, %v2559
        %v2848 = vmul.f32 %v2560, %v2560
        %v2849 = vmul.f32 %v2561, %v2561
        %v2850 = vmul.f32 %v2562, %v2562
        %v2851 = vmul.f32 %v2563, %v2563
        %v2852 = vmul.f32 %v2564, %v2564
        %v2853 = vmul.f32 %v2565, %v2565
        %v2854 = vmul.f32 %v2566, %v2566
        %v2855 = vmul.f32 %v2567, %v2567
        %v2856 = vmul.f32 %v2568, %v2568
        %v2857 = vmul.f32 %v2569, %v2569
        %v2858 = vmul.f32 %v2570, %v2570
        %v2859 = vmul.f32 %v2571, %v2571
        %v2860 = vmul.f32 %v2572, %v2572
        %v2861 = vmul.f32 %v2573, %v2573
        %v2862 = vmul.f32 %v2574, %v2574
        %v2863 = vmul.f32 %v2575, %v2575
        %v2864 = vmul.f32 %v2576, %v2576
        %v2865 = vmul.f32 %v2577, %v2577
        %v2866 = vmul.f32 %v2578, %v2578
        %v2867 = vmul.f32 %v2579, %v2579
        %v2868 = vmul.f32 %v2580, %v2580
        %v2869 = vmul.f32 %v2581, %v2581
        %v2870 = vmul.f32 %v2582, %v2582
        %v2871 = vmul.f32 %v2583, %v2583
        %v2872 = vmul.f32 %v2584, %v2584
        %v2873 = vmul.f32 %v2585, %v2585
        %v2874 = vmul.f32 %v2586, %v2586
        %v2875 = vmul.f32 %v2587, %v2587
        %v2876 = vmul.f32 %v2588, %v2588
        %v2877 = vmul.f32 %v2589, %v2589
        %v2878 = vmul.f32 %v2590, %v2590
        %v2879 = vmul.f32 %v2591, %v2591
        %v2880 = vmul.f32 %v2592, %v2592
        %v2881 = vadd.f32 %v2593, %v2594
        %v2882 = vadd.f32 %v2881, %v2595
        %v2883 = vadd.f32 %v2882, %v2596
        %v2884 = vadd.f32 %v2883, %v2597
        %v2885 = vadd.f32 %v2884, %v2598
        %v2886 = vadd.f32 %v2885, %v2599
        %v2887 = vadd.f32 %v2886, %v2600
        %v2888 = vadd.f32 %v2887, %v2601
        %v2889 = vadd.f32 %v2888, %v2602
        %v2890 = vadd.f32 %v2889, %v2603
        %v2891 = vadd.f32 %v2890, %v2604
        %v2892 = vadd.f32 %v2891, %v2605
        %v2893 = vadd.f32 %v2892, %v2606
        %v2894 = vadd.f32 %v2893, %v2607
        %v2895 = vadd.f32 %v2894, %v2608
        %v2896 = vadd.f32 %v2895, %v2609
        %v2897 = vadd.f32 %v2896, %v2610
        %v2898 = vadd.f32 %v2897, %v2611
        %v2899 = vadd.f32 %v2898, %v2612
        %v2900 = vadd.f32 %v2899, %v2613
        %v2901 = vadd.f32 %v2900, %v2614
        %v2902 = vadd.f32 %v2901, %v2615
        %v2903 = vadd.f32 %v2902, %v2616
        %v2904 = vadd.f32 %v2903, %v2617
        %v2905 = vadd.f32 %v2904, %v2618
        %v2906 = vadd.f32 %v2905, %v2619
        %v2907 = vadd.f32 %v2906, %v2620
        %v2908 = vadd.f32 %v2907, %v2621
        %v2909 = vadd.f32 %v2908, %v2622
        %v2910 = vadd.f32 %v2909, %v2623
        %v2911 = vadd.f32 %v2910, %v2624
        %v2912 = vadd.f32 %v2911, %v2625
        %v2913 = vadd.f32 %v2912, %v2626
        %v2914 = vadd.f32 %v2913, %v2627
        %v2915 = vadd.f32 %v2914, %v2628
        %v2916 = vadd.f32 %v2915, %v2629
        %v2917 = vadd.f32 %v2916, %v2630
        %v2918 = vadd.f32 %v2917, %v2631
        %v2919 = vadd.f32 %v2918, %v2632
        %v2920 = vadd.f32 %v2919, %v2633
        %v2921 = vadd.f32 %v2920, %v2634
        %v2922 = vadd.f32 %v2921, %v2635
        %v2923 = vadd.f32 %v2922, %v2636
        %v2924 = vadd.f32 %v2923, %v2637
        %v2925 = vadd.f32 %v2924, %v2638
        %v2926 = vadd.f32 %v2925, %v2639
        %v2927 = vadd.f32 %v2926, %v2640
        %v2928 = vadd.f32 %v2927, %v2641
        %v2929 = vadd.f32 %v2928, %v2642
        %v2930 = vadd.f32 %v2929, %v2643
        %v2931 = vadd.f32 %v2930, %v2644
        %v2932 = vadd.f32 %v2931, %v2645
        %v2933 = vadd.f32 %v2932, %v2646
        %v2934 = vadd.f32 %v2933, %v2647
        %v2935 = vadd.f32 %v2934, %v2648
        %v2936 = vadd.f32 %v2935, %v2649
        %v2937 = vadd.f32 %v2936, %v2650
        %v2938 = vadd.f32 %v2937, %v2651
        %v2939 = vadd.f32 %v2938, %v2652
        %v2940 = vadd.f32 %v2939, %v2653
        %v2941 = vadd.f32 %v2940, %v2654
        %v2942 = vadd.f32 %v2941, %v2655
        %v2943 = vadd.f32 %v2942, %v2656
        %v2944 = vadd.f32 %v2943, %v2657
        %v2945 = vadd.f32 %v2944, %v2658
        %v2946 = vadd.f32 %v2945, %v2659
        %v2947 = vadd.f32 %v2946, %v2660
        %v2948 = vadd.f32 %v2947, %v2661
        %v2949 = vadd.f32 %v2948, %v2662
        %v2950 = vadd.f32 %v2949, %v2663
        %v2951 = vadd.f32 %v2950, %v2664
        %v2952 = vadd.f32 %v2951, %v2665
        %v2953 = vadd.f32 %v2952, %v2666
        %v2954 = vadd.f32 %v2953, %v2667
        %v2955 = vadd.f32 %v2954, %v2668
        %v2956 = vadd.f32 %v2955, %v2669
        %v2957 = vadd.f32 %v2956, %v2670
        %v2958 = vadd.f32 %v2957, %v2671
        %v2959 = vadd.f32 %v2958, %v2672
        %v2960 = vadd.f32 %v2959, %v2673
        %v2961 = vadd.f32 %v2960, %v2674
        %v2962 = vadd.f32 %v2961, %v2675
        %v2963 = vadd.f32 %v2962, %v2676
        %v2964 = vadd.f32 %v2963, %v2677
        %v2965 = vadd.f32 %v2964, %v2678
        %v2966 = vadd.f32 %v2965, %v2679
        %v2967 = vadd.f32 %v2966, %v2680
        %v2968 = vadd.f32 %v2967, %v2681
        %v2969 = vadd.f32 %v2968, %v2682
        %v2970 = vadd.f32 %v2969, %v2683
        %v2971 = vadd.f32 %v2970, %v2684
        %v2972 = vadd.f32 %v2971, %v2685
        %v2973 = vadd.f32 %v2972, %v2686
        %v2974 = vadd.f32 %v2973, %v2687
        %v2975 = vadd.f32 %v2974, %v2688
        %v2976 = vadd.f32 %v2975, %v2689
        %v2977 = vadd.f32 %v2976, %v2690
        %v2978 = vadd.f32 %v2977, %v2691
        %v2979 = vadd.f32 %v2978, %v2692
        %v2980 = vadd.f32 %v2979, %v2693
        %v2981 = vadd.f32 %v2980, %v2694
        %v2982 = vadd.f32 %v2981, %v2695
        %v2983 = vadd.f32 %v2982, %v2696
        %v2984 = vadd.f32 %v2983, %v2697
        %v2985 = vadd.f32 %v2984, %v2698
        %v2986 = vadd.f32 %v2985, %v2699
        %v2987 = vadd.f32 %v2986, %v2700
        %v2988 = vadd.f32 %v2987, %v2701
        %v2989 = vadd.f32 %v2988, %v2702
        %v2990 = vadd.f32 %v2989, %v2703
        %v2991 = vadd.f32 %v2990, %v2704
        %v2992 = vadd.f32 %v2991, %v2705
        %v2993 = vadd.f32 %v2992, %v2706
        %v2994 = vadd.f32 %v2993, %v2707
        %v2995 = vadd.f32 %v2994, %v2708
        %v2996 = vadd.f32 %v2995, %v2709
        %v2997 = vadd.f32 %v2996, %v2710
        %v2998 = vadd.f32 %v2997, %v2711
        %v2999 = vadd.f32 %v2998, %v2712
        %v3000 = vadd.f32 %v2999, %v2713
        %v3001 = vadd.f32 %v3000, %v2714
        %v3002 = vadd.f32 %v3001, %v2715
        %v3003 = vadd.f32 %v3002, %v2716
        %v3004 = vadd.f32 %v3003, %v2717
        %v3005 = vadd.f32 %v3004, %v2718
        %v3006 = vadd.f32 %v3005, %v2719
        %v3007 = vadd.f32 %v3006, %v2720
        %v3008 = vadd.f32 %v3007, %v2721
        %v3009 = vadd.f32 %v3008, %v2722
        %v3010 = vadd.f32 %v3009, %v2723
        %v3011 = vadd.f32 %v3010, %v2724
        %v3012 = vadd.f32 %v3011, %v2725
        %v3013 = vadd.f32 %v3012, %v2726
        %v3014 = vadd.f32 %v3013, %v2727
        %v3015 = vadd.f32 %v3014, %v2728
        %v3016 = vadd.f32 %v3015, %v2729
        %v3017 = vadd.f32 %v3016, %v2730
        %v3018 = vadd.f32 %v3017, %v2731
        %v3019 = vadd.f32 %v3018, %v2732
        %v3020 = vadd.f32 %v3019, %v2733
        %v3021 = vadd.f32 %v3020, %v2734
        %v3022 = vadd.f32 %v3021, %v2735
        %v3023 = vadd.f32 %v3022, %v2736
        %v3024 = vadd.f32 %v3023, %v2737
        %v3025 = vadd.f32 %v3024, %v2738
        %v3026 = vadd.f32 %v3025, %v2739
        %v3027 = vadd.f32 %v3026, %v2740
        %v3028 = vadd.f32 %v3027, %v2741
        %v3029 = vadd.f32 %v3028, %v2742
        %v3030 = vadd.f32 %v3029, %v2743
        %v3031 = vadd.f32 %v3030, %v2744
        %v3032 = vadd.f32 %v3031, %v2745
        %v3033 = vadd.f32 %v3032, %v2746
        %v3034 = vadd.f32 %v3033, %v2747
        %v3035 = vadd.f32 %v3034, %v2748
        %v3036 = vadd.f32 %v3035, %v2749
        %v3037 = vadd.f32 %v3036, %v2750
        %v3038 = vadd.f32 %v3037, %v2751
        %v3039 = vadd.f32 %v3038, %v2752
        %v3040 = vadd.f32 %v3039, %v2753
        %v3041 = vadd.f32 %v3040, %v2754
        %v3042 = vadd.f32 %v3041, %v2755
        %v3043 = vadd.f32 %v3042, %v2756
        %v3044 = vadd.f32 %v3043, %v2757
        %v3045 = vadd.f32 %v3044, %v2758
        %v3046 = vadd.f32 %v3045, %v2759
        %v3047 = vadd.f32 %v3046, %v2760
        %v3048 = vadd.f32 %v3047, %v2761
        %v3049 = vadd.f32 %v3048, %v2762
        %v3050 = vadd.f32 %v3049, %v2763
        %v3051 = vadd.f32 %v3050, %v2764
        %v3052 = vadd.f32 %v3051, %v2765
        %v3053 = vadd.f32 %v3052, %v2766
        %v3054 = vadd.f32 %v3053, %v2767
        %v3055 = vadd.f32 %v3054, %v2768
        %v3056 = vadd.f32 %v3055, %v2769
        %v3057 = vadd.f32 %v3056, %v2770
        %v3058 = vadd.f32 %v3057, %v2771
        %v3059 = vadd.f32 %v3058, %v2772
        %v3060 = vadd.f32 %v3059, %v2773
        %v3061 = vadd.f32 %v3060, %v2774
        %v3062 = vadd.f32 %v3061, %v2775
        %v3063 = vadd.f32 %v3062, %v2776
        %v3064 = vadd.f32 %v3063, %v2777
        %v3065 = vadd.f32 %v3064, %v2778
        %v3066 = vadd.f32 %v3065, %v2779
        %v3067 = vadd.f32 %v3066, %v2780
        %v3068 = vadd.f32 %v3067, %v2781
        %v3069 = vadd.f32 %v3068, %v2782
        %v3070 = vadd.f32 %v3069, %v2783
        %v3071 = vadd.f32 %v3070, %v2784
        %v3072 = vadd.f32 %v3071, %v2785
        %v3073 = vadd.f32 %v3072, %v2786
        %v3074 = vadd.f32 %v3073, %v2787
        %v3075 = vadd.f32 %v3074, %v2788
        %v3076 = vadd.f32 %v3075, %v2789
        %v3077 = vadd.f32 %v3076, %v2790
        %v3078 = vadd.f32 %v3077, %v2791
        %v3079 = vadd.f32 %v3078, %v2792
        %v3080 = vadd.f32 %v3079, %v2793
        %v3081 = vadd.f32 %v3080, %v2794
        %v3082 = vadd.f32 %v3081, %v2795
        %v3083 = vadd.f32 %v3082, %v2796
        %v3084 = vadd.f32 %v3083, %v2797
        %v3085 = vadd.f32 %v3084, %v2798
        %v3086 = vadd.f32 %v3085, %v2799
        %v3087 = vadd.f32 %v3086, %v2800
        %v3088 = vadd.f32 %v3087, %v2801
        %v3089 = vadd.f32 %v3088, %v2802
        %v3090 = vadd.f32 %v3089, %v2803
        %v3091 = vadd.f32 %v3090, %v2804
        %v3092 = vadd.f32 %v3091, %v2805
        %v3093 = vadd.f32 %v3092, %v2806
        %v3094 = vadd.f32 %v3093, %v2807
        %v3095 = vadd.f32 %v3094, %v2808
        %v3096 = vadd.f32 %v3095, %v2809
        %v3097 = vadd.f32 %v3096, %v2810
        %v3098 = vadd.f32 %v3097, %v2811
        %v3099 = vadd.f32 %v3098, %v2812
        %v3100 = vadd.f32 %v3099, %v2813
        %v3101 = vadd.f32 %v3100, %v2814
        %v3102 = vadd.f32 %v3101, %v2815
        %v3103 = vadd.f32 %v3102, %v2816
        %v3104 = vadd.f32 %v3103, %v2817
        %v3105 = vadd.f32 %v3104, %v2818
        %v3106 = vadd.f32 %v3105, %v2819
        %v3107 = vadd.f32 %v3106, %v2820
        %v3108 = vadd.f32 %v3107, %v2821
        %v3109 = vadd.f32 %v3108, %v2822
        %v3110 = vadd.f32 %v3109, %v2823
        %v3111 = vadd.f32 %v3110, %v2824
        %v3112 = vadd.f32 %v3111, %v2825
        %v3113 = vadd.f32 %v3112, %v2826
        %v3114 = vadd.f32 %v3113, %v2827
        %v3115 = vadd.f32 %v3114, %v2828
        %v3116 = vadd.f32 %v3115, %v2829
        %v3117 = vadd.f32 %v3116, %v2830
        %v3118 = vadd.f32 %v3117, %v2831
        %v3119 = vadd.f32 %v3118, %v2832
        %v3120 = vadd.f32 %v3119, %v2833
        %v3121 = vadd.f32 %v3120, %v2834
        %v3122 = vadd.f32 %v3121, %v2835
        %v3123 = vadd.f32 %v3122, %v2836
        %v3124 = vadd.f32 %v3123, %v2837
        %v3125 = vadd.f32 %v3124, %v2838
        %v3126 = vadd.f32 %v3125, %v2839
        %v3127 = vadd.f32 %v3126, %v2840
        %v3128 = vadd.f32 %v3127, %v2841
        %v3129 = vadd.f32 %v3128, %v2842
        %v3130 = vadd.f32 %v3129, %v2843
        %v3131 = vadd.f32 %v3130, %v2844
        %v3132 = vadd.f32 %v3131, %v2845
        %v3133 = vadd.f32 %v3132, %v2846
        %v3134 = vadd.f32 %v3133, %v2847
        %v3135 = vadd.f32 %v3134, %v2848
        %v3136 = vadd.f32 %v3135, %v2849
        %v3137 = vadd.f32 %v3136, %v2850
        %v3138 = vadd.f32 %v3137, %v2851
        %v3139 = vadd.f32 %v3138, %v2852
        %v3140 = vadd.f32 %v3139, %v2853
        %v3141 = vadd.f32 %v3140, %v2854
        %v3142 = vadd.f32 %v3141, %v2855
        %v3143 = vadd.f32 %v3142, %v2856
        %v3144 = vadd.f32 %v3143, %v2857
        %v3145 = vadd.f32 %v3144, %v2858
        %v3146 = vadd.f32 %v3145, %v2859
        %v3147 = vadd.f32 %v3146, %v2860
        %v3148 = vadd.f32 %v3147, %v2861
        %v3149 = vadd.f32 %v3148, %v2862
        %v3150 = vadd.f32 %v3149, %v2863
        %v3151 = vadd.f32 %v3150, %v2864
        %v3152 = vadd.f32 %v3151, %v2865
        %v3153 = vadd.f32 %v3152, %v2866
        %v3154 = vadd.f32 %v3153, %v2867
        %v3155 = vadd.f32 %v3154, %v2868
        %v3156 = vadd.f32 %v3155, %v2869
        %v3157 = vadd.f32 %v3156, %v2870
        %v3158 = vadd.f32 %v3157, %v2871
        %v3159 = vadd.f32 %v3158, %v2872
        %v3160 = vadd.f32 %v3159, %v2873
        %v3161 = vadd.f32 %v3160, %v2874
        %v3162 = vadd.f32 %v3161, %v2875
        %v3163 = vadd.f32 %v3162, %v2876
        %v3164 = vadd.f32 %v3163, %v2877
        %v3165 = vadd.f32 %v3164, %v2878
        %v3166 = vadd.f32 %v3165, %v2879
        %v3167 = vadd.f32 %v3166, %v2880
        %v3168 = vadd.f32 %v2304, %v3167
        %v3169 = vld [vmem:[%s506] sm:$0xff]
        %v3170 = vld [vmem:[%s506 + $0x8] sm:$0xff]
        %v3171 = vld [vmem:[%s506 + $0x10] sm:$0xff]
        %v3172 = vld [vmem:[%s506 + $0x18] sm:$0xff]
        %v3173 = vld [vmem:[%s506 + $0x20] sm:$0xff]
        %v3174 = vld [vmem:[%s506 + $0x28] sm:$0xff]
        %v3175 = vld [vmem:[%s506 + $0x30] sm:$0xff]
        %v3176 = vld [vmem:[%s506 + $0x38] sm:$0xff]
        %v3177 = vld [vmem:[%s506 + $0x40] sm:$0xff]
        %v3178 = vld [vmem:[%s506 + $0x48] sm:$0xff]
        %v3179 = vld [vmem:[%s506 + $0x50] sm:$0xff]
        %v3180 = vld [vmem:[%s506 + $0x58] sm:$0xff]
        %v3181 = vld [vmem:[%s506 + $0x60] sm:$0xff]
        %v3182 = vld [vmem:[%s506 + $0x68] sm:$0xff]
        %v3183 = vld [vmem:[%s506 + $0x70] sm:$0xff]
        %v3184 = vld [vmem:[%s506 + $0x78] sm:$0xff]
        %v3185 = vld [vmem:[%s506 + $0x80] sm:$0xff]
        %v3186 = vld [vmem:[%s506 + $0x88] sm:$0xff]
        %v3187 = vld [vmem:[%s506 + $0x90] sm:$0xff]
        %v3188 = vld [vmem:[%s506 + $0x98] sm:$0xff]
        %v3189 = vld [vmem:[%s506 + $0xa0] sm:$0xff]
        %v3190 = vld [vmem:[%s506 + $0xa8] sm:$0xff]
        %v3191 = vld [vmem:[%s506 + $0xb0] sm:$0xff]
        %v3192 = vld [vmem:[%s506 + $0xb8] sm:$0xff]
        %v3193 = vld [vmem:[%s506 + $0xc0] sm:$0xff]
        %v3194 = vld [vmem:[%s506 + $0xc8] sm:$0xff]
        %v3195 = vld [vmem:[%s506 + $0xd0] sm:$0xff]
        %v3196 = vld [vmem:[%s506 + $0xd8] sm:$0xff]
        %v3197 = vld [vmem:[%s506 + $0xe0] sm:$0xff]
        %v3198 = vld [vmem:[%s506 + $0xe8] sm:$0xff]
        %v3199 = vld [vmem:[%s506 + $0xf0] sm:$0xff]
        %v3200 = vld [vmem:[%s506 + $0xf8] sm:$0xff]
        %v3201 = vld [vmem:[%s506 + $0x100] sm:$0xff]
        %v3202 = vld [vmem:[%s506 + $0x108] sm:$0xff]
        %v3203 = vld [vmem:[%s506 + $0x110] sm:$0xff]
        %v3204 = vld [vmem:[%s506 + $0x118] sm:$0xff]
        %v3205 = vld [vmem:[%s506 + $0x120] sm:$0xff]
        %v3206 = vld [vmem:[%s506 + $0x128] sm:$0xff]
        %v3207 = vld [vmem:[%s506 + $0x130] sm:$0xff]
        %v3208 = vld [vmem:[%s506 + $0x138] sm:$0xff]
        %v3209 = vld [vmem:[%s506 + $0x140] sm:$0xff]
        %v3210 = vld [vmem:[%s506 + $0x148] sm:$0xff]
        %v3211 = vld [vmem:[%s506 + $0x150] sm:$0xff]
        %v3212 = vld [vmem:[%s506 + $0x158] sm:$0xff]
        %v3213 = vld [vmem:[%s506 + $0x160] sm:$0xff]
        %v3214 = vld [vmem:[%s506 + $0x168] sm:$0xff]
        %v3215 = vld [vmem:[%s506 + $0x170] sm:$0xff]
        %v3216 = vld [vmem:[%s506 + $0x178] sm:$0xff]
        %v3217 = vld [vmem:[%s506 + $0x180] sm:$0xff]
        %v3218 = vld [vmem:[%s506 + $0x188] sm:$0xff]
        %v3219 = vld [vmem:[%s506 + $0x190] sm:$0xff]
        %v3220 = vld [vmem:[%s506 + $0x198] sm:$0xff]
        %v3221 = vld [vmem:[%s506 + $0x1a0] sm:$0xff]
        %v3222 = vld [vmem:[%s506 + $0x1a8] sm:$0xff]
        %v3223 = vld [vmem:[%s506 + $0x1b0] sm:$0xff]
        %v3224 = vld [vmem:[%s506 + $0x1b8] sm:$0xff]
        %v3225 = vld [vmem:[%s506 + $0x1c0] sm:$0xff]
        %v3226 = vld [vmem:[%s506 + $0x1c8] sm:$0xff]
        %v3227 = vld [vmem:[%s506 + $0x1d0] sm:$0xff]
        %v3228 = vld [vmem:[%s506 + $0x1d8] sm:$0xff]
        %v3229 = vld [vmem:[%s506 + $0x1e0] sm:$0xff]
        %v3230 = vld [vmem:[%s506 + $0x1e8] sm:$0xff]
        %v3231 = vld [vmem:[%s506 + $0x1f0] sm:$0xff]
        %v3232 = vld [vmem:[%s506 + $0x1f8] sm:$0xff]
        %v3233 = vld [vmem:[%s506 + $0x200] sm:$0xff]
        %v3234 = vld [vmem:[%s506 + $0x208] sm:$0xff]
        %v3235 = vld [vmem:[%s506 + $0x210] sm:$0xff]
        %v3236 = vld [vmem:[%s506 + $0x218] sm:$0xff]
        %v3237 = vld [vmem:[%s506 + $0x220] sm:$0xff]
        %v3238 = vld [vmem:[%s506 + $0x228] sm:$0xff]
        %v3239 = vld [vmem:[%s506 + $0x230] sm:$0xff]
        %v3240 = vld [vmem:[%s506 + $0x238] sm:$0xff]
        %v3241 = vld [vmem:[%s506 + $0x240] sm:$0xff]
        %v3242 = vld [vmem:[%s506 + $0x248] sm:$0xff]
        %v3243 = vld [vmem:[%s506 + $0x250] sm:$0xff]
        %v3244 = vld [vmem:[%s506 + $0x258] sm:$0xff]
        %v3245 = vld [vmem:[%s506 + $0x260] sm:$0xff]
        %v3246 = vld [vmem:[%s506 + $0x268] sm:$0xff]
        %v3247 = vld [vmem:[%s506 + $0x270] sm:$0xff]
        %v3248 = vld [vmem:[%s506 + $0x278] sm:$0xff]
        %v3249 = vld [vmem:[%s506 + $0x280] sm:$0xff]
        %v3250 = vld [vmem:[%s506 + $0x288] sm:$0xff]
        %v3251 = vld [vmem:[%s506 + $0x290] sm:$0xff]
        %v3252 = vld [vmem:[%s506 + $0x298] sm:$0xff]
        %v3253 = vld [vmem:[%s506 + $0x2a0] sm:$0xff]
        %v3254 = vld [vmem:[%s506 + $0x2a8] sm:$0xff]
        %v3255 = vld [vmem:[%s506 + $0x2b0] sm:$0xff]
        %v3256 = vld [vmem:[%s506 + $0x2b8] sm:$0xff]
        %v3257 = vld [vmem:[%s506 + $0x2c0] sm:$0xff]
        %v3258 = vld [vmem:[%s506 + $0x2c8] sm:$0xff]
        %v3259 = vld [vmem:[%s506 + $0x2d0] sm:$0xff]
        %v3260 = vld [vmem:[%s506 + $0x2d8] sm:$0xff]
        %v3261 = vld [vmem:[%s506 + $0x2e0] sm:$0xff]
        %v3262 = vld [vmem:[%s506 + $0x2e8] sm:$0xff]
        %v3263 = vld [vmem:[%s506 + $0x2f0] sm:$0xff]
        %v3264 = vld [vmem:[%s506 + $0x2f8] sm:$0xff]
        %v3265 = vld [vmem:[%s506 + $0x300] sm:$0xff]
        %v3266 = vld [vmem:[%s506 + $0x308] sm:$0xff]
        %v3267 = vld [vmem:[%s506 + $0x310] sm:$0xff]
        %v3268 = vld [vmem:[%s506 + $0x318] sm:$0xff]
        %v3269 = vld [vmem:[%s506 + $0x320] sm:$0xff]
        %v3270 = vld [vmem:[%s506 + $0x328] sm:$0xff]
        %v3271 = vld [vmem:[%s506 + $0x330] sm:$0xff]
        %v3272 = vld [vmem:[%s506 + $0x338] sm:$0xff]
        %v3273 = vld [vmem:[%s506 + $0x340] sm:$0xff]
        %v3274 = vld [vmem:[%s506 + $0x348] sm:$0xff]
        %v3275 = vld [vmem:[%s506 + $0x350] sm:$0xff]
        %v3276 = vld [vmem:[%s506 + $0x358] sm:$0xff]
        %v3277 = vld [vmem:[%s506 + $0x360] sm:$0xff]
        %v3278 = vld [vmem:[%s506 + $0x368] sm:$0xff]
        %v3279 = vld [vmem:[%s506 + $0x370] sm:$0xff]
        %v3280 = vld [vmem:[%s506 + $0x378] sm:$0xff]
        %v3281 = vld [vmem:[%s506 + $0x380] sm:$0xff]
        %v3282 = vld [vmem:[%s506 + $0x388] sm:$0xff]
        %v3283 = vld [vmem:[%s506 + $0x390] sm:$0xff]
        %v3284 = vld [vmem:[%s506 + $0x398] sm:$0xff]
        %v3285 = vld [vmem:[%s506 + $0x3a0] sm:$0xff]
        %v3286 = vld [vmem:[%s506 + $0x3a8] sm:$0xff]
        %v3287 = vld [vmem:[%s506 + $0x3b0] sm:$0xff]
        %v3288 = vld [vmem:[%s506 + $0x3b8] sm:$0xff]
        %v3289 = vld [vmem:[%s506 + $0x3c0] sm:$0xff]
        %v3290 = vld [vmem:[%s506 + $0x3c8] sm:$0xff]
        %v3291 = vld [vmem:[%s506 + $0x3d0] sm:$0xff]
        %v3292 = vld [vmem:[%s506 + $0x3d8] sm:$0xff]
        %v3293 = vld [vmem:[%s506 + $0x3e0] sm:$0xff]
        %v3294 = vld [vmem:[%s506 + $0x3e8] sm:$0xff]
        %v3295 = vld [vmem:[%s506 + $0x3f0] sm:$0xff]
        %v3296 = vld [vmem:[%s506 + $0x3f8] sm:$0xff]
        %v3297 = vld [vmem:[%s506 + $0x400] sm:$0xff]
        %v3298 = vld [vmem:[%s506 + $0x408] sm:$0xff]
        %v3299 = vld [vmem:[%s506 + $0x410] sm:$0xff]
        %v3300 = vld [vmem:[%s506 + $0x418] sm:$0xff]
        %v3301 = vld [vmem:[%s506 + $0x420] sm:$0xff]
        %v3302 = vld [vmem:[%s506 + $0x428] sm:$0xff]
        %v3303 = vld [vmem:[%s506 + $0x430] sm:$0xff]
        %v3304 = vld [vmem:[%s506 + $0x438] sm:$0xff]
        %v3305 = vld [vmem:[%s506 + $0x440] sm:$0xff]
        %v3306 = vld [vmem:[%s506 + $0x448] sm:$0xff]
        %v3307 = vld [vmem:[%s506 + $0x450] sm:$0xff]
        %v3308 = vld [vmem:[%s506 + $0x458] sm:$0xff]
        %v3309 = vld [vmem:[%s506 + $0x460] sm:$0xff]
        %v3310 = vld [vmem:[%s506 + $0x468] sm:$0xff]
        %v3311 = vld [vmem:[%s506 + $0x470] sm:$0xff]
        %v3312 = vld [vmem:[%s506 + $0x478] sm:$0xff]
        %v3313 = vld [vmem:[%s506 + $0x480] sm:$0xff]
        %v3314 = vld [vmem:[%s506 + $0x488] sm:$0xff]
        %v3315 = vld [vmem:[%s506 + $0x490] sm:$0xff]
        %v3316 = vld [vmem:[%s506 + $0x498] sm:$0xff]
        %v3317 = vld [vmem:[%s506 + $0x4a0] sm:$0xff]
        %v3318 = vld [vmem:[%s506 + $0x4a8] sm:$0xff]
        %v3319 = vld [vmem:[%s506 + $0x4b0] sm:$0xff]
        %v3320 = vld [vmem:[%s506 + $0x4b8] sm:$0xff]
        %v3321 = vld [vmem:[%s506 + $0x4c0] sm:$0xff]
        %v3322 = vld [vmem:[%s506 + $0x4c8] sm:$0xff]
        %v3323 = vld [vmem:[%s506 + $0x4d0] sm:$0xff]
        %v3324 = vld [vmem:[%s506 + $0x4d8] sm:$0xff]
        %v3325 = vld [vmem:[%s506 + $0x4e0] sm:$0xff]
        %v3326 = vld [vmem:[%s506 + $0x4e8] sm:$0xff]
        %v3327 = vld [vmem:[%s506 + $0x4f0] sm:$0xff]
        %v3328 = vld [vmem:[%s506 + $0x4f8] sm:$0xff]
        %v3329 = vld [vmem:[%s506 + $0x500] sm:$0xff]
        %v3330 = vld [vmem:[%s506 + $0x508] sm:$0xff]
        %v3331 = vld [vmem:[%s506 + $0x510] sm:$0xff]
        %v3332 = vld [vmem:[%s506 + $0x518] sm:$0xff]
        %v3333 = vld [vmem:[%s506 + $0x520] sm:$0xff]
        %v3334 = vld [vmem:[%s506 + $0x528] sm:$0xff]
        %v3335 = vld [vmem:[%s506 + $0x530] sm:$0xff]
        %v3336 = vld [vmem:[%s506 + $0x538] sm:$0xff]
        %v3337 = vld [vmem:[%s506 + $0x540] sm:$0xff]
        %v3338 = vld [vmem:[%s506 + $0x548] sm:$0xff]
        %v3339 = vld [vmem:[%s506 + $0x550] sm:$0xff]
        %v3340 = vld [vmem:[%s506 + $0x558] sm:$0xff]
        %v3341 = vld [vmem:[%s506 + $0x560] sm:$0xff]
        %v3342 = vld [vmem:[%s506 + $0x568] sm:$0xff]
        %v3343 = vld [vmem:[%s506 + $0x570] sm:$0xff]
        %v3344 = vld [vmem:[%s506 + $0x578] sm:$0xff]
        %v3345 = vld [vmem:[%s506 + $0x580] sm:$0xff]
        %v3346 = vld [vmem:[%s506 + $0x588] sm:$0xff]
        %v3347 = vld [vmem:[%s506 + $0x590] sm:$0xff]
        %v3348 = vld [vmem:[%s506 + $0x598] sm:$0xff]
        %v3349 = vld [vmem:[%s506 + $0x5a0] sm:$0xff]
        %v3350 = vld [vmem:[%s506 + $0x5a8] sm:$0xff]
        %v3351 = vld [vmem:[%s506 + $0x5b0] sm:$0xff]
        %v3352 = vld [vmem:[%s506 + $0x5b8] sm:$0xff]
        %v3353 = vld [vmem:[%s506 + $0x5c0] sm:$0xff]
        %v3354 = vld [vmem:[%s506 + $0x5c8] sm:$0xff]
        %v3355 = vld [vmem:[%s506 + $0x5d0] sm:$0xff]
        %v3356 = vld [vmem:[%s506 + $0x5d8] sm:$0xff]
        %v3357 = vld [vmem:[%s506 + $0x5e0] sm:$0xff]
        %v3358 = vld [vmem:[%s506 + $0x5e8] sm:$0xff]
        %v3359 = vld [vmem:[%s506 + $0x5f0] sm:$0xff]
        %v3360 = vld [vmem:[%s506 + $0x5f8] sm:$0xff]
        %v3361 = vld [vmem:[%s506 + $0x600] sm:$0xff]
        %v3362 = vld [vmem:[%s506 + $0x608] sm:$0xff]
        %v3363 = vld [vmem:[%s506 + $0x610] sm:$0xff]
        %v3364 = vld [vmem:[%s506 + $0x618] sm:$0xff]
        %v3365 = vld [vmem:[%s506 + $0x620] sm:$0xff]
        %v3366 = vld [vmem:[%s506 + $0x628] sm:$0xff]
        %v3367 = vld [vmem:[%s506 + $0x630] sm:$0xff]
        %v3368 = vld [vmem:[%s506 + $0x638] sm:$0xff]
        %v3369 = vld [vmem:[%s506 + $0x640] sm:$0xff]
        %v3370 = vld [vmem:[%s506 + $0x648] sm:$0xff]
        %v3371 = vld [vmem:[%s506 + $0x650] sm:$0xff]
        %v3372 = vld [vmem:[%s506 + $0x658] sm:$0xff]
        %v3373 = vld [vmem:[%s506 + $0x660] sm:$0xff]
        %v3374 = vld [vmem:[%s506 + $0x668] sm:$0xff]
        %v3375 = vld [vmem:[%s506 + $0x670] sm:$0xff]
        %v3376 = vld [vmem:[%s506 + $0x678] sm:$0xff]
        %v3377 = vld [vmem:[%s506 + $0x680] sm:$0xff]
        %v3378 = vld [vmem:[%s506 + $0x688] sm:$0xff]
        %v3379 = vld [vmem:[%s506 + $0x690] sm:$0xff]
        %v3380 = vld [vmem:[%s506 + $0x698] sm:$0xff]
        %v3381 = vld [vmem:[%s506 + $0x6a0] sm:$0xff]
        %v3382 = vld [vmem:[%s506 + $0x6a8] sm:$0xff]
        %v3383 = vld [vmem:[%s506 + $0x6b0] sm:$0xff]
        %v3384 = vld [vmem:[%s506 + $0x6b8] sm:$0xff]
        %v3385 = vld [vmem:[%s506 + $0x6c0] sm:$0xff]
        %v3386 = vld [vmem:[%s506 + $0x6c8] sm:$0xff]
        %v3387 = vld [vmem:[%s506 + $0x6d0] sm:$0xff]
        %v3388 = vld [vmem:[%s506 + $0x6d8] sm:$0xff]
        %v3389 = vld [vmem:[%s506 + $0x6e0] sm:$0xff]
        %v3390 = vld [vmem:[%s506 + $0x6e8] sm:$0xff]
        %v3391 = vld [vmem:[%s506 + $0x6f0] sm:$0xff]
        %v3392 = vld [vmem:[%s506 + $0x6f8] sm:$0xff]
        %v3393 = vld [vmem:[%s506 + $0x700] sm:$0xff]
        %v3394 = vld [vmem:[%s506 + $0x708] sm:$0xff]
        %v3395 = vld [vmem:[%s506 + $0x710] sm:$0xff]
        %v3396 = vld [vmem:[%s506 + $0x718] sm:$0xff]
        %v3397 = vld [vmem:[%s506 + $0x720] sm:$0xff]
        %v3398 = vld [vmem:[%s506 + $0x728] sm:$0xff]
        %v3399 = vld [vmem:[%s506 + $0x730] sm:$0xff]
        %v3400 = vld [vmem:[%s506 + $0x738] sm:$0xff]
        %v3401 = vld [vmem:[%s506 + $0x740] sm:$0xff]
        %v3402 = vld [vmem:[%s506 + $0x748] sm:$0xff]
        %v3403 = vld [vmem:[%s506 + $0x750] sm:$0xff]
        %v3404 = vld [vmem:[%s506 + $0x758] sm:$0xff]
        %v3405 = vld [vmem:[%s506 + $0x760] sm:$0xff]
        %v3406 = vld [vmem:[%s506 + $0x768] sm:$0xff]
        %v3407 = vld [vmem:[%s506 + $0x770] sm:$0xff]
        %v3408 = vld [vmem:[%s506 + $0x778] sm:$0xff]
        %v3409 = vld [vmem:[%s506 + $0x780] sm:$0xff]
        %v3410 = vld [vmem:[%s506 + $0x788] sm:$0xff]
        %v3411 = vld [vmem:[%s506 + $0x790] sm:$0xff]
        %v3412 = vld [vmem:[%s506 + $0x798] sm:$0xff]
        %v3413 = vld [vmem:[%s506 + $0x7a0] sm:$0xff]
        %v3414 = vld [vmem:[%s506 + $0x7a8] sm:$0xff]
        %v3415 = vld [vmem:[%s506 + $0x7b0] sm:$0xff]
        %v3416 = vld [vmem:[%s506 + $0x7b8] sm:$0xff]
        %v3417 = vld [vmem:[%s506 + $0x7c0] sm:$0xff]
        %v3418 = vld [vmem:[%s506 + $0x7c8] sm:$0xff]
        %v3419 = vld [vmem:[%s506 + $0x7d0] sm:$0xff]
        %v3420 = vld [vmem:[%s506 + $0x7d8] sm:$0xff]
        %v3421 = vld [vmem:[%s506 + $0x7e0] sm:$0xff]
        %v3422 = vld [vmem:[%s506 + $0x7e8] sm:$0xff]
        %v3423 = vld [vmem:[%s506 + $0x7f0] sm:$0xff]
        %v3424 = vld [vmem:[%s506 + $0x7f8] sm:$0xff]
        %v3425 = vld [vmem:[%s506 + $0x800] sm:$0xff]
        %v3426 = vld [vmem:[%s506 + $0x808] sm:$0xff]
        %v3427 = vld [vmem:[%s506 + $0x810] sm:$0xff]
        %v3428 = vld [vmem:[%s506 + $0x818] sm:$0xff]
        %v3429 = vld [vmem:[%s506 + $0x820] sm:$0xff]
        %v3430 = vld [vmem:[%s506 + $0x828] sm:$0xff]
        %v3431 = vld [vmem:[%s506 + $0x830] sm:$0xff]
        %v3432 = vld [vmem:[%s506 + $0x838] sm:$0xff]
        %v3433 = vld [vmem:[%s506 + $0x840] sm:$0xff]
        %v3434 = vld [vmem:[%s506 + $0x848] sm:$0xff]
        %v3435 = vld [vmem:[%s506 + $0x850] sm:$0xff]
        %v3436 = vld [vmem:[%s506 + $0x858] sm:$0xff]
        %v3437 = vld [vmem:[%s506 + $0x860] sm:$0xff]
        %v3438 = vld [vmem:[%s506 + $0x868] sm:$0xff]
        %v3439 = vld [vmem:[%s506 + $0x870] sm:$0xff]
        %v3440 = vld [vmem:[%s506 + $0x878] sm:$0xff]
        %v3441 = vld [vmem:[%s506 + $0x880] sm:$0xff]
        %v3442 = vld [vmem:[%s506 + $0x888] sm:$0xff]
        %v3443 = vld [vmem:[%s506 + $0x890] sm:$0xff]
        %v3444 = vld [vmem:[%s506 + $0x898] sm:$0xff]
        %v3445 = vld [vmem:[%s506 + $0x8a0] sm:$0xff]
        %v3446 = vld [vmem:[%s506 + $0x8a8] sm:$0xff]
        %v3447 = vld [vmem:[%s506 + $0x8b0] sm:$0xff]
        %v3448 = vld [vmem:[%s506 + $0x8b8] sm:$0xff]
        %v3449 = vld [vmem:[%s506 + $0x8c0] sm:$0xff]
        %v3450 = vld [vmem:[%s506 + $0x8c8] sm:$0xff]
        %v3451 = vld [vmem:[%s506 + $0x8d0] sm:$0xff]
        %v3452 = vld [vmem:[%s506 + $0x8d8] sm:$0xff]
        %v3453 = vld [vmem:[%s506 + $0x8e0] sm:$0xff]
        %v3454 = vld [vmem:[%s506 + $0x8e8] sm:$0xff]
        %v3455 = vld [vmem:[%s506 + $0x8f0] sm:$0xff]
        %v3456 = vld [vmem:[%s506 + $0x8f8] sm:$0xff]
        %v3457 = vmul.f32 %v3169, %v3169
        %v3458 = vmul.f32 %v3170, %v3170
        %v3459 = vmul.f32 %v3171, %v3171
        %v3460 = vmul.f32 %v3172, %v3172
        %v3461 = vmul.f32 %v3173, %v3173
        %v3462 = vmul.f32 %v3174, %v3174
        %v3463 = vmul.f32 %v3175, %v3175
        %v3464 = vmul.f32 %v3176, %v3176
        %v3465 = vmul.f32 %v3177, %v3177
        %v3466 = vmul.f32 %v3178, %v3178
        %v3467 = vmul.f32 %v3179, %v3179
        %v3468 = vmul.f32 %v3180, %v3180
        %v3469 = vmul.f32 %v3181, %v3181
        %v3470 = vmul.f32 %v3182, %v3182
        %v3471 = vmul.f32 %v3183, %v3183
        %v3472 = vmul.f32 %v3184, %v3184
        %v3473 = vmul.f32 %v3185, %v3185
        %v3474 = vmul.f32 %v3186, %v3186
        %v3475 = vmul.f32 %v3187, %v3187
        %v3476 = vmul.f32 %v3188, %v3188
        %v3477 = vmul.f32 %v3189, %v3189
        %v3478 = vmul.f32 %v3190, %v3190
        %v3479 = vmul.f32 %v3191, %v3191
        %v3480 = vmul.f32 %v3192, %v3192
        %v3481 = vmul.f32 %v3193, %v3193
        %v3482 = vmul.f32 %v3194, %v3194
        %v3483 = vmul.f32 %v3195, %v3195
        %v3484 = vmul.f32 %v3196, %v3196
        %v3485 = vmul.f32 %v3197, %v3197
        %v3486 = vmul.f32 %v3198, %v3198
        %v3487 = vmul.f32 %v3199, %v3199
        %v3488 = vmul.f32 %v3200, %v3200
        %v3489 = vmul.f32 %v3201, %v3201
        %v3490 = vmul.f32 %v3202, %v3202
        %v3491 = vmul.f32 %v3203, %v3203
        %v3492 = vmul.f32 %v3204, %v3204
        %v3493 = vmul.f32 %v3205, %v3205
        %v3494 = vmul.f32 %v3206, %v3206
        %v3495 = vmul.f32 %v3207, %v3207
        %v3496 = vmul.f32 %v3208, %v3208
        %v3497 = vmul.f32 %v3209, %v3209
        %v3498 = vmul.f32 %v3210, %v3210
        %v3499 = vmul.f32 %v3211, %v3211
        %v3500 = vmul.f32 %v3212, %v3212
        %v3501 = vmul.f32 %v3213, %v3213
        %v3502 = vmul.f32 %v3214, %v3214
        %v3503 = vmul.f32 %v3215, %v3215
        %v3504 = vmul.f32 %v3216, %v3216
        %v3505 = vmul.f32 %v3217, %v3217
        %v3506 = vmul.f32 %v3218, %v3218
        %v3507 = vmul.f32 %v3219, %v3219
        %v3508 = vmul.f32 %v3220, %v3220
        %v3509 = vmul.f32 %v3221, %v3221
        %v3510 = vmul.f32 %v3222, %v3222
        %v3511 = vmul.f32 %v3223, %v3223
        %v3512 = vmul.f32 %v3224, %v3224
        %v3513 = vmul.f32 %v3225, %v3225
        %v3514 = vmul.f32 %v3226, %v3226
        %v3515 = vmul.f32 %v3227, %v3227
        %v3516 = vmul.f32 %v3228, %v3228
        %v3517 = vmul.f32 %v3229, %v3229
        %v3518 = vmul.f32 %v3230, %v3230
        %v3519 = vmul.f32 %v3231, %v3231
        %v3520 = vmul.f32 %v3232, %v3232
        %v3521 = vmul.f32 %v3233, %v3233
        %v3522 = vmul.f32 %v3234, %v3234
        %v3523 = vmul.f32 %v3235, %v3235
        %v3524 = vmul.f32 %v3236, %v3236
        %v3525 = vmul.f32 %v3237, %v3237
        %v3526 = vmul.f32 %v3238, %v3238
        %v3527 = vmul.f32 %v3239, %v3239
        %v3528 = vmul.f32 %v3240, %v3240
        %v3529 = vmul.f32 %v3241, %v3241
        %v3530 = vmul.f32 %v3242, %v3242
        %v3531 = vmul.f32 %v3243, %v3243
        %v3532 = vmul.f32 %v3244, %v3244
        %v3533 = vmul.f32 %v3245, %v3245
        %v3534 = vmul.f32 %v3246, %v3246
        %v3535 = vmul.f32 %v3247, %v3247
        %v3536 = vmul.f32 %v3248, %v3248
        %v3537 = vmul.f32 %v3249, %v3249
        %v3538 = vmul.f32 %v3250, %v3250
        %v3539 = vmul.f32 %v3251, %v3251
        %v3540 = vmul.f32 %v3252, %v3252
        %v3541 = vmul.f32 %v3253, %v3253
        %v3542 = vmul.f32 %v3254, %v3254
        %v3543 = vmul.f32 %v3255, %v3255
        %v3544 = vmul.f32 %v3256, %v3256
        %v3545 = vmul.f32 %v3257, %v3257
        %v3546 = vmul.f32 %v3258, %v3258
        %v3547 = vmul.f32 %v3259, %v3259
        %v3548 = vmul.f32 %v3260, %v3260
        %v3549 = vmul.f32 %v3261, %v3261
        %v3550 = vmul.f32 %v3262, %v3262
        %v3551 = vmul.f32 %v3263, %v3263
        %v3552 = vmul.f32 %v3264, %v3264
        %v3553 = vmul.f32 %v3265, %v3265
        %v3554 = vmul.f32 %v3266, %v3266
        %v3555 = vmul.f32 %v3267, %v3267
        %v3556 = vmul.f32 %v3268, %v3268
        %v3557 = vmul.f32 %v3269, %v3269
        %v3558 = vmul.f32 %v3270, %v3270
        %v3559 = vmul.f32 %v3271, %v3271
        %v3560 = vmul.f32 %v3272, %v3272
        %v3561 = vmul.f32 %v3273, %v3273
        %v3562 = vmul.f32 %v3274, %v3274
        %v3563 = vmul.f32 %v3275, %v3275
        %v3564 = vmul.f32 %v3276, %v3276
        %v3565 = vmul.f32 %v3277, %v3277
        %v3566 = vmul.f32 %v3278, %v3278
        %v3567 = vmul.f32 %v3279, %v3279
        %v3568 = vmul.f32 %v3280, %v3280
        %v3569 = vmul.f32 %v3281, %v3281
        %v3570 = vmul.f32 %v3282, %v3282
        %v3571 = vmul.f32 %v3283, %v3283
        %v3572 = vmul.f32 %v3284, %v3284
        %v3573 = vmul.f32 %v3285, %v3285
        %v3574 = vmul.f32 %v3286, %v3286
        %v3575 = vmul.f32 %v3287, %v3287
        %v3576 = vmul.f32 %v3288, %v3288
        %v3577 = vmul.f32 %v3289, %v3289
        %v3578 = vmul.f32 %v3290, %v3290
        %v3579 = vmul.f32 %v3291, %v3291
        %v3580 = vmul.f32 %v3292, %v3292
        %v3581 = vmul.f32 %v3293, %v3293
        %v3582 = vmul.f32 %v3294, %v3294
        %v3583 = vmul.f32 %v3295, %v3295
        %v3584 = vmul.f32 %v3296, %v3296
        %v3585 = vmul.f32 %v3297, %v3297
        %v3586 = vmul.f32 %v3298, %v3298
        %v3587 = vmul.f32 %v3299, %v3299
        %v3588 = vmul.f32 %v3300, %v3300
        %v3589 = vmul.f32 %v3301, %v3301
        %v3590 = vmul.f32 %v3302, %v3302
        %v3591 = vmul.f32 %v3303, %v3303
        %v3592 = vmul.f32 %v3304, %v3304
        %v3593 = vmul.f32 %v3305, %v3305
        %v3594 = vmul.f32 %v3306, %v3306
        %v3595 = vmul.f32 %v3307, %v3307
        %v3596 = vmul.f32 %v3308, %v3308
        %v3597 = vmul.f32 %v3309, %v3309
        %v3598 = vmul.f32 %v3310, %v3310
        %v3599 = vmul.f32 %v3311, %v3311
        %v3600 = vmul.f32 %v3312, %v3312
        %v3601 = vmul.f32 %v3313, %v3313
        %v3602 = vmul.f32 %v3314, %v3314
        %v3603 = vmul.f32 %v3315, %v3315
        %v3604 = vmul.f32 %v3316, %v3316
        %v3605 = vmul.f32 %v3317, %v3317
        %v3606 = vmul.f32 %v3318, %v3318
        %v3607 = vmul.f32 %v3319, %v3319
        %v3608 = vmul.f32 %v3320, %v3320
        %v3609 = vmul.f32 %v3321, %v3321
        %v3610 = vmul.f32 %v3322, %v3322
        %v3611 = vmul.f32 %v3323, %v3323
        %v3612 = vmul.f32 %v3324, %v3324
        %v3613 = vmul.f32 %v3325, %v3325
        %v3614 = vmul.f32 %v3326, %v3326
        %v3615 = vmul.f32 %v3327, %v3327
        %v3616 = vmul.f32 %v3328, %v3328
        %v3617 = vmul.f32 %v3329, %v3329
        %v3618 = vmul.f32 %v3330, %v3330
        %v3619 = vmul.f32 %v3331, %v3331
        %v3620 = vmul.f32 %v3332, %v3332
        %v3621 = vmul.f32 %v3333, %v3333
        %v3622 = vmul.f32 %v3334, %v3334
        %v3623 = vmul.f32 %v3335, %v3335
        %v3624 = vmul.f32 %v3336, %v3336
        %v3625 = vmul.f32 %v3337, %v3337
        %v3626 = vmul.f32 %v3338, %v3338
        %v3627 = vmul.f32 %v3339, %v3339
        %v3628 = vmul.f32 %v3340, %v3340
        %v3629 = vmul.f32 %v3341, %v3341
        %v3630 = vmul.f32 %v3342, %v3342
        %v3631 = vmul.f32 %v3343, %v3343
        %v3632 = vmul.f32 %v3344, %v3344
        %v3633 = vmul.f32 %v3345, %v3345
        %v3634 = vmul.f32 %v3346, %v3346
        %v3635 = vmul.f32 %v3347, %v3347
        %v3636 = vmul.f32 %v3348, %v3348
        %v3637 = vmul.f32 %v3349, %v3349
        %v3638 = vmul.f32 %v3350, %v3350
        %v3639 = vmul.f32 %v3351, %v3351
        %v3640 = vmul.f32 %v3352, %v3352
        %v3641 = vmul.f32 %v3353, %v3353
        %v3642 = vmul.f32 %v3354, %v3354
        %v3643 = vmul.f32 %v3355, %v3355
        %v3644 = vmul.f32 %v3356, %v3356
        %v3645 = vmul.f32 %v3357, %v3357
        %v3646 = vmul.f32 %v3358, %v3358
        %v3647 = vmul.f32 %v3359, %v3359
        %v3648 = vmul.f32 %v3360, %v3360
        %v3649 = vmul.f32 %v3361, %v3361
        %v3650 = vmul.f32 %v3362, %v3362
        %v3651 = vmul.f32 %v3363, %v3363
        %v3652 = vmul.f32 %v3364, %v3364
        %v3653 = vmul.f32 %v3365, %v3365
        %v3654 = vmul.f32 %v3366, %v3366
        %v3655 = vmul.f32 %v3367, %v3367
        %v3656 = vmul.f32 %v3368, %v3368
        %v3657 = vmul.f32 %v3369, %v3369
        %v3658 = vmul.f32 %v3370, %v3370
        %v3659 = vmul.f32 %v3371, %v3371
        %v3660 = vmul.f32 %v3372, %v3372
        %v3661 = vmul.f32 %v3373, %v3373
        %v3662 = vmul.f32 %v3374, %v3374
        %v3663 = vmul.f32 %v3375, %v3375
        %v3664 = vmul.f32 %v3376, %v3376
        %v3665 = vmul.f32 %v3377, %v3377
        %v3666 = vmul.f32 %v3378, %v3378
        %v3667 = vmul.f32 %v3379, %v3379
        %v3668 = vmul.f32 %v3380, %v3380
        %v3669 = vmul.f32 %v3381, %v3381
        %v3670 = vmul.f32 %v3382, %v3382
        %v3671 = vmul.f32 %v3383, %v3383
        %v3672 = vmul.f32 %v3384, %v3384
        %v3673 = vmul.f32 %v3385, %v3385
        %v3674 = vmul.f32 %v3386, %v3386
        %v3675 = vmul.f32 %v3387, %v3387
        %v3676 = vmul.f32 %v3388, %v3388
        %v3677 = vmul.f32 %v3389, %v3389
        %v3678 = vmul.f32 %v3390, %v3390
        %v3679 = vmul.f32 %v3391, %v3391
        %v3680 = vmul.f32 %v3392, %v3392
        %v3681 = vmul.f32 %v3393, %v3393
        %v3682 = vmul.f32 %v3394, %v3394
        %v3683 = vmul.f32 %v3395, %v3395
        %v3684 = vmul.f32 %v3396, %v3396
        %v3685 = vmul.f32 %v3397, %v3397
        %v3686 = vmul.f32 %v3398, %v3398
        %v3687 = vmul.f32 %v3399, %v3399
        %v3688 = vmul.f32 %v3400, %v3400
        %v3689 = vmul.f32 %v3401, %v3401
        %v3690 = vmul.f32 %v3402, %v3402
        %v3691 = vmul.f32 %v3403, %v3403
        %v3692 = vmul.f32 %v3404, %v3404
        %v3693 = vmul.f32 %v3405, %v3405
        %v3694 = vmul.f32 %v3406, %v3406
        %v3695 = vmul.f32 %v3407, %v3407
        %v3696 = vmul.f32 %v3408, %v3408
        %v3697 = vmul.f32 %v3409, %v3409
        %v3698 = vmul.f32 %v3410, %v3410
        %v3699 = vmul.f32 %v3411, %v3411
        %v3700 = vmul.f32 %v3412, %v3412
        %v3701 = vmul.f32 %v3413, %v3413
        %v3702 = vmul.f32 %v3414, %v3414
        %v3703 = vmul.f32 %v3415, %v3415
        %v3704 = vmul.f32 %v3416, %v3416
        %v3705 = vmul.f32 %v3417, %v3417
        %v3706 = vmul.f32 %v3418, %v3418
        %v3707 = vmul.f32 %v3419, %v3419
        %v3708 = vmul.f32 %v3420, %v3420
        %v3709 = vmul.f32 %v3421, %v3421
        %v3710 = vmul.f32 %v3422, %v3422
        %v3711 = vmul.f32 %v3423, %v3423
        %v3712 = vmul.f32 %v3424, %v3424
        %v3713 = vmul.f32 %v3425, %v3425
        %v3714 = vmul.f32 %v3426, %v3426
        %v3715 = vmul.f32 %v3427, %v3427
        %v3716 = vmul.f32 %v3428, %v3428
        %v3717 = vmul.f32 %v3429, %v3429
        %v3718 = vmul.f32 %v3430, %v3430
        %v3719 = vmul.f32 %v3431, %v3431
        %v3720 = vmul.f32 %v3432, %v3432
        %v3721 = vmul.f32 %v3433, %v3433
        %v3722 = vmul.f32 %v3434, %v3434
        %v3723 = vmul.f32 %v3435, %v3435
        %v3724 = vmul.f32 %v3436, %v3436
        %v3725 = vmul.f32 %v3437, %v3437
        %v3726 = vmul.f32 %v3438, %v3438
        %v3727 = vmul.f32 %v3439, %v3439
        %v3728 = vmul.f32 %v3440, %v3440
        %v3729 = vmul.f32 %v3441, %v3441
        %v3730 = vmul.f32 %v3442, %v3442
        %v3731 = vmul.f32 %v3443, %v3443
        %v3732 = vmul.f32 %v3444, %v3444
        %v3733 = vmul.f32 %v3445, %v3445
        %v3734 = vmul.f32 %v3446, %v3446
        %v3735 = vmul.f32 %v3447, %v3447
        %v3736 = vmul.f32 %v3448, %v3448
        %v3737 = vmul.f32 %v3449, %v3449
        %v3738 = vmul.f32 %v3450, %v3450
        %v3739 = vmul.f32 %v3451, %v3451
        %v3740 = vmul.f32 %v3452, %v3452
        %v3741 = vmul.f32 %v3453, %v3453
        %v3742 = vmul.f32 %v3454, %v3454
        %v3743 = vmul.f32 %v3455, %v3455
        %v3744 = vmul.f32 %v3456, %v3456
        %v3745 = vadd.f32 %v3457, %v3458
        %v3746 = vadd.f32 %v3745, %v3459
        %v3747 = vadd.f32 %v3746, %v3460
        %v3748 = vadd.f32 %v3747, %v3461
        %v3749 = vadd.f32 %v3748, %v3462
        %v3750 = vadd.f32 %v3749, %v3463
        %v3751 = vadd.f32 %v3750, %v3464
        %v3752 = vadd.f32 %v3751, %v3465
        %v3753 = vadd.f32 %v3752, %v3466
        %v3754 = vadd.f32 %v3753, %v3467
        %v3755 = vadd.f32 %v3754, %v3468
        %v3756 = vadd.f32 %v3755, %v3469
        %v3757 = vadd.f32 %v3756, %v3470
        %v3758 = vadd.f32 %v3757, %v3471
        %v3759 = vadd.f32 %v3758, %v3472
        %v3760 = vadd.f32 %v3759, %v3473
        %v3761 = vadd.f32 %v3760, %v3474
        %v3762 = vadd.f32 %v3761, %v3475
        %v3763 = vadd.f32 %v3762, %v3476
        %v3764 = vadd.f32 %v3763, %v3477
        %v3765 = vadd.f32 %v3764, %v3478
        %v3766 = vadd.f32 %v3765, %v3479
        %v3767 = vadd.f32 %v3766, %v3480
        %v3768 = vadd.f32 %v3767, %v3481
        %v3769 = vadd.f32 %v3768, %v3482
        %v3770 = vadd.f32 %v3769, %v3483
        %v3771 = vadd.f32 %v3770, %v3484
        %v3772 = vadd.f32 %v3771, %v3485
        %v3773 = vadd.f32 %v3772, %v3486
        %v3774 = vadd.f32 %v3773, %v3487
        %v3775 = vadd.f32 %v3774, %v3488
        %v3776 = vadd.f32 %v3775, %v3489
        %v3777 = vadd.f32 %v3776, %v3490
        %v3778 = vadd.f32 %v3777, %v3491
        %v3779 = vadd.f32 %v3778, %v3492
        %v3780 = vadd.f32 %v3779, %v3493
        %v3781 = vadd.f32 %v3780, %v3494
        %v3782 = vadd.f32 %v3781, %v3495
        %v3783 = vadd.f32 %v3782, %v3496
        %v3784 = vadd.f32 %v3783, %v3497
        %v3785 = vadd.f32 %v3784, %v3498
        %v3786 = vadd.f32 %v3785, %v3499
        %v3787 = vadd.f32 %v3786, %v3500
        %v3788 = vadd.f32 %v3787, %v3501
        %v3789 = vadd.f32 %v3788, %v3502
        %v3790 = vadd.f32 %v3789, %v3503
        %v3791 = vadd.f32 %v3790, %v3504
        %v3792 = vadd.f32 %v3791, %v3505
        %v3793 = vadd.f32 %v3792, %v3506
        %v3794 = vadd.f32 %v3793, %v3507
        %v3795 = vadd.f32 %v3794, %v3508
        %v3796 = vadd.f32 %v3795, %v3509
        %v3797 = vadd.f32 %v3796, %v3510
        %v3798 = vadd.f32 %v3797, %v3511
        %v3799 = vadd.f32 %v3798, %v3512
        %v3800 = vadd.f32 %v3799, %v3513
        %v3801 = vadd.f32 %v3800, %v3514
        %v3802 = vadd.f32 %v3801, %v3515
        %v3803 = vadd.f32 %v3802, %v3516
        %v3804 = vadd.f32 %v3803, %v3517
        %v3805 = vadd.f32 %v3804, %v3518
        %v3806 = vadd.f32 %v3805, %v3519
        %v3807 = vadd.f32 %v3806, %v3520
        %v3808 = vadd.f32 %v3807, %v3521
        %v3809 = vadd.f32 %v3808, %v3522
        %v3810 = vadd.f32 %v3809, %v3523
        %v3811 = vadd.f32 %v3810, %v3524
        %v3812 = vadd.f32 %v3811, %v3525
        %v3813 = vadd.f32 %v3812, %v3526
        %v3814 = vadd.f32 %v3813, %v3527
        %v3815 = vadd.f32 %v3814, %v3528
        %v3816 = vadd.f32 %v3815, %v3529
        %v3817 = vadd.f32 %v3816, %v3530
        %v3818 = vadd.f32 %v3817, %v3531
        %v3819 = vadd.f32 %v3818, %v3532
        %v3820 = vadd.f32 %v3819, %v3533
        %v3821 = vadd.f32 %v3820, %v3534
        %v3822 = vadd.f32 %v3821, %v3535
        %v3823 = vadd.f32 %v3822, %v3536
        %v3824 = vadd.f32 %v3823, %v3537
        %v3825 = vadd.f32 %v3824, %v3538
        %v3826 = vadd.f32 %v3825, %v3539
        %v3827 = vadd.f32 %v3826, %v3540
        %v3828 = vadd.f32 %v3827, %v3541
        %v3829 = vadd.f32 %v3828, %v3542
        %v3830 = vadd.f32 %v3829, %v3543
        %v3831 = vadd.f32 %v3830, %v3544
        %v3832 = vadd.f32 %v3831, %v3545
        %v3833 = vadd.f32 %v3832, %v3546
        %v3834 = vadd.f32 %v3833, %v3547
        %v3835 = vadd.f32 %v3834, %v3548
        %v3836 = vadd.f32 %v3835, %v3549
        %v3837 = vadd.f32 %v3836, %v3550
        %v3838 = vadd.f32 %v3837, %v3551
        %v3839 = vadd.f32 %v3838, %v3552
        %v3840 = vadd.f32 %v3839, %v3553
        %v3841 = vadd.f32 %v3840, %v3554
        %v3842 = vadd.f32 %v3841, %v3555
        %v3843 = vadd.f32 %v3842, %v3556
        %v3844 = vadd.f32 %v3843, %v3557
        %v3845 = vadd.f32 %v3844, %v3558
        %v3846 = vadd.f32 %v3845, %v3559
        %v3847 = vadd.f32 %v3846, %v3560
        %v3848 = vadd.f32 %v3847, %v3561
        %v3849 = vadd.f32 %v3848, %v3562
        %v3850 = vadd.f32 %v3849, %v3563
        %v3851 = vadd.f32 %v3850, %v3564
        %v3852 = vadd.f32 %v3851, %v3565
        %v3853 = vadd.f32 %v3852, %v3566
        %v3854 = vadd.f32 %v3853, %v3567
        %v3855 = vadd.f32 %v3854, %v3568
        %v3856 = vadd.f32 %v3855, %v3569
        %v3857 = vadd.f32 %v3856, %v3570
        %v3858 = vadd.f32 %v3857, %v3571
        %v3859 = vadd.f32 %v3858, %v3572
        %v3860 = vadd.f32 %v3859, %v3573
        %v3861 = vadd.f32 %v3860, %v3574
        %v3862 = vadd.f32 %v3861, %v3575
        %v3863 = vadd.f32 %v3862, %v3576
        %v3864 = vadd.f32 %v3863, %v3577
        %v3865 = vadd.f32 %v3864, %v3578
        %v3866 = vadd.f32 %v3865, %v3579
        %v3867 = vadd.f32 %v3866, %v3580
        %v3868 = vadd.f32 %v3867, %v3581
        %v3869 = vadd.f32 %v3868, %v3582
        %v3870 = vadd.f32 %v3869, %v3583
        %v3871 = vadd.f32 %v3870, %v3584
        %v3872 = vadd.f32 %v3871, %v3585
        %v3873 = vadd.f32 %v3872, %v3586
        %v3874 = vadd.f32 %v3873, %v3587
        %v3875 = vadd.f32 %v3874, %v3588
        %v3876 = vadd.f32 %v3875, %v3589
        %v3877 = vadd.f32 %v3876, %v3590
        %v3878 = vadd.f32 %v3877, %v3591
        %v3879 = vadd.f32 %v3878, %v3592
        %v3880 = vadd.f32 %v3879, %v3593
        %v3881 = vadd.f32 %v3880, %v3594
        %v3882 = vadd.f32 %v3881, %v3595
        %v3883 = vadd.f32 %v3882, %v3596
        %v3884 = vadd.f32 %v3883, %v3597
        %v3885 = vadd.f32 %v3884, %v3598
        %v3886 = vadd.f32 %v3885, %v3599
        %v3887 = vadd.f32 %v3886, %v3600
        %v3888 = vadd.f32 %v3887, %v3601
        %v3889 = vadd.f32 %v3888, %v3602
        %v3890 = vadd.f32 %v3889, %v3603
        %v3891 = vadd.f32 %v3890, %v3604
        %v3892 = vadd.f32 %v3891, %v3605
        %v3893 = vadd.f32 %v3892, %v3606
        %v3894 = vadd.f32 %v3893, %v3607
        %v3895 = vadd.f32 %v3894, %v3608
        %v3896 = vadd.f32 %v3895, %v3609
        %v3897 = vadd.f32 %v3896, %v3610
        %v3898 = vadd.f32 %v3897, %v3611
        %v3899 = vadd.f32 %v3898, %v3612
        %v3900 = vadd.f32 %v3899, %v3613
        %v3901 = vadd.f32 %v3900, %v3614
        %v3902 = vadd.f32 %v3901, %v3615
        %v3903 = vadd.f32 %v3902, %v3616
        %v3904 = vadd.f32 %v3903, %v3617
        %v3905 = vadd.f32 %v3904, %v3618
        %v3906 = vadd.f32 %v3905, %v3619
        %v3907 = vadd.f32 %v3906, %v3620
        %v3908 = vadd.f32 %v3907, %v3621
        %v3909 = vadd.f32 %v3908, %v3622
        %v3910 = vadd.f32 %v3909, %v3623
        %v3911 = vadd.f32 %v3910, %v3624
        %v3912 = vadd.f32 %v3911, %v3625
        %v3913 = vadd.f32 %v3912, %v3626
        %v3914 = vadd.f32 %v3913, %v3627
        %v3915 = vadd.f32 %v3914, %v3628
        %v3916 = vadd.f32 %v3915, %v3629
        %v3917 = vadd.f32 %v3916, %v3630
        %v3918 = vadd.f32 %v3917, %v3631
        %v3919 = vadd.f32 %v3918, %v3632
        %v3920 = vadd.f32 %v3919, %v3633
        %v3921 = vadd.f32 %v3920, %v3634
        %v3922 = vadd.f32 %v3921, %v3635
        %v3923 = vadd.f32 %v3922, %v3636
        %v3924 = vadd.f32 %v3923, %v3637
        %v3925 = vadd.f32 %v3924, %v3638
        %v3926 = vadd.f32 %v3925, %v3639
        %v3927 = vadd.f32 %v3926, %v3640
        %v3928 = vadd.f32 %v3927, %v3641
        %v3929 = vadd.f32 %v3928, %v3642
        %v3930 = vadd.f32 %v3929, %v3643
        %v3931 = vadd.f32 %v3930, %v3644
        %v3932 = vadd.f32 %v3931, %v3645
        %v3933 = vadd.f32 %v3932, %v3646
        %v3934 = vadd.f32 %v3933, %v3647
        %v3935 = vadd.f32 %v3934, %v3648
        %v3936 = vadd.f32 %v3935, %v3649
        %v3937 = vadd.f32 %v3936, %v3650
        %v3938 = vadd.f32 %v3937, %v3651
        %v3939 = vadd.f32 %v3938, %v3652
        %v3940 = vadd.f32 %v3939, %v3653
        %v3941 = vadd.f32 %v3940, %v3654
        %v3942 = vadd.f32 %v3941, %v3655
        %v3943 = vadd.f32 %v3942, %v3656
        %v3944 = vadd.f32 %v3943, %v3657
        %v3945 = vadd.f32 %v3944, %v3658
        %v3946 = vadd.f32 %v3945, %v3659
        %v3947 = vadd.f32 %v3946, %v3660
        %v3948 = vadd.f32 %v3947, %v3661
        %v3949 = vadd.f32 %v3948, %v3662
        %v3950 = vadd.f32 %v3949, %v3663
        %v3951 = vadd.f32 %v3950, %v3664
        %v3952 = vadd.f32 %v3951, %v3665
        %v3953 = vadd.f32 %v3952, %v3666
        %v3954 = vadd.f32 %v3953, %v3667
        %v3955 = vadd.f32 %v3954, %v3668
        %v3956 = vadd.f32 %v3955, %v3669
        %v3957 = vadd.f32 %v3956, %v3670
        %v3958 = vadd.f32 %v3957, %v3671
        %v3959 = vadd.f32 %v3958, %v3672
        %v3960 = vadd.f32 %v3959, %v3673
        %v3961 = vadd.f32 %v3960, %v3674
        %v3962 = vadd.f32 %v3961, %v3675
        %v3963 = vadd.f32 %v3962, %v3676
        %v3964 = vadd.f32 %v3963, %v3677
        %v3965 = vadd.f32 %v3964, %v3678
        %v3966 = vadd.f32 %v3965, %v3679
        %v3967 = vadd.f32 %v3966, %v3680
        %v3968 = vadd.f32 %v3967, %v3681
        %v3969 = vadd.f32 %v3968, %v3682
        %v3970 = vadd.f32 %v3969, %v3683
        %v3971 = vadd.f32 %v3970, %v3684
        %v3972 = vadd.f32 %v3971, %v3685
        %v3973 = vadd.f32 %v3972, %v3686
        %v3974 = vadd.f32 %v3973, %v3687
        %v3975 = vadd.f32 %v3974, %v3688
        %v3976 = vadd.f32 %v3975, %v3689
        %v3977 = vadd.f32 %v3976, %v3690
        %v3978 = vadd.f32 %v3977, %v3691
        %v3979 = vadd.f32 %v3978, %v3692
        %v3980 = vadd.f32 %v3979, %v3693
        %v3981 = vadd.f32 %v3980, %v3694
        %v3982 = vadd.f32 %v3981, %v3695
        %v3983 = vadd.f32 %v3982, %v3696
        %v3984 = vadd.f32 %v3983, %v3697
        %v3985 = vadd.f32 %v3984, %v3698
        %v3986 = vadd.f32 %v3985, %v3699
        %v3987 = vadd.f32 %v3986, %v3700
        %v3988 = vadd.f32 %v3987, %v3701
        %v3989 = vadd.f32 %v3988, %v3702
        %v3990 = vadd.f32 %v3989, %v3703
        %v3991 = vadd.f32 %v3990, %v3704
        %v3992 = vadd.f32 %v3991, %v3705
        %v3993 = vadd.f32 %v3992, %v3706
        %v3994 = vadd.f32 %v3993, %v3707
        %v3995 = vadd.f32 %v3994, %v3708
        %v3996 = vadd.f32 %v3995, %v3709
        %v3997 = vadd.f32 %v3996, %v3710
        %v3998 = vadd.f32 %v3997, %v3711
        %v3999 = vadd.f32 %v3998, %v3712
        %v4000 = vadd.f32 %v3999, %v3713
        %v4001 = vadd.f32 %v4000, %v3714
        %v4002 = vadd.f32 %v4001, %v3715
        %v4003 = vadd.f32 %v4002, %v3716
        %v4004 = vadd.f32 %v4003, %v3717
        %v4005 = vadd.f32 %v4004, %v3718
        %v4006 = vadd.f32 %v4005, %v3719
        %v4007 = vadd.f32 %v4006, %v3720
        %v4008 = vadd.f32 %v4007, %v3721
        %v4009 = vadd.f32 %v4008, %v3722
        %v4010 = vadd.f32 %v4009, %v3723
        %v4011 = vadd.f32 %v4010, %v3724
        %v4012 = vadd.f32 %v4011, %v3725
        %v4013 = vadd.f32 %v4012, %v3726
        %v4014 = vadd.f32 %v4013, %v3727
        %v4015 = vadd.f32 %v4014, %v3728
        %v4016 = vadd.f32 %v4015, %v3729
        %v4017 = vadd.f32 %v4016, %v3730
        %v4018 = vadd.f32 %v4017, %v3731
        %v4019 = vadd.f32 %v4018, %v3732
        %v4020 = vadd.f32 %v4019, %v3733
        %v4021 = vadd.f32 %v4020, %v3734
        %v4022 = vadd.f32 %v4021, %v3735
        %v4023 = vadd.f32 %v4022, %v3736
        %v4024 = vadd.f32 %v4023, %v3737
        %v4025 = vadd.f32 %v4024, %v3738
        %v4026 = vadd.f32 %v4025, %v3739
        %v4027 = vadd.f32 %v4026, %v3740
        %v4028 = vadd.f32 %v4027, %v3741
        %v4029 = vadd.f32 %v4028, %v3742
        %v4030 = vadd.f32 %v4029, %v3743
        %v4031 = vadd.f32 %v4030, %v3744
        %v4032 = vadd.f32 %v3168, %v4031
        %v4033 = vld [vmem:[%s515] sm:$0xff]
        %v4034 = vld [vmem:[%s515 + $0x8] sm:$0xff]
        %v4035 = vld [vmem:[%s515 + $0x10] sm:$0xff]
        %v4036 = vld [vmem:[%s515 + $0x18] sm:$0xff]
        %v4037 = vld [vmem:[%s515 + $0x20] sm:$0xff]
        %v4038 = vld [vmem:[%s515 + $0x28] sm:$0xff]
        %v4039 = vld [vmem:[%s515 + $0x30] sm:$0xff]
        %v4040 = vld [vmem:[%s515 + $0x38] sm:$0xff]
        %v4041 = vld [vmem:[%s515 + $0x40] sm:$0xff]
        %v4042 = vld [vmem:[%s515 + $0x48] sm:$0xff]
        %v4043 = vld [vmem:[%s515 + $0x50] sm:$0xff]
        %v4044 = vld [vmem:[%s515 + $0x58] sm:$0xff]
        %v4045 = vld [vmem:[%s515 + $0x60] sm:$0xff]
        %v4046 = vld [vmem:[%s515 + $0x68] sm:$0xff]
        %v4047 = vld [vmem:[%s515 + $0x70] sm:$0xff]
        %v4048 = vld [vmem:[%s515 + $0x78] sm:$0xff]
        %v4049 = vld [vmem:[%s515 + $0x80] sm:$0xff]
        %v4050 = vld [vmem:[%s515 + $0x88] sm:$0xff]
        %v4051 = vld [vmem:[%s515 + $0x90] sm:$0xff]
        %v4052 = vld [vmem:[%s515 + $0x98] sm:$0xff]
        %v4053 = vld [vmem:[%s515 + $0xa0] sm:$0xff]
        %v4054 = vld [vmem:[%s515 + $0xa8] sm:$0xff]
        %v4055 = vld [vmem:[%s515 + $0xb0] sm:$0xff]
        %v4056 = vld [vmem:[%s515 + $0xb8] sm:$0xff]
        %v4057 = vld [vmem:[%s515 + $0xc0] sm:$0xff]
        %v4058 = vld [vmem:[%s515 + $0xc8] sm:$0xff]
        %v4059 = vld [vmem:[%s515 + $0xd0] sm:$0xff]
        %v4060 = vld [vmem:[%s515 + $0xd8] sm:$0xff]
        %v4061 = vld [vmem:[%s515 + $0xe0] sm:$0xff]
        %v4062 = vld [vmem:[%s515 + $0xe8] sm:$0xff]
        %v4063 = vld [vmem:[%s515 + $0xf0] sm:$0xff]
        %v4064 = vld [vmem:[%s515 + $0xf8] sm:$0xff]
        %v4065 = vld [vmem:[%s515 + $0x100] sm:$0xff]
        %v4066 = vld [vmem:[%s515 + $0x108] sm:$0xff]
        %v4067 = vld [vmem:[%s515 + $0x110] sm:$0xff]
        %v4068 = vld [vmem:[%s515 + $0x118] sm:$0xff]
        %v4069 = vld [vmem:[%s515 + $0x120] sm:$0xff]
        %v4070 = vld [vmem:[%s515 + $0x128] sm:$0xff]
        %v4071 = vld [vmem:[%s515 + $0x130] sm:$0xff]
        %v4072 = vld [vmem:[%s515 + $0x138] sm:$0xff]
        %v4073 = vld [vmem:[%s515 + $0x140] sm:$0xff]
        %v4074 = vld [vmem:[%s515 + $0x148] sm:$0xff]
        %v4075 = vld [vmem:[%s515 + $0x150] sm:$0xff]
        %v4076 = vld [vmem:[%s515 + $0x158] sm:$0xff]
        %v4077 = vld [vmem:[%s515 + $0x160] sm:$0xff]
        %v4078 = vld [vmem:[%s515 + $0x168] sm:$0xff]
        %v4079 = vld [vmem:[%s515 + $0x170] sm:$0xff]
        %v4080 = vld [vmem:[%s515 + $0x178] sm:$0xff]
        %v4081 = vld [vmem:[%s515 + $0x180] sm:$0xff]
        %v4082 = vld [vmem:[%s515 + $0x188] sm:$0xff]
        %v4083 = vld [vmem:[%s515 + $0x190] sm:$0xff]
        %v4084 = vld [vmem:[%s515 + $0x198] sm:$0xff]
        %v4085 = vld [vmem:[%s515 + $0x1a0] sm:$0xff]
        %v4086 = vld [vmem:[%s515 + $0x1a8] sm:$0xff]
        %v4087 = vld [vmem:[%s515 + $0x1b0] sm:$0xff]
        %v4088 = vld [vmem:[%s515 + $0x1b8] sm:$0xff]
        %v4089 = vld [vmem:[%s515 + $0x1c0] sm:$0xff]
        %v4090 = vld [vmem:[%s515 + $0x1c8] sm:$0xff]
        %v4091 = vld [vmem:[%s515 + $0x1d0] sm:$0xff]
        %v4092 = vld [vmem:[%s515 + $0x1d8] sm:$0xff]
        %v4093 = vld [vmem:[%s515 + $0x1e0] sm:$0xff]
        %v4094 = vld [vmem:[%s515 + $0x1e8] sm:$0xff]
        %v4095 = vld [vmem:[%s515 + $0x1f0] sm:$0xff]
        %v4096 = vld [vmem:[%s515 + $0x1f8] sm:$0xff]
        %v4097 = vld [vmem:[%s515 + $0x200] sm:$0xff]
        %v4098 = vld [vmem:[%s515 + $0x208] sm:$0xff]
        %v4099 = vld [vmem:[%s515 + $0x210] sm:$0xff]
        %v4100 = vld [vmem:[%s515 + $0x218] sm:$0xff]
        %v4101 = vld [vmem:[%s515 + $0x220] sm:$0xff]
        %v4102 = vld [vmem:[%s515 + $0x228] sm:$0xff]
        %v4103 = vld [vmem:[%s515 + $0x230] sm:$0xff]
        %v4104 = vld [vmem:[%s515 + $0x238] sm:$0xff]
        %v4105 = vld [vmem:[%s515 + $0x240] sm:$0xff]
        %v4106 = vld [vmem:[%s515 + $0x248] sm:$0xff]
        %v4107 = vld [vmem:[%s515 + $0x250] sm:$0xff]
        %v4108 = vld [vmem:[%s515 + $0x258] sm:$0xff]
        %v4109 = vld [vmem:[%s515 + $0x260] sm:$0xff]
        %v4110 = vld [vmem:[%s515 + $0x268] sm:$0xff]
        %v4111 = vld [vmem:[%s515 + $0x270] sm:$0xff]
        %v4112 = vld [vmem:[%s515 + $0x278] sm:$0xff]
        %v4113 = vld [vmem:[%s515 + $0x280] sm:$0xff]
        %v4114 = vld [vmem:[%s515 + $0x288] sm:$0xff]
        %v4115 = vld [vmem:[%s515 + $0x290] sm:$0xff]
        %v4116 = vld [vmem:[%s515 + $0x298] sm:$0xff]
        %v4117 = vld [vmem:[%s515 + $0x2a0] sm:$0xff]
        %v4118 = vld [vmem:[%s515 + $0x2a8] sm:$0xff]
        %v4119 = vld [vmem:[%s515 + $0x2b0] sm:$0xff]
        %v4120 = vld [vmem:[%s515 + $0x2b8] sm:$0xff]
        %v4121 = vld [vmem:[%s515 + $0x2c0] sm:$0xff]
        %v4122 = vld [vmem:[%s515 + $0x2c8] sm:$0xff]
        %v4123 = vld [vmem:[%s515 + $0x2d0] sm:$0xff]
        %v4124 = vld [vmem:[%s515 + $0x2d8] sm:$0xff]
        %v4125 = vld [vmem:[%s515 + $0x2e0] sm:$0xff]
        %v4126 = vld [vmem:[%s515 + $0x2e8] sm:$0xff]
        %v4127 = vld [vmem:[%s515 + $0x2f0] sm:$0xff]
        %v4128 = vld [vmem:[%s515 + $0x2f8] sm:$0xff]
        %v4129 = vld [vmem:[%s515 + $0x300] sm:$0xff]
        %v4130 = vld [vmem:[%s515 + $0x308] sm:$0xff]
        %v4131 = vld [vmem:[%s515 + $0x310] sm:$0xff]
        %v4132 = vld [vmem:[%s515 + $0x318] sm:$0xff]
        %v4133 = vld [vmem:[%s515 + $0x320] sm:$0xff]
        %v4134 = vld [vmem:[%s515 + $0x328] sm:$0xff]
        %v4135 = vld [vmem:[%s515 + $0x330] sm:$0xff]
        %v4136 = vld [vmem:[%s515 + $0x338] sm:$0xff]
        %v4137 = vld [vmem:[%s515 + $0x340] sm:$0xff]
        %v4138 = vld [vmem:[%s515 + $0x348] sm:$0xff]
        %v4139 = vld [vmem:[%s515 + $0x350] sm:$0xff]
        %v4140 = vld [vmem:[%s515 + $0x358] sm:$0xff]
        %v4141 = vld [vmem:[%s515 + $0x360] sm:$0xff]
        %v4142 = vld [vmem:[%s515 + $0x368] sm:$0xff]
        %v4143 = vld [vmem:[%s515 + $0x370] sm:$0xff]
        %v4144 = vld [vmem:[%s515 + $0x378] sm:$0xff]
        %v4145 = vld [vmem:[%s515 + $0x380] sm:$0xff]
        %v4146 = vld [vmem:[%s515 + $0x388] sm:$0xff]
        %v4147 = vld [vmem:[%s515 + $0x390] sm:$0xff]
        %v4148 = vld [vmem:[%s515 + $0x398] sm:$0xff]
        %v4149 = vld [vmem:[%s515 + $0x3a0] sm:$0xff]
        %v4150 = vld [vmem:[%s515 + $0x3a8] sm:$0xff]
        %v4151 = vld [vmem:[%s515 + $0x3b0] sm:$0xff]
        %v4152 = vld [vmem:[%s515 + $0x3b8] sm:$0xff]
        %v4153 = vld [vmem:[%s515 + $0x3c0] sm:$0xff]
        %v4154 = vld [vmem:[%s515 + $0x3c8] sm:$0xff]
        %v4155 = vld [vmem:[%s515 + $0x3d0] sm:$0xff]
        %v4156 = vld [vmem:[%s515 + $0x3d8] sm:$0xff]
        %v4157 = vld [vmem:[%s515 + $0x3e0] sm:$0xff]
        %v4158 = vld [vmem:[%s515 + $0x3e8] sm:$0xff]
        %v4159 = vld [vmem:[%s515 + $0x3f0] sm:$0xff]
        %v4160 = vld [vmem:[%s515 + $0x3f8] sm:$0xff]
        %v4161 = vld [vmem:[%s515 + $0x400] sm:$0xff]
        %v4162 = vld [vmem:[%s515 + $0x408] sm:$0xff]
        %v4163 = vld [vmem:[%s515 + $0x410] sm:$0xff]
        %v4164 = vld [vmem:[%s515 + $0x418] sm:$0xff]
        %v4165 = vld [vmem:[%s515 + $0x420] sm:$0xff]
        %v4166 = vld [vmem:[%s515 + $0x428] sm:$0xff]
        %v4167 = vld [vmem:[%s515 + $0x430] sm:$0xff]
        %v4168 = vld [vmem:[%s515 + $0x438] sm:$0xff]
        %v4169 = vld [vmem:[%s515 + $0x440] sm:$0xff]
        %v4170 = vld [vmem:[%s515 + $0x448] sm:$0xff]
        %v4171 = vld [vmem:[%s515 + $0x450] sm:$0xff]
        %v4172 = vld [vmem:[%s515 + $0x458] sm:$0xff]
        %v4173 = vld [vmem:[%s515 + $0x460] sm:$0xff]
        %v4174 = vld [vmem:[%s515 + $0x468] sm:$0xff]
        %v4175 = vld [vmem:[%s515 + $0x470] sm:$0xff]
        %v4176 = vld [vmem:[%s515 + $0x478] sm:$0xff]
        %v4177 = vld [vmem:[%s515 + $0x480] sm:$0xff]
        %v4178 = vld [vmem:[%s515 + $0x488] sm:$0xff]
        %v4179 = vld [vmem:[%s515 + $0x490] sm:$0xff]
        %v4180 = vld [vmem:[%s515 + $0x498] sm:$0xff]
        %v4181 = vld [vmem:[%s515 + $0x4a0] sm:$0xff]
        %v4182 = vld [vmem:[%s515 + $0x4a8] sm:$0xff]
        %v4183 = vld [vmem:[%s515 + $0x4b0] sm:$0xff]
        %v4184 = vld [vmem:[%s515 + $0x4b8] sm:$0xff]
        %v4185 = vld [vmem:[%s515 + $0x4c0] sm:$0xff]
        %v4186 = vld [vmem:[%s515 + $0x4c8] sm:$0xff]
        %v4187 = vld [vmem:[%s515 + $0x4d0] sm:$0xff]
        %v4188 = vld [vmem:[%s515 + $0x4d8] sm:$0xff]
        %v4189 = vld [vmem:[%s515 + $0x4e0] sm:$0xff]
        %v4190 = vld [vmem:[%s515 + $0x4e8] sm:$0xff]
        %v4191 = vld [vmem:[%s515 + $0x4f0] sm:$0xff]
        %v4192 = vld [vmem:[%s515 + $0x4f8] sm:$0xff]
        %v4193 = vld [vmem:[%s515 + $0x500] sm:$0xff]
        %v4194 = vld [vmem:[%s515 + $0x508] sm:$0xff]
        %v4195 = vld [vmem:[%s515 + $0x510] sm:$0xff]
        %v4196 = vld [vmem:[%s515 + $0x518] sm:$0xff]
        %v4197 = vld [vmem:[%s515 + $0x520] sm:$0xff]
        %v4198 = vld [vmem:[%s515 + $0x528] sm:$0xff]
        %v4199 = vld [vmem:[%s515 + $0x530] sm:$0xff]
        %v4200 = vld [vmem:[%s515 + $0x538] sm:$0xff]
        %v4201 = vld [vmem:[%s515 + $0x540] sm:$0xff]
        %v4202 = vld [vmem:[%s515 + $0x548] sm:$0xff]
        %v4203 = vld [vmem:[%s515 + $0x550] sm:$0xff]
        %v4204 = vld [vmem:[%s515 + $0x558] sm:$0xff]
        %v4205 = vld [vmem:[%s515 + $0x560] sm:$0xff]
        %v4206 = vld [vmem:[%s515 + $0x568] sm:$0xff]
        %v4207 = vld [vmem:[%s515 + $0x570] sm:$0xff]
        %v4208 = vld [vmem:[%s515 + $0x578] sm:$0xff]
        %v4209 = vld [vmem:[%s515 + $0x580] sm:$0xff]
        %v4210 = vld [vmem:[%s515 + $0x588] sm:$0xff]
        %v4211 = vld [vmem:[%s515 + $0x590] sm:$0xff]
        %v4212 = vld [vmem:[%s515 + $0x598] sm:$0xff]
        %v4213 = vld [vmem:[%s515 + $0x5a0] sm:$0xff]
        %v4214 = vld [vmem:[%s515 + $0x5a8] sm:$0xff]
        %v4215 = vld [vmem:[%s515 + $0x5b0] sm:$0xff]
        %v4216 = vld [vmem:[%s515 + $0x5b8] sm:$0xff]
        %v4217 = vld [vmem:[%s515 + $0x5c0] sm:$0xff]
        %v4218 = vld [vmem:[%s515 + $0x5c8] sm:$0xff]
        %v4219 = vld [vmem:[%s515 + $0x5d0] sm:$0xff]
        %v4220 = vld [vmem:[%s515 + $0x5d8] sm:$0xff]
        %v4221 = vld [vmem:[%s515 + $0x5e0] sm:$0xff]
        %v4222 = vld [vmem:[%s515 + $0x5e8] sm:$0xff]
        %v4223 = vld [vmem:[%s515 + $0x5f0] sm:$0xff]
        %v4224 = vld [vmem:[%s515 + $0x5f8] sm:$0xff]
        %v4225 = vld [vmem:[%s515 + $0x600] sm:$0xff]
        %v4226 = vld [vmem:[%s515 + $0x608] sm:$0xff]
        %v4227 = vld [vmem:[%s515 + $0x610] sm:$0xff]
        %v4228 = vld [vmem:[%s515 + $0x618] sm:$0xff]
        %v4229 = vld [vmem:[%s515 + $0x620] sm:$0xff]
        %v4230 = vld [vmem:[%s515 + $0x628] sm:$0xff]
        %v4231 = vld [vmem:[%s515 + $0x630] sm:$0xff]
        %v4232 = vld [vmem:[%s515 + $0x638] sm:$0xff]
        %v4233 = vld [vmem:[%s515 + $0x640] sm:$0xff]
        %v4234 = vld [vmem:[%s515 + $0x648] sm:$0xff]
        %v4235 = vld [vmem:[%s515 + $0x650] sm:$0xff]
        %v4236 = vld [vmem:[%s515 + $0x658] sm:$0xff]
        %v4237 = vld [vmem:[%s515 + $0x660] sm:$0xff]
        %v4238 = vld [vmem:[%s515 + $0x668] sm:$0xff]
        %v4239 = vld [vmem:[%s515 + $0x670] sm:$0xff]
        %v4240 = vld [vmem:[%s515 + $0x678] sm:$0xff]
        %v4241 = vld [vmem:[%s515 + $0x680] sm:$0xff]
        %v4242 = vld [vmem:[%s515 + $0x688] sm:$0xff]
        %v4243 = vld [vmem:[%s515 + $0x690] sm:$0xff]
        %v4244 = vld [vmem:[%s515 + $0x698] sm:$0xff]
        %v4245 = vld [vmem:[%s515 + $0x6a0] sm:$0xff]
        %v4246 = vld [vmem:[%s515 + $0x6a8] sm:$0xff]
        %v4247 = vld [vmem:[%s515 + $0x6b0] sm:$0xff]
        %v4248 = vld [vmem:[%s515 + $0x6b8] sm:$0xff]
        %v4249 = vld [vmem:[%s515 + $0x6c0] sm:$0xff]
        %v4250 = vld [vmem:[%s515 + $0x6c8] sm:$0xff]
        %v4251 = vld [vmem:[%s515 + $0x6d0] sm:$0xff]
        %v4252 = vld [vmem:[%s515 + $0x6d8] sm:$0xff]
        %v4253 = vld [vmem:[%s515 + $0x6e0] sm:$0xff]
        %v4254 = vld [vmem:[%s515 + $0x6e8] sm:$0xff]
        %v4255 = vld [vmem:[%s515 + $0x6f0] sm:$0xff]
        %v4256 = vld [vmem:[%s515 + $0x6f8] sm:$0xff]
        %v4257 = vld [vmem:[%s515 + $0x700] sm:$0xff]
        %v4258 = vld [vmem:[%s515 + $0x708] sm:$0xff]
        %v4259 = vld [vmem:[%s515 + $0x710] sm:$0xff]
        %v4260 = vld [vmem:[%s515 + $0x718] sm:$0xff]
        %v4261 = vld [vmem:[%s515 + $0x720] sm:$0xff]
        %v4262 = vld [vmem:[%s515 + $0x728] sm:$0xff]
        %v4263 = vld [vmem:[%s515 + $0x730] sm:$0xff]
        %v4264 = vld [vmem:[%s515 + $0x738] sm:$0xff]
        %v4265 = vld [vmem:[%s515 + $0x740] sm:$0xff]
        %v4266 = vld [vmem:[%s515 + $0x748] sm:$0xff]
        %v4267 = vld [vmem:[%s515 + $0x750] sm:$0xff]
        %v4268 = vld [vmem:[%s515 + $0x758] sm:$0xff]
        %v4269 = vld [vmem:[%s515 + $0x760] sm:$0xff]
        %v4270 = vld [vmem:[%s515 + $0x768] sm:$0xff]
        %v4271 = vld [vmem:[%s515 + $0x770] sm:$0xff]
        %v4272 = vld [vmem:[%s515 + $0x778] sm:$0xff]
        %v4273 = vld [vmem:[%s515 + $0x780] sm:$0xff]
        %v4274 = vld [vmem:[%s515 + $0x788] sm:$0xff]
        %v4275 = vld [vmem:[%s515 + $0x790] sm:$0xff]
        %v4276 = vld [vmem:[%s515 + $0x798] sm:$0xff]
        %v4277 = vld [vmem:[%s515 + $0x7a0] sm:$0xff]
        %v4278 = vld [vmem:[%s515 + $0x7a8] sm:$0xff]
        %v4279 = vld [vmem:[%s515 + $0x7b0] sm:$0xff]
        %v4280 = vld [vmem:[%s515 + $0x7b8] sm:$0xff]
        %v4281 = vld [vmem:[%s515 + $0x7c0] sm:$0xff]
        %v4282 = vld [vmem:[%s515 + $0x7c8] sm:$0xff]
        %v4283 = vld [vmem:[%s515 + $0x7d0] sm:$0xff]
        %v4284 = vld [vmem:[%s515 + $0x7d8] sm:$0xff]
        %v4285 = vld [vmem:[%s515 + $0x7e0] sm:$0xff]
        %v4286 = vld [vmem:[%s515 + $0x7e8] sm:$0xff]
        %v4287 = vld [vmem:[%s515 + $0x7f0] sm:$0xff]
        %v4288 = vld [vmem:[%s515 + $0x7f8] sm:$0xff]
        %v4289 = vld [vmem:[%s515 + $0x800] sm:$0xff]
        %v4290 = vld [vmem:[%s515 + $0x808] sm:$0xff]
        %v4291 = vld [vmem:[%s515 + $0x810] sm:$0xff]
        %v4292 = vld [vmem:[%s515 + $0x818] sm:$0xff]
        %v4293 = vld [vmem:[%s515 + $0x820] sm:$0xff]
        %v4294 = vld [vmem:[%s515 + $0x828] sm:$0xff]
        %v4295 = vld [vmem:[%s515 + $0x830] sm:$0xff]
        %v4296 = vld [vmem:[%s515 + $0x838] sm:$0xff]
        %v4297 = vld [vmem:[%s515 + $0x840] sm:$0xff]
        %v4298 = vld [vmem:[%s515 + $0x848] sm:$0xff]
        %v4299 = vld [vmem:[%s515 + $0x850] sm:$0xff]
        %v4300 = vld [vmem:[%s515 + $0x858] sm:$0xff]
        %v4301 = vld [vmem:[%s515 + $0x860] sm:$0xff]
        %v4302 = vld [vmem:[%s515 + $0x868] sm:$0xff]
        %v4303 = vld [vmem:[%s515 + $0x870] sm:$0xff]
        %v4304 = vld [vmem:[%s515 + $0x878] sm:$0xff]
        %v4305 = vld [vmem:[%s515 + $0x880] sm:$0xff]
        %v4306 = vld [vmem:[%s515 + $0x888] sm:$0xff]
        %v4307 = vld [vmem:[%s515 + $0x890] sm:$0xff]
        %v4308 = vld [vmem:[%s515 + $0x898] sm:$0xff]
        %v4309 = vld [vmem:[%s515 + $0x8a0] sm:$0xff]
        %v4310 = vld [vmem:[%s515 + $0x8a8] sm:$0xff]
        %v4311 = vld [vmem:[%s515 + $0x8b0] sm:$0xff]
        %v4312 = vld [vmem:[%s515 + $0x8b8] sm:$0xff]
        %v4313 = vld [vmem:[%s515 + $0x8c0] sm:$0xff]
        %v4314 = vld [vmem:[%s515 + $0x8c8] sm:$0xff]
        %v4315 = vld [vmem:[%s515 + $0x8d0] sm:$0xff]
        %v4316 = vld [vmem:[%s515 + $0x8d8] sm:$0xff]
        %v4317 = vld [vmem:[%s515 + $0x8e0] sm:$0xff]
        %v4318 = vld [vmem:[%s515 + $0x8e8] sm:$0xff]
        %v4319 = vld [vmem:[%s515 + $0x8f0] sm:$0xff]
        %v4320 = vld [vmem:[%s515 + $0x8f8] sm:$0xff]
        %v4321 = vmul.f32 %v4033, %v4033
        %v4322 = vmul.f32 %v4034, %v4034
        %v4323 = vmul.f32 %v4035, %v4035
        %v4324 = vmul.f32 %v4036, %v4036
        %v4325 = vmul.f32 %v4037, %v4037
        %v4326 = vmul.f32 %v4038, %v4038
        %v4327 = vmul.f32 %v4039, %v4039
        %v4328 = vmul.f32 %v4040, %v4040
        %v4329 = vmul.f32 %v4041, %v4041
        %v4330 = vmul.f32 %v4042, %v4042
        %v4331 = vmul.f32 %v4043, %v4043
        %v4332 = vmul.f32 %v4044, %v4044
        %v4333 = vmul.f32 %v4045, %v4045
        %v4334 = vmul.f32 %v4046, %v4046
        %v4335 = vmul.f32 %v4047, %v4047
        %v4336 = vmul.f32 %v4048, %v4048
        %v4337 = vmul.f32 %v4049, %v4049
        %v4338 = vmul.f32 %v4050, %v4050
        %v4339 = vmul.f32 %v4051, %v4051
        %v4340 = vmul.f32 %v4052, %v4052
        %v4341 = vmul.f32 %v4053, %v4053
        %v4342 = vmul.f32 %v4054, %v4054
        %v4343 = vmul.f32 %v4055, %v4055
        %v4344 = vmul.f32 %v4056, %v4056
        %v4345 = vmul.f32 %v4057, %v4057
        %v4346 = vmul.f32 %v4058, %v4058
        %v4347 = vmul.f32 %v4059, %v4059
        %v4348 = vmul.f32 %v4060, %v4060
        %v4349 = vmul.f32 %v4061, %v4061
        %v4350 = vmul.f32 %v4062, %v4062
        %v4351 = vmul.f32 %v4063, %v4063
        %v4352 = vmul.f32 %v4064, %v4064
        %v4353 = vmul.f32 %v4065, %v4065
        %v4354 = vmul.f32 %v4066, %v4066
        %v4355 = vmul.f32 %v4067, %v4067
        %v4356 = vmul.f32 %v4068, %v4068
        %v4357 = vmul.f32 %v4069, %v4069
        %v4358 = vmul.f32 %v4070, %v4070
        %v4359 = vmul.f32 %v4071, %v4071
        %v4360 = vmul.f32 %v4072, %v4072
        %v4361 = vmul.f32 %v4073, %v4073
        %v4362 = vmul.f32 %v4074, %v4074
        %v4363 = vmul.f32 %v4075, %v4075
        %v4364 = vmul.f32 %v4076, %v4076
        %v4365 = vmul.f32 %v4077, %v4077
        %v4366 = vmul.f32 %v4078, %v4078
        %v4367 = vmul.f32 %v4079, %v4079
        %v4368 = vmul.f32 %v4080, %v4080
        %v4369 = vmul.f32 %v4081, %v4081
        %v4370 = vmul.f32 %v4082, %v4082
        %v4371 = vmul.f32 %v4083, %v4083
        %v4372 = vmul.f32 %v4084, %v4084
        %v4373 = vmul.f32 %v4085, %v4085
        %v4374 = vmul.f32 %v4086, %v4086
        %v4375 = vmul.f32 %v4087, %v4087
        %v4376 = vmul.f32 %v4088, %v4088
        %v4377 = vmul.f32 %v4089, %v4089
        %v4378 = vmul.f32 %v4090, %v4090
        %v4379 = vmul.f32 %v4091, %v4091
        %v4380 = vmul.f32 %v4092, %v4092
        %v4381 = vmul.f32 %v4093, %v4093
        %v4382 = vmul.f32 %v4094, %v4094
        %v4383 = vmul.f32 %v4095, %v4095
        %v4384 = vmul.f32 %v4096, %v4096
        %v4385 = vmul.f32 %v4097, %v4097
        %v4386 = vmul.f32 %v4098, %v4098
        %v4387 = vmul.f32 %v4099, %v4099
        %v4388 = vmul.f32 %v4100, %v4100
        %v4389 = vmul.f32 %v4101, %v4101
        %v4390 = vmul.f32 %v4102, %v4102
        %v4391 = vmul.f32 %v4103, %v4103
        %v4392 = vmul.f32 %v4104, %v4104
        %v4393 = vmul.f32 %v4105, %v4105
        %v4394 = vmul.f32 %v4106, %v4106
        %v4395 = vmul.f32 %v4107, %v4107
        %v4396 = vmul.f32 %v4108, %v4108
        %v4397 = vmul.f32 %v4109, %v4109
        %v4398 = vmul.f32 %v4110, %v4110
        %v4399 = vmul.f32 %v4111, %v4111
        %v4400 = vmul.f32 %v4112, %v4112
        %v4401 = vmul.f32 %v4113, %v4113
        %v4402 = vmul.f32 %v4114, %v4114
        %v4403 = vmul.f32 %v4115, %v4115
        %v4404 = vmul.f32 %v4116, %v4116
        %v4405 = vmul.f32 %v4117, %v4117
        %v4406 = vmul.f32 %v4118, %v4118
        %v4407 = vmul.f32 %v4119, %v4119
        %v4408 = vmul.f32 %v4120, %v4120
        %v4409 = vmul.f32 %v4121, %v4121
        %v4410 = vmul.f32 %v4122, %v4122
        %v4411 = vmul.f32 %v4123, %v4123
        %v4412 = vmul.f32 %v4124, %v4124
        %v4413 = vmul.f32 %v4125, %v4125
        %v4414 = vmul.f32 %v4126, %v4126
        %v4415 = vmul.f32 %v4127, %v4127
        %v4416 = vmul.f32 %v4128, %v4128
        %v4417 = vmul.f32 %v4129, %v4129
        %v4418 = vmul.f32 %v4130, %v4130
        %v4419 = vmul.f32 %v4131, %v4131
        %v4420 = vmul.f32 %v4132, %v4132
        %v4421 = vmul.f32 %v4133, %v4133
        %v4422 = vmul.f32 %v4134, %v4134
        %v4423 = vmul.f32 %v4135, %v4135
        %v4424 = vmul.f32 %v4136, %v4136
        %v4425 = vmul.f32 %v4137, %v4137
        %v4426 = vmul.f32 %v4138, %v4138
        %v4427 = vmul.f32 %v4139, %v4139
        %v4428 = vmul.f32 %v4140, %v4140
        %v4429 = vmul.f32 %v4141, %v4141
        %v4430 = vmul.f32 %v4142, %v4142
        %v4431 = vmul.f32 %v4143, %v4143
        %v4432 = vmul.f32 %v4144, %v4144
        %v4433 = vmul.f32 %v4145, %v4145
        %v4434 = vmul.f32 %v4146, %v4146
        %v4435 = vmul.f32 %v4147, %v4147
        %v4436 = vmul.f32 %v4148, %v4148
        %v4437 = vmul.f32 %v4149, %v4149
        %v4438 = vmul.f32 %v4150, %v4150
        %v4439 = vmul.f32 %v4151, %v4151
        %v4440 = vmul.f32 %v4152, %v4152
        %v4441 = vmul.f32 %v4153, %v4153
        %v4442 = vmul.f32 %v4154, %v4154
        %v4443 = vmul.f32 %v4155, %v4155
        %v4444 = vmul.f32 %v4156, %v4156
        %v4445 = vmul.f32 %v4157, %v4157
        %v4446 = vmul.f32 %v4158, %v4158
        %v4447 = vmul.f32 %v4159, %v4159
        %v4448 = vmul.f32 %v4160, %v4160
        %v4449 = vmul.f32 %v4161, %v4161
        %v4450 = vmul.f32 %v4162, %v4162
        %v4451 = vmul.f32 %v4163, %v4163
        %v4452 = vmul.f32 %v4164, %v4164
        %v4453 = vmul.f32 %v4165, %v4165
        %v4454 = vmul.f32 %v4166, %v4166
        %v4455 = vmul.f32 %v4167, %v4167
        %v4456 = vmul.f32 %v4168, %v4168
        %v4457 = vmul.f32 %v4169, %v4169
        %v4458 = vmul.f32 %v4170, %v4170
        %v4459 = vmul.f32 %v4171, %v4171
        %v4460 = vmul.f32 %v4172, %v4172
        %v4461 = vmul.f32 %v4173, %v4173
        %v4462 = vmul.f32 %v4174, %v4174
        %v4463 = vmul.f32 %v4175, %v4175
        %v4464 = vmul.f32 %v4176, %v4176
        %v4465 = vmul.f32 %v4177, %v4177
        %v4466 = vmul.f32 %v4178, %v4178
        %v4467 = vmul.f32 %v4179, %v4179
        %v4468 = vmul.f32 %v4180, %v4180
        %v4469 = vmul.f32 %v4181, %v4181
        %v4470 = vmul.f32 %v4182, %v4182
        %v4471 = vmul.f32 %v4183, %v4183
        %v4472 = vmul.f32 %v4184, %v4184
        %v4473 = vmul.f32 %v4185, %v4185
        %v4474 = vmul.f32 %v4186, %v4186
        %v4475 = vmul.f32 %v4187, %v4187
        %v4476 = vmul.f32 %v4188, %v4188
        %v4477 = vmul.f32 %v4189, %v4189
        %v4478 = vmul.f32 %v4190, %v4190
        %v4479 = vmul.f32 %v4191, %v4191
        %v4480 = vmul.f32 %v4192, %v4192
        %v4481 = vmul.f32 %v4193, %v4193
        %v4482 = vmul.f32 %v4194, %v4194
        %v4483 = vmul.f32 %v4195, %v4195
        %v4484 = vmul.f32 %v4196, %v4196
        %v4485 = vmul.f32 %v4197, %v4197
        %v4486 = vmul.f32 %v4198, %v4198
        %v4487 = vmul.f32 %v4199, %v4199
        %v4488 = vmul.f32 %v4200, %v4200
        %v4489 = vmul.f32 %v4201, %v4201
        %v4490 = vmul.f32 %v4202, %v4202
        %v4491 = vmul.f32 %v4203, %v4203
        %v4492 = vmul.f32 %v4204, %v4204
        %v4493 = vmul.f32 %v4205, %v4205
        %v4494 = vmul.f32 %v4206, %v4206
        %v4495 = vmul.f32 %v4207, %v4207
        %v4496 = vmul.f32 %v4208, %v4208
        %v4497 = vmul.f32 %v4209, %v4209
        %v4498 = vmul.f32 %v4210, %v4210
        %v4499 = vmul.f32 %v4211, %v4211
        %v4500 = vmul.f32 %v4212, %v4212
        %v4501 = vmul.f32 %v4213, %v4213
        %v4502 = vmul.f32 %v4214, %v4214
        %v4503 = vmul.f32 %v4215, %v4215
        %v4504 = vmul.f32 %v4216, %v4216
        %v4505 = vmul.f32 %v4217, %v4217
        %v4506 = vmul.f32 %v4218, %v4218
        %v4507 = vmul.f32 %v4219, %v4219
        %v4508 = vmul.f32 %v4220, %v4220
        %v4509 = vmul.f32 %v4221, %v4221
        %v4510 = vmul.f32 %v4222, %v4222
        %v4511 = vmul.f32 %v4223, %v4223
        %v4512 = vmul.f32 %v4224, %v4224
        %v4513 = vmul.f32 %v4225, %v4225
        %v4514 = vmul.f32 %v4226, %v4226
        %v4515 = vmul.f32 %v4227, %v4227
        %v4516 = vmul.f32 %v4228, %v4228
        %v4517 = vmul.f32 %v4229, %v4229
        %v4518 = vmul.f32 %v4230, %v4230
        %v4519 = vmul.f32 %v4231, %v4231
        %v4520 = vmul.f32 %v4232, %v4232
        %v4521 = vmul.f32 %v4233, %v4233
        %v4522 = vmul.f32 %v4234, %v4234
        %v4523 = vmul.f32 %v4235, %v4235
        %v4524 = vmul.f32 %v4236, %v4236
        %v4525 = vmul.f32 %v4237, %v4237
        %v4526 = vmul.f32 %v4238, %v4238
        %v4527 = vmul.f32 %v4239, %v4239
        %v4528 = vmul.f32 %v4240, %v4240
        %v4529 = vmul.f32 %v4241, %v4241
        %v4530 = vmul.f32 %v4242, %v4242
        %v4531 = vmul.f32 %v4243, %v4243
        %v4532 = vmul.f32 %v4244, %v4244
        %v4533 = vmul.f32 %v4245, %v4245
        %v4534 = vmul.f32 %v4246, %v4246
        %v4535 = vmul.f32 %v4247, %v4247
        %v4536 = vmul.f32 %v4248, %v4248
        %v4537 = vmul.f32 %v4249, %v4249
        %v4538 = vmul.f32 %v4250, %v4250
        %v4539 = vmul.f32 %v4251, %v4251
        %v4540 = vmul.f32 %v4252, %v4252
        %v4541 = vmul.f32 %v4253, %v4253
        %v4542 = vmul.f32 %v4254, %v4254
        %v4543 = vmul.f32 %v4255, %v4255
        %v4544 = vmul.f32 %v4256, %v4256
        %v4545 = vmul.f32 %v4257, %v4257
        %v4546 = vmul.f32 %v4258, %v4258
        %v4547 = vmul.f32 %v4259, %v4259
        %v4548 = vmul.f32 %v4260, %v4260
        %v4549 = vmul.f32 %v4261, %v4261
        %v4550 = vmul.f32 %v4262, %v4262
        %v4551 = vmul.f32 %v4263, %v4263
        %v4552 = vmul.f32 %v4264, %v4264
        %v4553 = vmul.f32 %v4265, %v4265
        %v4554 = vmul.f32 %v4266, %v4266
        %v4555 = vmul.f32 %v4267, %v4267
        %v4556 = vmul.f32 %v4268, %v4268
        %v4557 = vmul.f32 %v4269, %v4269
        %v4558 = vmul.f32 %v4270, %v4270
        %v4559 = vmul.f32 %v4271, %v4271
        %v4560 = vmul.f32 %v4272, %v4272
        %v4561 = vmul.f32 %v4273, %v4273
        %v4562 = vmul.f32 %v4274, %v4274
        %v4563 = vmul.f32 %v4275, %v4275
        %v4564 = vmul.f32 %v4276, %v4276
        %v4565 = vmul.f32 %v4277, %v4277
        %v4566 = vmul.f32 %v4278, %v4278
        %v4567 = vmul.f32 %v4279, %v4279
        %v4568 = vmul.f32 %v4280, %v4280
        %v4569 = vmul.f32 %v4281, %v4281
        %v4570 = vmul.f32 %v4282, %v4282
        %v4571 = vmul.f32 %v4283, %v4283
        %v4572 = vmul.f32 %v4284, %v4284
        %v4573 = vmul.f32 %v4285, %v4285
        %v4574 = vmul.f32 %v4286, %v4286
        %v4575 = vmul.f32 %v4287, %v4287
        %v4576 = vmul.f32 %v4288, %v4288
        %v4577 = vmul.f32 %v4289, %v4289
        %v4578 = vmul.f32 %v4290, %v4290
        %v4579 = vmul.f32 %v4291, %v4291
        %v4580 = vmul.f32 %v4292, %v4292
        %v4581 = vmul.f32 %v4293, %v4293
        %v4582 = vmul.f32 %v4294, %v4294
        %v4583 = vmul.f32 %v4295, %v4295
        %v4584 = vmul.f32 %v4296, %v4296
        %v4585 = vmul.f32 %v4297, %v4297
        %v4586 = vmul.f32 %v4298, %v4298
        %v4587 = vmul.f32 %v4299, %v4299
        %v4588 = vmul.f32 %v4300, %v4300
        %v4589 = vmul.f32 %v4301, %v4301
        %v4590 = vmul.f32 %v4302, %v4302
        %v4591 = vmul.f32 %v4303, %v4303
        %v4592 = vmul.f32 %v4304, %v4304
        %v4593 = vmul.f32 %v4305, %v4305
        %v4594 = vmul.f32 %v4306, %v4306
        %v4595 = vmul.f32 %v4307, %v4307
        %v4596 = vmul.f32 %v4308, %v4308
        %v4597 = vmul.f32 %v4309, %v4309
        %v4598 = vmul.f32 %v4310, %v4310
        %v4599 = vmul.f32 %v4311, %v4311
        %v4600 = vmul.f32 %v4312, %v4312
        %v4601 = vmul.f32 %v4313, %v4313
        %v4602 = vmul.f32 %v4314, %v4314
        %v4603 = vmul.f32 %v4315, %v4315
        %v4604 = vmul.f32 %v4316, %v4316
        %v4605 = vmul.f32 %v4317, %v4317
        %v4606 = vmul.f32 %v4318, %v4318
        %v4607 = vmul.f32 %v4319, %v4319
        %v4608 = vmul.f32 %v4320, %v4320
        %v4609 = vadd.f32 %v4321, %v4322
        %v4610 = vadd.f32 %v4609, %v4323
        %v4611 = vadd.f32 %v4610, %v4324
        %v4612 = vadd.f32 %v4611, %v4325
        %v4613 = vadd.f32 %v4612, %v4326
        %v4614 = vadd.f32 %v4613, %v4327
        %v4615 = vadd.f32 %v4614, %v4328
        %v4616 = vadd.f32 %v4615, %v4329
        %v4617 = vadd.f32 %v4616, %v4330
        %v4618 = vadd.f32 %v4617, %v4331
        %v4619 = vadd.f32 %v4618, %v4332
        %v4620 = vadd.f32 %v4619, %v4333
        %v4621 = vadd.f32 %v4620, %v4334
        %v4622 = vadd.f32 %v4621, %v4335
        %v4623 = vadd.f32 %v4622, %v4336
        %v4624 = vadd.f32 %v4623, %v4337
        %v4625 = vadd.f32 %v4624, %v4338
        %v4626 = vadd.f32 %v4625, %v4339
        %v4627 = vadd.f32 %v4626, %v4340
        %v4628 = vadd.f32 %v4627, %v4341
        %v4629 = vadd.f32 %v4628, %v4342
        %v4630 = vadd.f32 %v4629, %v4343
        %v4631 = vadd.f32 %v4630, %v4344
        %v4632 = vadd.f32 %v4631, %v4345
        %v4633 = vadd.f32 %v4632, %v4346
        %v4634 = vadd.f32 %v4633, %v4347
        %v4635 = vadd.f32 %v4634, %v4348
        %v4636 = vadd.f32 %v4635, %v4349
        %v4637 = vadd.f32 %v4636, %v4350
        %v4638 = vadd.f32 %v4637, %v4351
        %v4639 = vadd.f32 %v4638, %v4352
        %v4640 = vadd.f32 %v4639, %v4353
        %v4641 = vadd.f32 %v4640, %v4354
        %v4642 = vadd.f32 %v4641, %v4355
        %v4643 = vadd.f32 %v4642, %v4356
        %v4644 = vadd.f32 %v4643, %v4357
        %v4645 = vadd.f32 %v4644, %v4358
        %v4646 = vadd.f32 %v4645, %v4359
        %v4647 = vadd.f32 %v4646, %v4360
        %v4648 = vadd.f32 %v4647, %v4361
        %v4649 = vadd.f32 %v4648, %v4362
        %v4650 = vadd.f32 %v4649, %v4363
        %v4651 = vadd.f32 %v4650, %v4364
        %v4652 = vadd.f32 %v4651, %v4365
        %v4653 = vadd.f32 %v4652, %v4366
        %v4654 = vadd.f32 %v4653, %v4367
        %v4655 = vadd.f32 %v4654, %v4368
        %v4656 = vadd.f32 %v4655, %v4369
        %v4657 = vadd.f32 %v4656, %v4370
        %v4658 = vadd.f32 %v4657, %v4371
        %v4659 = vadd.f32 %v4658, %v4372
        %v4660 = vadd.f32 %v4659, %v4373
        %v4661 = vadd.f32 %v4660, %v4374
        %v4662 = vadd.f32 %v4661, %v4375
        %v4663 = vadd.f32 %v4662, %v4376
        %v4664 = vadd.f32 %v4663, %v4377
        %v4665 = vadd.f32 %v4664, %v4378
        %v4666 = vadd.f32 %v4665, %v4379
        %v4667 = vadd.f32 %v4666, %v4380
        %v4668 = vadd.f32 %v4667, %v4381
        %v4669 = vadd.f32 %v4668, %v4382
        %v4670 = vadd.f32 %v4669, %v4383
        %v4671 = vadd.f32 %v4670, %v4384
        %v4672 = vadd.f32 %v4671, %v4385
        %v4673 = vadd.f32 %v4672, %v4386
        %v4674 = vadd.f32 %v4673, %v4387
        %v4675 = vadd.f32 %v4674, %v4388
        %v4676 = vadd.f32 %v4675, %v4389
        %v4677 = vadd.f32 %v4676, %v4390
        %v4678 = vadd.f32 %v4677, %v4391
        %v4679 = vadd.f32 %v4678, %v4392
        %v4680 = vadd.f32 %v4679, %v4393
        %v4681 = vadd.f32 %v4680, %v4394
        %v4682 = vadd.f32 %v4681, %v4395
        %v4683 = vadd.f32 %v4682, %v4396
        %v4684 = vadd.f32 %v4683, %v4397
        %v4685 = vadd.f32 %v4684, %v4398
        %v4686 = vadd.f32 %v4685, %v4399
        %v4687 = vadd.f32 %v4686, %v4400
        %v4688 = vadd.f32 %v4687, %v4401
        %v4689 = vadd.f32 %v4688, %v4402
        %v4690 = vadd.f32 %v4689, %v4403
        %v4691 = vadd.f32 %v4690, %v4404
        %v4692 = vadd.f32 %v4691, %v4405
        %v4693 = vadd.f32 %v4692, %v4406
        %v4694 = vadd.f32 %v4693, %v4407
        %v4695 = vadd.f32 %v4694, %v4408
        %v4696 = vadd.f32 %v4695, %v4409
        %v4697 = vadd.f32 %v4696, %v4410
        %v4698 = vadd.f32 %v4697, %v4411
        %v4699 = vadd.f32 %v4698, %v4412
        %v4700 = vadd.f32 %v4699, %v4413
        %v4701 = vadd.f32 %v4700, %v4414
        %v4702 = vadd.f32 %v4701, %v4415
        %v4703 = vadd.f32 %v4702, %v4416
        %v4704 = vadd.f32 %v4703, %v4417
        %v4705 = vadd.f32 %v4704, %v4418
        %v4706 = vadd.f32 %v4705, %v4419
        %v4707 = vadd.f32 %v4706, %v4420
        %v4708 = vadd.f32 %v4707, %v4421
        %v4709 = vadd.f32 %v4708, %v4422
        %v4710 = vadd.f32 %v4709, %v4423
        %v4711 = vadd.f32 %v4710, %v4424
        %v4712 = vadd.f32 %v4711, %v4425
        %v4713 = vadd.f32 %v4712, %v4426
        %v4714 = vadd.f32 %v4713, %v4427
        %v4715 = vadd.f32 %v4714, %v4428
        %v4716 = vadd.f32 %v4715, %v4429
        %v4717 = vadd.f32 %v4716, %v4430
        %v4718 = vadd.f32 %v4717, %v4431
        %v4719 = vadd.f32 %v4718, %v4432
        %v4720 = vadd.f32 %v4719, %v4433
        %v4721 = vadd.f32 %v4720, %v4434
        %v4722 = vadd.f32 %v4721, %v4435
        %v4723 = vadd.f32 %v4722, %v4436
        %v4724 = vadd.f32 %v4723, %v4437
        %v4725 = vadd.f32 %v4724, %v4438
        %v4726 = vadd.f32 %v4725, %v4439
        %v4727 = vadd.f32 %v4726, %v4440
        %v4728 = vadd.f32 %v4727, %v4441
        %v4729 = vadd.f32 %v4728, %v4442
        %v4730 = vadd.f32 %v4729, %v4443
        %v4731 = vadd.f32 %v4730, %v4444
        %v4732 = vadd.f32 %v4731, %v4445
        %v4733 = vadd.f32 %v4732, %v4446
        %v4734 = vadd.f32 %v4733, %v4447
        %v4735 = vadd.f32 %v4734, %v4448
        %v4736 = vadd.f32 %v4735, %v4449
        %v4737 = vadd.f32 %v4736, %v4450
        %v4738 = vadd.f32 %v4737, %v4451
        %v4739 = vadd.f32 %v4738, %v4452
        %v4740 = vadd.f32 %v4739, %v4453
        %v4741 = vadd.f32 %v4740, %v4454
        %v4742 = vadd.f32 %v4741, %v4455
        %v4743 = vadd.f32 %v4742, %v4456
        %v4744 = vadd.f32 %v4743, %v4457
        %v4745 = vadd.f32 %v4744, %v4458
        %v4746 = vadd.f32 %v4745, %v4459
        %v4747 = vadd.f32 %v4746, %v4460
        %v4748 = vadd.f32 %v4747, %v4461
        %v4749 = vadd.f32 %v4748, %v4462
        %v4750 = vadd.f32 %v4749, %v4463
        %v4751 = vadd.f32 %v4750, %v4464
        %v4752 = vadd.f32 %v4751, %v4465
        %v4753 = vadd.f32 %v4752, %v4466
        %v4754 = vadd.f32 %v4753, %v4467
        %v4755 = vadd.f32 %v4754, %v4468
        %v4756 = vadd.f32 %v4755, %v4469
        %v4757 = vadd.f32 %v4756, %v4470
        %v4758 = vadd.f32 %v4757, %v4471
        %v4759 = vadd.f32 %v4758, %v4472
        %v4760 = vadd.f32 %v4759, %v4473
        %v4761 = vadd.f32 %v4760, %v4474
        %v4762 = vadd.f32 %v4761, %v4475
        %v4763 = vadd.f32 %v4762, %v4476
        %v4764 = vadd.f32 %v4763, %v4477
        %v4765 = vadd.f32 %v4764, %v4478
        %v4766 = vadd.f32 %v4765, %v4479
        %v4767 = vadd.f32 %v4766, %v4480
        %v4768 = vadd.f32 %v4767, %v4481
        %v4769 = vadd.f32 %v4768, %v4482
        %v4770 = vadd.f32 %v4769, %v4483
        %v4771 = vadd.f32 %v4770, %v4484
        %v4772 = vadd.f32 %v4771, %v4485
        %v4773 = vadd.f32 %v4772, %v4486
        %v4774 = vadd.f32 %v4773, %v4487
        %v4775 = vadd.f32 %v4774, %v4488
        %v4776 = vadd.f32 %v4775, %v4489
        %v4777 = vadd.f32 %v4776, %v4490
        %v4778 = vadd.f32 %v4777, %v4491
        %v4779 = vadd.f32 %v4778, %v4492
        %v4780 = vadd.f32 %v4779, %v4493
        %v4781 = vadd.f32 %v4780, %v4494
        %v4782 = vadd.f32 %v4781, %v4495
        %v4783 = vadd.f32 %v4782, %v4496
        %v4784 = vadd.f32 %v4783, %v4497
        %v4785 = vadd.f32 %v4784, %v4498
        %v4786 = vadd.f32 %v4785, %v4499
        %v4787 = vadd.f32 %v4786, %v4500
        %v4788 = vadd.f32 %v4787, %v4501
        %v4789 = vadd.f32 %v4788, %v4502
        %v4790 = vadd.f32 %v4789, %v4503
        %v4791 = vadd.f32 %v4790, %v4504
        %v4792 = vadd.f32 %v4791, %v4505
        %v4793 = vadd.f32 %v4792, %v4506
        %v4794 = vadd.f32 %v4793, %v4507
        %v4795 = vadd.f32 %v4794, %v4508
        %v4796 = vadd.f32 %v4795, %v4509
        %v4797 = vadd.f32 %v4796, %v4510
        %v4798 = vadd.f32 %v4797, %v4511
        %v4799 = vadd.f32 %v4798, %v4512
        %v4800 = vadd.f32 %v4799, %v4513
        %v4801 = vadd.f32 %v4800, %v4514
        %v4802 = vadd.f32 %v4801, %v4515
        %v4803 = vadd.f32 %v4802, %v4516
        %v4804 = vadd.f32 %v4803, %v4517
        %v4805 = vadd.f32 %v4804, %v4518
        %v4806 = vadd.f32 %v4805, %v4519
        %v4807 = vadd.f32 %v4806, %v4520
        %v4808 = vadd.f32 %v4807, %v4521
        %v4809 = vadd.f32 %v4808, %v4522
        %v4810 = vadd.f32 %v4809, %v4523
        %v4811 = vadd.f32 %v4810, %v4524
        %v4812 = vadd.f32 %v4811, %v4525
        %v4813 = vadd.f32 %v4812, %v4526
        %v4814 = vadd.f32 %v4813, %v4527
        %v4815 = vadd.f32 %v4814, %v4528
        %v4816 = vadd.f32 %v4815, %v4529
        %v4817 = vadd.f32 %v4816, %v4530
        %v4818 = vadd.f32 %v4817, %v4531
        %v4819 = vadd.f32 %v4818, %v4532
        %v4820 = vadd.f32 %v4819, %v4533
        %v4821 = vadd.f32 %v4820, %v4534
        %v4822 = vadd.f32 %v4821, %v4535
        %v4823 = vadd.f32 %v4822, %v4536
        %v4824 = vadd.f32 %v4823, %v4537
        %v4825 = vadd.f32 %v4824, %v4538
        %v4826 = vadd.f32 %v4825, %v4539
        %v4827 = vadd.f32 %v4826, %v4540
        %v4828 = vadd.f32 %v4827, %v4541
        %v4829 = vadd.f32 %v4828, %v4542
        %v4830 = vadd.f32 %v4829, %v4543
        %v4831 = vadd.f32 %v4830, %v4544
        %v4832 = vadd.f32 %v4831, %v4545
        %v4833 = vadd.f32 %v4832, %v4546
        %v4834 = vadd.f32 %v4833, %v4547
        %v4835 = vadd.f32 %v4834, %v4548
        %v4836 = vadd.f32 %v4835, %v4549
        %v4837 = vadd.f32 %v4836, %v4550
        %v4838 = vadd.f32 %v4837, %v4551
        %v4839 = vadd.f32 %v4838, %v4552
        %v4840 = vadd.f32 %v4839, %v4553
        %v4841 = vadd.f32 %v4840, %v4554
        %v4842 = vadd.f32 %v4841, %v4555
        %v4843 = vadd.f32 %v4842, %v4556
        %v4844 = vadd.f32 %v4843, %v4557
        %v4845 = vadd.f32 %v4844, %v4558
        %v4846 = vadd.f32 %v4845, %v4559
        %v4847 = vadd.f32 %v4846, %v4560
        %v4848 = vadd.f32 %v4847, %v4561
        %v4849 = vadd.f32 %v4848, %v4562
        %v4850 = vadd.f32 %v4849, %v4563
        %v4851 = vadd.f32 %v4850, %v4564
        %v4852 = vadd.f32 %v4851, %v4565
        %v4853 = vadd.f32 %v4852, %v4566
        %v4854 = vadd.f32 %v4853, %v4567
        %v4855 = vadd.f32 %v4854, %v4568
        %v4856 = vadd.f32 %v4855, %v4569
        %v4857 = vadd.f32 %v4856, %v4570
        %v4858 = vadd.f32 %v4857, %v4571
        %v4859 = vadd.f32 %v4858, %v4572
        %v4860 = vadd.f32 %v4859, %v4573
        %v4861 = vadd.f32 %v4860, %v4574
        %v4862 = vadd.f32 %v4861, %v4575
        %v4863 = vadd.f32 %v4862, %v4576
        %v4864 = vadd.f32 %v4863, %v4577
        %v4865 = vadd.f32 %v4864, %v4578
        %v4866 = vadd.f32 %v4865, %v4579
        %v4867 = vadd.f32 %v4866, %v4580
        %v4868 = vadd.f32 %v4867, %v4581
        %v4869 = vadd.f32 %v4868, %v4582
        %v4870 = vadd.f32 %v4869, %v4583
        %v4871 = vadd.f32 %v4870, %v4584
        %v4872 = vadd.f32 %v4871, %v4585
        %v4873 = vadd.f32 %v4872, %v4586
        %v4874 = vadd.f32 %v4873, %v4587
        %v4875 = vadd.f32 %v4874, %v4588
        %v4876 = vadd.f32 %v4875, %v4589
        %v4877 = vadd.f32 %v4876, %v4590
        %v4878 = vadd.f32 %v4877, %v4591
        %v4879 = vadd.f32 %v4878, %v4592
        %v4880 = vadd.f32 %v4879, %v4593
        %v4881 = vadd.f32 %v4880, %v4594
        %v4882 = vadd.f32 %v4881, %v4595
        %v4883 = vadd.f32 %v4882, %v4596
        %v4884 = vadd.f32 %v4883, %v4597
        %v4885 = vadd.f32 %v4884, %v4598
        %v4886 = vadd.f32 %v4885, %v4599
        %v4887 = vadd.f32 %v4886, %v4600
        %v4888 = vadd.f32 %v4887, %v4601
        %v4889 = vadd.f32 %v4888, %v4602
        %v4890 = vadd.f32 %v4889, %v4603
        %v4891 = vadd.f32 %v4890, %v4604
        %v4892 = vadd.f32 %v4891, %v4605
        %v4893 = vadd.f32 %v4892, %v4606
        %v4894 = vadd.f32 %v4893, %v4607
        %v4895 = vadd.f32 %v4894, %v4608
        %v4896 = vadd.f32 %v4032, %v4895
        %v4897 = vmul.f32 %v4896, 0.001
        %4898 = vst [vmem:[%s571] sm:$0xff] %v4897
        %p4899 = scmp.eq.s32.totalorder %s35, 0
        // Predicated region
        $region93: #{tpu_custom_call.1} parent=59 // pred_check
          %p4900 = pneg %p4899
        $region94: #{tpu_custom_call.1} parent=59 // pred_check_branch
          %4902 = sbr.rel (%p4900) target = $region96
        $region95: #{tpu_custom_call.1} parent=59 // pred_region
          %v4903 = vld [vmem:[#allocation7] sm:$0xff]
          %v4904 = vld [vmem:[#allocation7 + $0x8] sm:$0xff]
          %v4905 = vld [vmem:[#allocation7 + $0x10] sm:$0xff]
          %v4906 = vld [vmem:[#allocation7 + $0x18] sm:$0xff]
          %v4907 = vld [vmem:[#allocation7 + $0x20] sm:$0xff]
          %v4908 = vld [vmem:[#allocation7 + $0x28] sm:$0xff]
          %v4909 = vld [vmem:[#allocation7 + $0x30] sm:$0xff]
          %v4910 = vld [vmem:[#allocation7 + $0x38] sm:$0xff]
          %v4911 = vld [vmem:[#allocation7 + $0x40] sm:$0xff]
          %v4912 = vld [vmem:[#allocation7 + $0x48] sm:$0xff]
          %v4913 = vld [vmem:[#allocation7 + $0x50] sm:$0xff]
          %v4914 = vld [vmem:[#allocation7 + $0x58] sm:$0xff]
          %v4915 = vld [vmem:[#allocation7 + $0x60] sm:$0xff]
          %v4916 = vld [vmem:[#allocation7 + $0x68] sm:$0xff]
          %v4917 = vld [vmem:[#allocation7 + $0x70] sm:$0xff]
          %v4918 = vld [vmem:[#allocation7 + $0x78] sm:$0xff]
          %v4919 = vld [vmem:[#allocation7 + $0x80] sm:$0xff]
          %v4920 = vld [vmem:[#allocation7 + $0x88] sm:$0xff]
          %v4921 = vld [vmem:[#allocation7 + $0x90] sm:$0xff]
          %v4922 = vld [vmem:[#allocation7 + $0x98] sm:$0xff]
          %v4923 = vld [vmem:[#allocation7 + $0xa0] sm:$0xff]
          %v4924 = vld [vmem:[#allocation7 + $0xa8] sm:$0xff]
          %v4925 = vld [vmem:[#allocation7 + $0xb0] sm:$0xff]
          %v4926 = vld [vmem:[#allocation7 + $0xb8] sm:$0xff]
          %v4927 = vld [vmem:[#allocation7 + $0xc0] sm:$0xff]
          %v4928 = vld [vmem:[#allocation7 + $0xc8] sm:$0xff]
          %v4929 = vld [vmem:[#allocation7 + $0xd0] sm:$0xff]
          %v4930 = vld [vmem:[#allocation7 + $0xd8] sm:$0xff]
          %v4931 = vld [vmem:[#allocation7 + $0xe0] sm:$0xff]
          %v4932 = vld [vmem:[#allocation7 + $0xe8] sm:$0xff]
          %v4933 = vld [vmem:[#allocation7 + $0xf0] sm:$0xff]
          %v4934 = vld [vmem:[#allocation7 + $0xf8] sm:$0xff]
          %v4935 = vld [vmem:[#allocation7 + $0x100] sm:$0xff]
          %v4936 = vld [vmem:[#allocation7 + $0x108] sm:$0xff]
          %v4937 = vld [vmem:[#allocation7 + $0x110] sm:$0xff]
          %v4938 = vld [vmem:[#allocation7 + $0x118] sm:$0xff]
          %v4939 = vld [vmem:[#allocation7 + $0x120] sm:$0xff]
          %v4940 = vld [vmem:[#allocation7 + $0x128] sm:$0xff]
          %v4941 = vld [vmem:[#allocation7 + $0x130] sm:$0xff]
          %v4942 = vld [vmem:[#allocation7 + $0x138] sm:$0xff]
          %v4943 = vld [vmem:[#allocation7 + $0x140] sm:$0xff]
          %v4944 = vld [vmem:[#allocation7 + $0x148] sm:$0xff]
          %v4945 = vld [vmem:[#allocation7 + $0x150] sm:$0xff]
          %v4946 = vld [vmem:[#allocation7 + $0x158] sm:$0xff]
          %v4947 = vld [vmem:[#allocation7 + $0x160] sm:$0xff]
          %v4948 = vld [vmem:[#allocation7 + $0x168] sm:$0xff]
          %v4949 = vld [vmem:[#allocation7 + $0x170] sm:$0xff]
          %v4950 = vld [vmem:[#allocation7 + $0x178] sm:$0xff]
          %v4951 = vld [vmem:[#allocation7 + $0x180] sm:$0xff]
          %v4952 = vld [vmem:[#allocation7 + $0x188] sm:$0xff]
          %v4953 = vld [vmem:[#allocation7 + $0x190] sm:$0xff]
          %v4954 = vld [vmem:[#allocation7 + $0x198] sm:$0xff]
          %v4955 = vld [vmem:[#allocation7 + $0x1a0] sm:$0xff]
          %v4956 = vld [vmem:[#allocation7 + $0x1a8] sm:$0xff]
          %v4957 = vld [vmem:[#allocation7 + $0x1b0] sm:$0xff]
          %v4958 = vld [vmem:[#allocation7 + $0x1b8] sm:$0xff]
          %v4959 = vld [vmem:[#allocation7 + $0x1c0] sm:$0xff]
          %v4960 = vld [vmem:[#allocation7 + $0x1c8] sm:$0xff]
          %v4961 = vld [vmem:[#allocation7 + $0x1d0] sm:$0xff]
          %v4962 = vld [vmem:[#allocation7 + $0x1d8] sm:$0xff]
          %v4963 = vld [vmem:[#allocation7 + $0x1e0] sm:$0xff]
          %v4964 = vld [vmem:[#allocation7 + $0x1e8] sm:$0xff]
          %v4965 = vld [vmem:[#allocation7 + $0x1f0] sm:$0xff]
          %v4966 = vld [vmem:[#allocation7 + $0x1f8] sm:$0xff]
          %v4967 = vld [vmem:[#allocation7 + $0x200] sm:$0xff]
          %v4968 = vld [vmem:[#allocation7 + $0x208] sm:$0xff]
          %v4969 = vld [vmem:[#allocation7 + $0x210] sm:$0xff]
          %v4970 = vld [vmem:[#allocation7 + $0x218] sm:$0xff]
          %v4971 = vld [vmem:[#allocation7 + $0x220] sm:$0xff]
          %v4972 = vld [vmem:[#allocation7 + $0x228] sm:$0xff]
          %v4973 = vld [vmem:[#allocation7 + $0x230] sm:$0xff]
          %v4974 = vld [vmem:[#allocation7 + $0x238] sm:$0xff]
          %v4975 = vld [vmem:[#allocation7 + $0x240] sm:$0xff]
          %v4976 = vld [vmem:[#allocation7 + $0x248] sm:$0xff]
          %v4977 = vld [vmem:[#allocation7 + $0x250] sm:$0xff]
          %v4978 = vld [vmem:[#allocation7 + $0x258] sm:$0xff]
          %v4979 = vld [vmem:[#allocation7 + $0x260] sm:$0xff]
          %v4980 = vld [vmem:[#allocation7 + $0x268] sm:$0xff]
          %v4981 = vld [vmem:[#allocation7 + $0x270] sm:$0xff]
          %v4982 = vld [vmem:[#allocation7 + $0x278] sm:$0xff]
          %v4983 = vld [vmem:[#allocation7 + $0x280] sm:$0xff]
          %v4984 = vld [vmem:[#allocation7 + $0x288] sm:$0xff]
          %v4985 = vld [vmem:[#allocation7 + $0x290] sm:$0xff]
          %v4986 = vld [vmem:[#allocation7 + $0x298] sm:$0xff]
          %v4987 = vld [vmem:[#allocation7 + $0x2a0] sm:$0xff]
          %v4988 = vld [vmem:[#allocation7 + $0x2a8] sm:$0xff]
          %v4989 = vld [vmem:[#allocation7 + $0x2b0] sm:$0xff]
          %v4990 = vmul.f32 %v4903, %v4903
          %v4991 = vmul.f32 %v4904, %v4904
          %v4992 = vmul.f32 %v4905, %v4905
          %v4993 = vmul.f32 %v4906, %v4906
          %v4994 = vmul.f32 %v4907, %v4907
          %v4995 = vmul.f32 %v4908, %v4908
          %v4996 = vmul.f32 %v4909, %v4909
          %v4997 = vmul.f32 %v4910, %v4910
          %v4998 = vmul.f32 %v4911, %v4911
          %v4999 = vmul.f32 %v4912, %v4912
          %v5000 = vmul.f32 %v4913, %v4913
          %v5001 = vmul.f32 %v4914, %v4914
          %v5002 = vmul.f32 %v4915, %v4915
          %v5003 = vmul.f32 %v4916, %v4916
          %v5004 = vmul.f32 %v4917, %v4917
          %v5005 = vmul.f32 %v4918, %v4918
          %v5006 = vmul.f32 %v4919, %v4919
          %v5007 = vmul.f32 %v4920, %v4920
          %v5008 = vmul.f32 %v4921, %v4921
          %v5009 = vmul.f32 %v4922, %v4922
          %v5010 = vmul.f32 %v4923, %v4923
          %v5011 = vmul.f32 %v4924, %v4924
          %v5012 = vmul.f32 %v4925, %v4925
          %v5013 = vmul.f32 %v4926, %v4926
          %v5014 = vmul.f32 %v4927, %v4927
          %v5015 = vmul.f32 %v4928, %v4928
          %v5016 = vmul.f32 %v4929, %v4929
          %v5017 = vmul.f32 %v4930, %v4930
          %v5018 = vmul.f32 %v4931, %v4931
          %v5019 = vmul.f32 %v4932, %v4932
          %v5020 = vmul.f32 %v4933, %v4933
          %v5021 = vmul.f32 %v4934, %v4934
          %v5022 = vmul.f32 %v4935, %v4935
          %v5023 = vmul.f32 %v4936, %v4936
          %v5024 = vmul.f32 %v4937, %v4937
          %v5025 = vmul.f32 %v4938, %v4938
          %v5026 = vmul.f32 %v4939, %v4939
          %v5027 = vmul.f32 %v4940, %v4940
          %v5028 = vmul.f32 %v4941, %v4941
          %v5029 = vmul.f32 %v4942, %v4942
          %v5030 = vmul.f32 %v4943, %v4943
          %v5031 = vmul.f32 %v4944, %v4944
          %v5032 = vmul.f32 %v4945, %v4945
          %v5033 = vmul.f32 %v4946, %v4946
          %v5034 = vmul.f32 %v4947, %v4947
          %v5035 = vmul.f32 %v4948, %v4948
          %v5036 = vmul.f32 %v4949, %v4949
          %v5037 = vmul.f32 %v4950, %v4950
          %v5038 = vmul.f32 %v4951, %v4951
          %v5039 = vmul.f32 %v4952, %v4952
          %v5040 = vmul.f32 %v4953, %v4953
          %v5041 = vmul.f32 %v4954, %v4954
          %v5042 = vmul.f32 %v4955, %v4955
          %v5043 = vmul.f32 %v4956, %v4956
          %v5044 = vmul.f32 %v4957, %v4957
          %v5045 = vmul.f32 %v4958, %v4958
          %v5046 = vmul.f32 %v4959, %v4959
          %v5047 = vmul.f32 %v4960, %v4960
          %v5048 = vmul.f32 %v4961, %v4961
          %v5049 = vmul.f32 %v4962, %v4962
          %v5050 = vmul.f32 %v4963, %v4963
          %v5051 = vmul.f32 %v4964, %v4964
          %v5052 = vmul.f32 %v4965, %v4965
          %v5053 = vmul.f32 %v4966, %v4966
          %v5054 = vmul.f32 %v4967, %v4967
          %v5055 = vmul.f32 %v4968, %v4968
          %v5056 = vmul.f32 %v4969, %v4969
          %v5057 = vmul.f32 %v4970, %v4970
          %v5058 = vmul.f32 %v4971, %v4971
          %v5059 = vmul.f32 %v4972, %v4972
          %v5060 = vmul.f32 %v4973, %v4973
          %v5061 = vmul.f32 %v4974, %v4974
          %v5062 = vmul.f32 %v4975, %v4975
          %v5063 = vmul.f32 %v4976, %v4976
          %v5064 = vmul.f32 %v4977, %v4977
          %v5065 = vmul.f32 %v4978, %v4978
          %v5066 = vmul.f32 %v4979, %v4979
          %v5067 = vmul.f32 %v4980, %v4980
          %v5068 = vmul.f32 %v4981, %v4981
          %v5069 = vmul.f32 %v4982, %v4982
          %v5070 = vmul.f32 %v4983, %v4983
          %v5071 = vmul.f32 %v4984, %v4984
          %v5072 = vmul.f32 %v4985, %v4985
          %v5073 = vmul.f32 %v4986, %v4986
          %v5074 = vmul.f32 %v4987, %v4987
          %v5075 = vmul.f32 %v4988, %v4988
          %v5076 = vmul.f32 %v4989, %v4989
          %v5077 = vadd.f32 %v4990, %v4991
          %v5078 = vadd.f32 %v5077, %v4992
          %v5079 = vadd.f32 %v5078, %v4993
          %v5080 = vadd.f32 %v5079, %v4994
          %v5081 = vadd.f32 %v5080, %v4995
          %v5082 = vadd.f32 %v5081, %v4996
          %v5083 = vadd.f32 %v5082, %v4997
          %v5084 = vadd.f32 %v5083, %v4998
          %v5085 = vadd.f32 %v5084, %v4999
          %v5086 = vadd.f32 %v5085, %v5000
          %v5087 = vadd.f32 %v5086, %v5001
          %v5088 = vadd.f32 %v5087, %v5002
          %v5089 = vadd.f32 %v5088, %v5003
          %v5090 = vadd.f32 %v5089, %v5004
          %v5091 = vadd.f32 %v5090, %v5005
          %v5092 = vadd.f32 %v5091, %v5006
          %v5093 = vadd.f32 %v5092, %v5007
          %v5094 = vadd.f32 %v5093, %v5008
          %v5095 = vadd.f32 %v5094, %v5009
          %v5096 = vadd.f32 %v5095, %v5010
          %v5097 = vadd.f32 %v5096, %v5011
          %v5098 = vadd.f32 %v5097, %v5012
          %v5099 = vadd.f32 %v5098, %v5013
          %v5100 = vadd.f32 %v5099, %v5014
          %v5101 = vadd.f32 %v5100, %v5015
          %v5102 = vadd.f32 %v5101, %v5016
          %v5103 = vadd.f32 %v5102, %v5017
          %v5104 = vadd.f32 %v5103, %v5018
          %v5105 = vadd.f32 %v5104, %v5019
          %v5106 = vadd.f32 %v5105, %v5020
          %v5107 = vadd.f32 %v5106, %v5021
          %v5108 = vadd.f32 %v5107, %v5022
          %v5109 = vadd.f32 %v5108, %v5023
          %v5110 = vadd.f32 %v5109, %v5024
          %v5111 = vadd.f32 %v5110, %v5025
          %v5112 = vadd.f32 %v5111, %v5026
          %v5113 = vadd.f32 %v5112, %v5027
          %v5114 = vadd.f32 %v5113, %v5028
          %v5115 = vadd.f32 %v5114, %v5029
          %v5116 = vadd.f32 %v5115, %v5030
          %v5117 = vadd.f32 %v5116, %v5031
          %v5118 = vadd.f32 %v5117, %v5032
          %v5119 = vadd.f32 %v5118, %v5033
          %v5120 = vadd.f32 %v5119, %v5034
          %v5121 = vadd.f32 %v5120, %v5035
          %v5122 = vadd.f32 %v5121, %v5036
          %v5123 = vadd.f32 %v5122, %v5037
          %v5124 = vadd.f32 %v5123, %v5038
          %v5125 = vadd.f32 %v5124, %v5039
          %v5126 = vadd.f32 %v5125, %v5040
          %v5127 = vadd.f32 %v5126, %v5041
          %v5128 = vadd.f32 %v5127, %v5042
          %v5129 = vadd.f32 %v5128, %v5043
          %v5130 = vadd.f32 %v5129, %v5044
          %v5131 = vadd.f32 %v5130, %v5045
          %v5132 = vadd.f32 %v5131, %v5046
          %v5133 = vadd.f32 %v5132, %v5047
          %v5134 = vadd.f32 %v5133, %v5048
          %v5135 = vadd.f32 %v5134, %v5049
          %v5136 = vadd.f32 %v5135, %v5050
          %v5137 = vadd.f32 %v5136, %v5051
          %v5138 = vadd.f32 %v5137, %v5052
          %v5139 = vadd.f32 %v5138, %v5053
          %v5140 = vadd.f32 %v5139, %v5054
          %v5141 = vadd.f32 %v5140, %v5055
          %v5142 = vadd.f32 %v5141, %v5056
          %v5143 = vadd.f32 %v5142, %v5057
          %v5144 = vadd.f32 %v5143, %v5058
          %v5145 = vadd.f32 %v5144, %v5059
          %v5146 = vadd.f32 %v5145, %v5060
          %v5147 = vadd.f32 %v5146, %v5061
          %v5148 = vadd.f32 %v5147, %v5062
          %v5149 = vadd.f32 %v5148, %v5063
          %v5150 = vadd.f32 %v5149, %v5064
          %v5151 = vadd.f32 %v5150, %v5065
          %v5152 = vadd.f32 %v5151, %v5066
          %v5153 = vadd.f32 %v5152, %v5067
          %v5154 = vadd.f32 %v5153, %v5068
          %v5155 = vadd.f32 %v5154, %v5069
          %v5156 = vadd.f32 %v5155, %v5070
          %v5157 = vadd.f32 %v5156, %v5071
          %v5158 = vadd.f32 %v5157, %v5072
          %v5159 = vadd.f32 %v5158, %v5073
          %v5160 = vadd.f32 %v5159, %v5074
          %v5161 = vadd.f32 %v5160, %v5075
          %v5162 = vadd.f32 %v5161, %v5076
          %v5163 = vld [vmem:[%s0] sm:$0x3]
          %v5164 = vld [vmem:[%s1] sm:$0x3]
          %v5165 = vsub.f32 %v5163, %v5164
          %v5166 = vmul.f32 %v5165, %v5165
          %v5167 = vld [vmem:[#allocation2] sm:$0xff]
          %v5168 = vld [vmem:[#allocation2 + $0x8] sm:$0xff]
          %v5169 = vld [vmem:[#allocation2 + $0x10] sm:$0xff]
          %v5170 = vld [vmem:[#allocation2 + $0x18] sm:$0xff]
          %v5171 = vld [vmem:[#allocation2 + $0x20] sm:$0xff]
          %v5172 = vld [vmem:[#allocation2 + $0x28] sm:$0xff]
          %v5173 = vld [vmem:[#allocation2 + $0x30] sm:$0xff]
          %v5174 = vld [vmem:[#allocation2 + $0x38] sm:$0xff]
          %v5175 = vld [vmem:[#allocation2 + $0x40] sm:$0xff]
          %v5176 = vld [vmem:[#allocation2 + $0x48] sm:$0x3]
          %v5177 = vld [vmem:[#allocation5] sm:$0xff]
          %v5178 = vld [vmem:[#allocation5 + $0x8] sm:$0xff]
          %v5179 = vld [vmem:[#allocation5 + $0x10] sm:$0xff]
          %v5180 = vld [vmem:[#allocation5 + $0x18] sm:$0xff]
          %v5181 = vld [vmem:[#allocation5 + $0x20] sm:$0xff]
          %v5182 = vld [vmem:[#allocation5 + $0x28] sm:$0xff]
          %v5183 = vld [vmem:[#allocation5 + $0x30] sm:$0xff]
          %v5184 = vld [vmem:[#allocation5 + $0x38] sm:$0xff]
          %v5185 = vld [vmem:[#allocation5 + $0x40] sm:$0xff]
          %v5186 = vld [vmem:[#allocation5 + $0x48] sm:$0x3]
          %v5187 = vsub.f32 0.0, %v5167
          %v5188 = vsub.f32 0.0, %v5168
          %v5189 = vsub.f32 0.0, %v5169
          %v5190 = vsub.f32 0.0, %v5170
          %v5191 = vsub.f32 0.0, %v5171
          %v5192 = vsub.f32 0.0, %v5172
          %v5193 = vsub.f32 0.0, %v5173
          %v5194 = vsub.f32 0.0, %v5174
          %v5195 = vsub.f32 0.0, %v5175
          %v5196 = vsub.f32 0.0, %v5176
          %v5197 = vadd.f32 %v5177, 1e-06
          %v5198 = vadd.f32 %v5178, 1e-06
          %v5199 = vadd.f32 %v5179, 1e-06
          %v5200 = vadd.f32 %v5180, 1e-06
          %v5201 = vadd.f32 %v5181, 1e-06
          %v5202 = vadd.f32 %v5182, 1e-06
          %v5203 = vadd.f32 %v5183, 1e-06
          %v5204 = vadd.f32 %v5184, 1e-06
          %v5205 = vadd.f32 %v5185, 1e-06
          %v5206 = vadd.f32 %v5186, 1e-06
          %v5207 = vlog2.pop %v5197
          %v5208 = vmul.f32 %v5207, 0.6931472
          %v5209 = vlog2.pop %v5198
          %v5210 = vmul.f32 %v5209, 0.6931472
          %v5211 = vlog2.pop %v5199
          %v5212 = vmul.f32 %v5211, 0.6931472
          %v5213 = vlog2.pop %v5200
          %v5214 = vmul.f32 %v5213, 0.6931472
          %v5215 = vlog2.pop %v5201
          %v5216 = vmul.f32 %v5215, 0.6931472
          %v5217 = vlog2.pop %v5202
          %v5218 = vmul.f32 %v5217, 0.6931472
          %v5219 = vlog2.pop %v5203
          %v5220 = vmul.f32 %v5219, 0.6931472
          %v5221 = vlog2.pop %v5204
          %v5222 = vmul.f32 %v5221, 0.6931472
          %v5223 = vlog2.pop %v5205
          %v5224 = vmul.f32 %v5223, 0.6931472
          %v5225 = vlog2.pop %v5206
          %v5226 = vmul.f32 %v5225, 0.6931472
          %v5227 = vmul.f32 %v5187, %v5208
          %v5228 = vmul.f32 %v5188, %v5210
          %v5229 = vmul.f32 %v5189, %v5212
          %v5230 = vmul.f32 %v5190, %v5214
          %v5231 = vmul.f32 %v5191, %v5216
          %v5232 = vmul.f32 %v5192, %v5218
          %v5233 = vmul.f32 %v5193, %v5220
          %v5234 = vmul.f32 %v5194, %v5222
          %v5235 = vmul.f32 %v5195, %v5224
          %v5236 = vmul.f32 %v5196, %v5226
          %v5247 = vcombine.high %v5227, %v5227
          %v5249 = vunpack.c.l.s4 1983009808
          %v5250 = vunpack.c.0.s8 %v5249
          %v5251 = vlaneseq
          %v5252 = vshrl.u32 %v5251, 7
          %v5253 = vsub.s32 %v5250, %v5252
          %v5254 = vrot.slane %v5227, %v5253
          %v5256 = vunpack.c.l.s4 1983009808
          %v5257 = vunpack.c.0.s8 %v5256
          %v5258 = vlaneseq
          %v5259 = vshrl.u32 %v5258, 7
          %v5260 = vsub.s32 %v5257, %v5259
          %v5261 = vrot.slane %v5247, %v5260
          %v5262 = vcombine.high %v5254, %v5254
          %v5263 = vcombine.high %v5261, %v5261
          %v5264 = vcombine.high %v5228, %v5228
          %v5266 = vunpack.c.l.s4 1983009808
          %v5267 = vunpack.c.0.s8 %v5266
          %v5268 = vlaneseq
          %v5269 = vshrl.u32 %v5268, 7
          %v5270 = vsub.s32 %v5267, %v5269
          %v5271 = vrot.slane %v5228, %v5270
          %v5273 = vunpack.c.l.s4 1983009808
          %v5274 = vunpack.c.0.s8 %v5273
          %v5275 = vlaneseq
          %v5276 = vshrl.u32 %v5275, 7
          %v5277 = vsub.s32 %v5274, %v5276
          %v5278 = vrot.slane %v5264, %v5277
          %v5279 = vcombine.high %v5271, %v5271
          %v5280 = vcombine.high %v5278, %v5278
          %v5281 = vcombine.high %v5229, %v5229
          %v5283 = vunpack.c.l.s4 1983009808
          %v5284 = vunpack.c.0.s8 %v5283
          %v5285 = vlaneseq
          %v5286 = vshrl.u32 %v5285, 7
          %v5287 = vsub.s32 %v5284, %v5286
          %v5288 = vrot.slane %v5229, %v5287
          %v5290 = vunpack.c.l.s4 1983009808
          %v5291 = vunpack.c.0.s8 %v5290
          %v5292 = vlaneseq
          %v5293 = vshrl.u32 %v5292, 7
          %v5294 = vsub.s32 %v5291, %v5293
          %v5295 = vrot.slane %v5281, %v5294
          %v5296 = vcombine.high %v5288, %v5288
          %v5297 = vcombine.high %v5295, %v5295
          %v5298 = vcombine.high %v5230, %v5230
          %v5300 = vunpack.c.l.s4 1983009808
          %v5301 = vunpack.c.0.s8 %v5300
          %v5302 = vlaneseq
          %v5303 = vshrl.u32 %v5302, 7
          %v5304 = vsub.s32 %v5301, %v5303
          %v5305 = vrot.slane %v5230, %v5304
          %v5307 = vunpack.c.l.s4 1983009808
          %v5308 = vunpack.c.0.s8 %v5307
          %v5309 = vlaneseq
          %v5310 = vshrl.u32 %v5309, 7
          %v5311 = vsub.s32 %v5308, %v5310
          %v5312 = vrot.slane %v5298, %v5311
          %v5313 = vcombine.high %v5305, %v5305
          %v5314 = vcombine.high %v5312, %v5312
          %v5315 = vcombine.high %v5231, %v5231
          %v5317 = vunpack.c.l.s4 1983009808
          %v5318 = vunpack.c.0.s8 %v5317
          %v5319 = vlaneseq
          %v5320 = vshrl.u32 %v5319, 7
          %v5321 = vsub.s32 %v5318, %v5320
          %v5322 = vrot.slane %v5231, %v5321
          %v5324 = vunpack.c.l.s4 1983009808
          %v5325 = vunpack.c.0.s8 %v5324
          %v5326 = vlaneseq
          %v5327 = vshrl.u32 %v5326, 7
          %v5328 = vsub.s32 %v5325, %v5327
          %v5329 = vrot.slane %v5315, %v5328
          %v5330 = vcombine.high %v5322, %v5322
          %v5331 = vcombine.high %v5329, %v5329
          %v5332 = vcombine.high %v5232, %v5232
          %v5334 = vunpack.c.l.s4 1983009808
          %v5335 = vunpack.c.0.s8 %v5334
          %v5336 = vlaneseq
          %v5337 = vshrl.u32 %v5336, 7
          %v5338 = vsub.s32 %v5335, %v5337
          %v5339 = vrot.slane %v5232, %v5338
          %v5341 = vunpack.c.l.s4 1983009808
          %v5342 = vunpack.c.0.s8 %v5341
          %v5343 = vlaneseq
          %v5344 = vshrl.u32 %v5343, 7
          %v5345 = vsub.s32 %v5342, %v5344
          %v5346 = vrot.slane %v5332, %v5345
          %v5347 = vcombine.high %v5339, %v5339
          %v5348 = vcombine.high %v5346, %v5346
          %v5349 = vcombine.high %v5233, %v5233
          %v5351 = vunpack.c.l.s4 1983009808
          %v5352 = vunpack.c.0.s8 %v5351
          %v5353 = vlaneseq
          %v5354 = vshrl.u32 %v5353, 7
          %v5355 = vsub.s32 %v5352, %v5354
          %v5356 = vrot.slane %v5233, %v5355
          %v5358 = vunpack.c.l.s4 1983009808
          %v5359 = vunpack.c.0.s8 %v5358
          %v5360 = vlaneseq
          %v5361 = vshrl.u32 %v5360, 7
          %v5362 = vsub.s32 %v5359, %v5361
          %v5363 = vrot.slane %v5349, %v5362
          %v5364 = vcombine.high %v5356, %v5356
          %v5365 = vcombine.high %v5363, %v5363
          %v5366 = vcombine.high %v5234, %v5234
          %v5368 = vunpack.c.l.s4 1983009808
          %v5369 = vunpack.c.0.s8 %v5368
          %v5370 = vlaneseq
          %v5371 = vshrl.u32 %v5370, 7
          %v5372 = vsub.s32 %v5369, %v5371
          %v5373 = vrot.slane %v5234, %v5372
          %v5375 = vunpack.c.l.s4 1983009808
          %v5376 = vunpack.c.0.s8 %v5375
          %v5377 = vlaneseq
          %v5378 = vshrl.u32 %v5377, 7
          %v5379 = vsub.s32 %v5376, %v5378
          %v5380 = vrot.slane %v5366, %v5379
          %v5381 = vcombine.high %v5373, %v5373
          %v5382 = vcombine.high %v5380, %v5380
          %v5383 = vcombine.high %v5235, %v5235
          %v5385 = vunpack.c.l.s4 1983009808
          %v5386 = vunpack.c.0.s8 %v5385
          %v5387 = vlaneseq
          %v5388 = vshrl.u32 %v5387, 7
          %v5389 = vsub.s32 %v5386, %v5388
          %v5390 = vrot.slane %v5235, %v5389
          %v5392 = vunpack.c.l.s4 1983009808
          %v5393 = vunpack.c.0.s8 %v5392
          %v5394 = vlaneseq
          %v5395 = vshrl.u32 %v5394, 7
          %v5396 = vsub.s32 %v5393, %v5395
          %v5397 = vrot.slane %v5383, %v5396
          %v5398 = vcombine.high %v5390, %v5390
          %v5399 = vcombine.high %v5397, %v5397
          %v5401 = vunpack.c.l.s4 1983009808
          %v5402 = vunpack.c.0.s8 %v5401
          %v5403 = vlaneseq
          %v5404 = vshrl.u32 %v5403, 7
          %v5405 = vsub.s32 %v5402, %v5404
          %v5406 = vrot.slane %v5236, %v5405
          %vm5444 = vcmask 1041408
          %v5445 = vsel %vm5444, %v5254, 0.0
          %v5446 = vsel %vm5444, %v5262, 0.0
          %v5447 = vadd.f32 %v5445, %v5446
          %v5448 = vsel %vm5444, %v5261, 0.0
          %v5449 = vadd.f32 %v5447, %v5448
          %v5450 = vsel %vm5444, %v5263, 0.0
          %v5451 = vadd.f32 %v5449, %v5450
          %v5452 = vsel %vm5444, %v5271, 0.0
          %v5453 = vadd.f32 %v5451, %v5452
          %v5454 = vsel %vm5444, %v5279, 0.0
          %v5455 = vadd.f32 %v5453, %v5454
          %v5456 = vsel %vm5444, %v5278, 0.0
          %v5457 = vadd.f32 %v5455, %v5456
          %v5458 = vsel %vm5444, %v5280, 0.0
          %v5459 = vadd.f32 %v5457, %v5458
          %v5460 = vsel %vm5444, %v5288, 0.0
          %v5461 = vadd.f32 %v5459, %v5460
          %v5462 = vsel %vm5444, %v5296, 0.0
          %v5463 = vadd.f32 %v5461, %v5462
          %v5464 = vsel %vm5444, %v5295, 0.0
          %v5465 = vadd.f32 %v5463, %v5464
          %v5466 = vsel %vm5444, %v5297, 0.0
          %v5467 = vadd.f32 %v5465, %v5466
          %v5468 = vsel %vm5444, %v5305, 0.0
          %v5469 = vadd.f32 %v5467, %v5468
          %v5470 = vsel %vm5444, %v5313, 0.0
          %v5471 = vadd.f32 %v5469, %v5470
          %v5472 = vsel %vm5444, %v5312, 0.0
          %v5473 = vadd.f32 %v5471, %v5472
          %v5474 = vsel %vm5444, %v5314, 0.0
          %v5475 = vadd.f32 %v5473, %v5474
          %v5476 = vsel %vm5444, %v5322, 0.0
          %v5477 = vadd.f32 %v5475, %v5476
          %v5478 = vsel %vm5444, %v5330, 0.0
          %v5479 = vadd.f32 %v5477, %v5478
          %v5480 = vsel %vm5444, %v5329, 0.0
          %v5481 = vadd.f32 %v5479, %v5480
          %v5482 = vsel %vm5444, %v5331, 0.0
          %v5483 = vadd.f32 %v5481, %v5482
          %v5484 = vsel %vm5444, %v5339, 0.0
          %v5485 = vadd.f32 %v5483, %v5484
          %v5486 = vsel %vm5444, %v5347, 0.0
          %v5487 = vadd.f32 %v5485, %v5486
          %v5488 = vsel %vm5444, %v5346, 0.0
          %v5489 = vadd.f32 %v5487, %v5488
          %v5490 = vsel %vm5444, %v5348, 0.0
          %v5491 = vadd.f32 %v5489, %v5490
          %v5492 = vsel %vm5444, %v5356, 0.0
          %v5493 = vadd.f32 %v5491, %v5492
          %v5494 = vsel %vm5444, %v5364, 0.0
          %v5495 = vadd.f32 %v5493, %v5494
          %v5496 = vsel %vm5444, %v5363, 0.0
          %v5497 = vadd.f32 %v5495, %v5496
          %v5498 = vsel %vm5444, %v5365, 0.0
          %v5499 = vadd.f32 %v5497, %v5498
          %v5500 = vsel %vm5444, %v5373, 0.0
          %v5501 = vadd.f32 %v5499, %v5500
          %v5502 = vsel %vm5444, %v5381, 0.0
          %v5503 = vadd.f32 %v5501, %v5502
          %v5504 = vsel %vm5444, %v5380, 0.0
          %v5505 = vadd.f32 %v5503, %v5504
          %v5506 = vsel %vm5444, %v5382, 0.0
          %v5507 = vadd.f32 %v5505, %v5506
          %v5508 = vsel %vm5444, %v5390, 0.0
          %v5509 = vadd.f32 %v5507, %v5508
          %v5510 = vsel %vm5444, %v5398, 0.0
          %v5511 = vadd.f32 %v5509, %v5510
          %v5512 = vsel %vm5444, %v5397, 0.0
          %v5513 = vadd.f32 %v5511, %v5512
          %v5514 = vsel %vm5444, %v5399, 0.0
          %v5515 = vadd.f32 %v5513, %v5514
          %vm5516 = vcmask 517120
          %v5517 = vsel %vm5516, %v5406, 0.0
          %v5518 = vadd.f32 %v5515, %v5517
          %5519 = vadd.xlane.f32.xlu0 %v5518
          %v5520 = vpop.xlane.xlu0 %5519
          %v5521 = vadd.f32 %v5166, %v5520
          %vm5522 = vcmask 1024
          %v5523 = vsel %vm5522, %v5521, 0.0
          %5524 = vadd.xlane.f32.xlu0 %v5523
          %v5525 = vpop.xlane.xlu0 %5524
          %v5526 = vrot.slane %v5525, 4
          %v5527 = vadd.f32 %v5525, %v5526
          %v5528 = vrot.slane %v5527, 2
          %v5529 = vadd.f32 %v5527, %v5528
          %v5530 = vrot.slane %v5529, 1
          %v5531 = vadd.f32 %v5529, %v5530
          %s5532 = vtos %v5531
          %v5533 = vrcp.pop 2.0
          %s5534 = vtos %v5533
          %s5535 = smul.f32 %s5532, %s5534
          %v5536 = vlaneseq
          %v5537 = vand.u32 %v5536, 127
          %v5538 = vlaneseq
          %v5539 = vshrl.u32 %v5538, 7
          %vm5540 = vcmp.eq.s32.totalorder %v5537, 0
          %vm5541 = vcmp.eq.s32.totalorder %v5539, 0
          %vm5542 = vmand %vm5540, %vm5541
          %v5543 = vstv %s5535
          %v5544 = vsel %vm5542, %v5543, 0.0
          %v5545 = vld [vmem:[%s571] sm:$0xff]
          %v5546 = vmul.f32 %v5162, 0.001
          %v5547 = vadd.f32 %v5545, %v5546
          %v5548 = vadd.f32 %v5547, %v5544
          %5549 = vst [vmem:[%s571] sm:$0xff] %v5548
        $region96: #{tpu_custom_call.1} parent=59 // pred_fallthru
          _
        %s5550 = sand.u32 %s278, 1
        %s5551 = scalar_lea.sflag [#allocation4], %s5550
        %s5552 = sand.u32 %s278, 1
        %s5553 = smul.addr %s5552, 8
        %s5554 = scalar_lea.vmem [#allocation16], %s5553
        // Predicated region
        $region97: #{tpu_custom_call.1} parent=59 // pred_check
          %p5555 = pneg %p288
        $region98: #{tpu_custom_call.1} parent=59 // pred_check_branch
          %5557 = sbr.rel (%p5555) target = $region100
        $region99: #{tpu_custom_call.1} parent=59 // pred_region
          %s5559 = ssub.s32 128, 128
          %5560 = vsyncadd %s5551, %s5559
          %s5561 = smul.addr %s35, 128
          %s5562 = scalar_lea.hbm %s10, %s5561
          %s5564 = sshll.u32 %s5554, 4
          %s5565 = int_to_ptr.vmem [resolvable:$true] %s5564
          %5567 = dma.vmem_to_hbm [thread:$0]  %s5565, 128, %s5562, %s5551
        $region100: #{tpu_custom_call.1} parent=59 // pred_fallthru
          _
      $region60: #{tpu_custom_call.1} parent=5 // pred_fallthru
        _
      %p5568 = scmp.le.s32.totalorder 2, %s30
      // Predicated region
      $region101: #{tpu_custom_call.1} parent=5 // pred_check
        %p5569 = pneg %p5568
      $region102: #{tpu_custom_call.1} parent=5 // pred_check_branch
        %5571 = sbr.rel (%p5569) target = $region104
      $region103: #{tpu_custom_call.1} parent=5 // pred_region
        %s5572 = ssub.s32 %s30, 2
        // Predicated region
        $region105: #{tpu_custom_call.1} parent=103 // pred_check
          %p5573 = pneg %p294
        $region106: #{tpu_custom_call.1} parent=103 // pred_check_branch
          %5575 = sbr.rel (%p5573) target = $region108
        $region107: #{tpu_custom_call.1} parent=103 // pred_region
          %s5576 = sand.u32 %s279, 1
          %s5577 = scalar_lea.sflag [#allocation4], %s5576
          %s5578 = sand.u32 %s279, 1
          %s5579 = smul.addr %s5578, 8
          %s5580 = scalar_lea.vmem [#allocation16], %s5579
          %5581 = dma.done %s5577, 128
        $region108: #{tpu_custom_call.1} parent=103 // pred_fallthru
          _
      $region104: #{tpu_custom_call.1} parent=5 // pred_fallthru
        _
    $region6: #{tpu_custom_call.1} parent=1 // loop_footer
      %s34 = sadd.s32 1, %s30
    $region7: #{tpu_custom_call.1} parent=1 // loop_footer_branch
      %29 = sbr.rel target = $region3
    $region8: #{tpu_custom_call.1} parent=1 // loop_exit
      _
    %5582 = vsyncpa [#allocation3], 1
    %s5583 = scalar_lea.sflag [#allocation3], 1
    %5584 = vsyncpa %s5583, 1
    %5585 = vsyncpa [#allocation6], 1
    %5586 = vsyncpa [#allocation9], 1
    %s5587 = scalar_lea.sflag [#allocation9], 1
    %5588 = vsyncpa %s5587, 1
    %5589 = vsyncpa [#allocation12], 1
    %s5590 = scalar_lea.sflag [#allocation12], 1
    %5591 = vsyncpa %s5590, 1
    %5592 = vsyncpa [#allocation15], 1
    %s5593 = scalar_lea.sflag [#allocation15], 1
    %5594 = vsyncpa %s5593, 1
    %5595 = vsyncpa [#allocation4], 1
    %s5596 = scalar_lea.sflag [#allocation4], 1
    %5597 = vsyncpa %s5596, 1

</llo_original>
